<compile_context>
chip_gen: v6e
topology: v6e:2x2x1
jax: 0.10.0
libtpu: 0.0.40
codegen_flags: <defaults>
</compile_context>

<pallas_src>
import math
from functools import partial

import jax
import jax.numpy as jnp
from jax.experimental import pallas as pl
from jax.experimental.pallas import tpu as pltpu


def _invol_kernel(xpad_ref, wr_ref, br_ref, ws_ref, bs_ref, o_ref, *, H, W, K):
    """One batch element per grid step.

    xpad_ref: [1, H+2p, W+2p, C]  zero-padded NHWC image
    wr_ref  : [C, Cr]   conv_reduce weight (as x @ W)
    br_ref  : [1, Cr]   conv_reduce bias
    ws_ref  : [KK, Cr, C]  conv_span weight expanded per 3x3 offset / per channel
    bs_ref  : [KK, 1, C]   conv_span bias expanded the same way
    o_ref   : [1, H*W, C]
    """
    KK = K * K
    p = K // 2
    C = o_ref.shape[-1]
    HW = H * W

    # Center pixels (the un-padded image) for the two 1x1 convs.
    xc = xpad_ref[0, pl.ds(p, H), pl.ds(p, W), :].reshape(HW, C)
    mm1 = jnp.dot(xc, wr_ref[...], preferred_element_type=jnp.float32) + br_ref[...]

    acc = jnp.zeros((HW, C), jnp.float32)
    for j in range(KK):                      # static unroll over the 3x3 offsets
        dy, dx = j // K, j % K
        # Per-pixel, per-channel involution weight for this offset (MXU matmul).
        kw = jnp.dot(mm1, ws_ref[j], preferred_element_type=jnp.float32) + bs_ref[j]
        # The "unfold" for this offset: shifted window of the padded image (VMEM slice).
        sh = xpad_ref[0, pl.ds(dy, H), pl.ds(dx, W), :].reshape(HW, C)
        acc = acc + kw * sh.astype(jnp.float32)

    o_ref[0] = acc.astype(o_ref.dtype)


def invol_forward(x, w_reduce, b_reduce, w_span, b_span, *, k=3, G=8):
    """x: [B, C, H, W] (NCHW, like torch). Returns [B, C, H, W]."""
    B, C, H, W = x.shape
    Cr = w_reduce.shape[1]
    KK = k * k
    pad = k // 2
    cgs = C // G

    # Layout plumbing (outside the kernel): NCHW -> NHWC, plus spatial zero-pad for the unfold.
    x_nhwc = jnp.transpose(x, (0, 2, 3, 1))
    x_pad = jnp.pad(x_nhwc, ((0, 0), (pad, pad), (pad, pad), (0, 0)))

    # Expand conv_span weights once, host-side: column for (offset j, channel c) is
    # g(c)*KK + j, where g(c) = c // (C//G)  (matches torch's view(b, G, KK, h, w)).
    gidx = jnp.arange(C) // cgs                                  # [C]
    cols = gidx[None, :] * KK + jnp.arange(KK)[:, None]          # [KK, C]
    ws_exp = jnp.transpose(w_span[:, cols], (1, 0, 2))           # [KK, Cr, C]
    bs_exp = b_span[cols][:, None, :]                            # [KK, 1, C]

    kernel = partial(_invol_kernel, H=H, W=W, K=k)

    out = pl.pallas_call(
        kernel,
        out_shape=jax.ShapeDtypeStruct((B, H * W, C), x.dtype),
        grid_spec=pltpu.PrefetchScalarGridSpec(
            num_scalar_prefetch=0,
            grid=(B,),                                   # one image per step -> pipelined
            in_specs=[
                pl.BlockSpec((1, H + 2 * pad, W + 2 * pad, C), lambda b: (b, 0, 0, 0)),
                pl.BlockSpec((C, Cr), lambda b: (0, 0)),          # weights stay resident
                pl.BlockSpec((1, Cr), lambda b: (0, 0)),
                pl.BlockSpec((KK, Cr, C), lambda b: (0, 0, 0)),
                pl.BlockSpec((KK, 1, C), lambda b: (0, 0, 0)),
            ],
            out_specs=pl.BlockSpec((1, H * W, C), lambda b: (b, 0, 0)),
        ),
        compiler_params=pltpu.CompilerParams(
            dimension_semantics=("parallel",),           # megacore-shardable batch axis
            vmem_limit_bytes=48 * 1024 * 1024,           # fits v7x 64 MiB with headroom
        ),
    )(x_pad, w_reduce, b_reduce.reshape(1, Cr), ws_exp, bs_exp)

    # [B, HW, C] -> [B, C, H, W]
    return jnp.transpose(out, (0, 2, 1)).reshape(B, C, H, W)


def init_params(key, in_c, r=2, k=3, G=8, dtype=jnp.float32):
    """Deterministic init mimicking torch.nn.Conv2d (uniform +/- 1/sqrt(fan_in), 1x1 convs)."""
    Cr = in_c // r
    KK = k * k
    k1, k2, k3, k4 = jax.random.split(key, 4)
    lim_r = 1.0 / math.sqrt(in_c)      # conv_reduce fan_in = in_c
    lim_s = 1.0 / math.sqrt(Cr)        # conv_span fan_in = in_c // r
    # Stored as [in, out] matrices so the kernel computes x @ W (== torch 1x1 conv).
    w_reduce = jax.random.uniform(k1, (in_c, Cr), dtype, -lim_r, lim_r)
    b_reduce = jax.random.uniform(k2, (Cr,), dtype, -lim_r, lim_r)
    w_span = jax.random.uniform(k3, (Cr, G * KK), dtype, -lim_s, lim_s)   # col = g*KK + j
    b_span = jax.random.uniform(k4, (G * KK,), dtype, -lim_s, lim_s)
    return w_reduce, b_reduce, w_span, b_span


def invol_ref(x, w_reduce, b_reduce, w_span, b_span, *, k=3, G=8):
    """Pure-JAX reference with torch InVol.forward semantics."""
    B, C, H, W = x.shape
    KK = k * k
    pad = k // 2
    cgs = C // G
    x_nhwc = jnp.transpose(x, (0, 2, 3, 1))
    mm1 = x_nhwc @ w_reduce + b_reduce                          # [B,H,W,Cr]
    ker = mm1 @ w_span + b_span                                 # [B,H,W,G*KK]
    ker = jnp.transpose(ker, (0, 3, 1, 2)).reshape(B, G, 1, KK, H, W)
    xp = jnp.pad(x, ((0, 0), (0, 0), (pad, pad), (pad, pad)))
    patches = jnp.stack([xp[:, :, dy:dy + H, dx:dx + W]
                         for dy in range(k) for dx in range(k)], axis=2)   # [B,C,KK,H,W]
    patches = patches.reshape(B, G, cgs, KK, H, W)
    return (ker * patches).sum(axis=3).reshape(B, C, H, W)


if __name__ == "__main__":
    key = jax.random.PRNGKey(0)
    kx, kp = jax.random.split(key)

    B, in_c, H, W = 2, 16, 16, 16
    r, k, ss, G = 2, 3, 1, 8          # ss=1 -> AvgPool branch is Identity (module default)

    x = jax.random.normal(kx, (B, in_c, H, W), jnp.float32)
    w_reduce, b_reduce, w_span, b_span = init_params(kp, in_c, r=r, k=k, G=G)

    y = invol_forward(x, w_reduce, b_reduce, w_span, b_span, k=k, G=G)
    y = jax.block_until_ready(y)

    y_ref = invol_ref(x, w_reduce, b_reduce, w_span, b_span, k=k, G=G)
    assert y.shape == (B, in_c, H, W)
    assert jnp.allclose(y, y_ref, atol=1e-4, rtol=1e-4), float(jnp.max(jnp.abs(y - y_ref)))

    print("KERNEL_OK")
</pallas_src>

<mosaic_0001>
module attributes {stable_mosaic.version = 11 : i64} {
  func.func @_invol_kernel(%arg0: i32, %arg1: memref<1x18x18x16xf32, #tpu.memory_space<vmem>>, %arg2: memref<16x8xf32, #tpu.memory_space<vmem>>, %arg3: memref<1x8xf32, #tpu.memory_space<vmem>>, %arg4: memref<9x8x16xf32, #tpu.memory_space<vmem>>, %arg5: memref<9x1x16xf32, #tpu.memory_space<vmem>>, %arg6: memref<1x256x16xf32, #tpu.memory_space<vmem>>) attributes {dimension_semantics = [#tpu.dimension_semantics<parallel>], iteration_bounds = array<i64: 2>, scalar_prefetch = 0 : i64, scratch_operands = 0 : i64, tpu.core_type = #tpu.core_type<tc>, window_params = [{transform_indices = @transform_0, window_bounds = array<i64: 1, 18, 18, 16>}, {pipeline_mode = #tpu.pipeline_mode<synchronous>, transform_indices = @transform_1, window_bounds = array<i64: 16, 8>}, {pipeline_mode = #tpu.pipeline_mode<synchronous>, transform_indices = @transform_2, window_bounds = array<i64: 1, 8>}, {pipeline_mode = #tpu.pipeline_mode<synchronous>, transform_indices = @transform_3, window_bounds = array<i64: 9, 8, 16>}, {pipeline_mode = #tpu.pipeline_mode<synchronous>, transform_indices = @transform_4, window_bounds = array<i64: 9, 1, 16>}, {transform_indices = @transform_5, window_bounds = array<i64: 1, 256, 16>}]} {
    %c0 = arith.constant 0 : index
    %c1 = arith.constant 1 : index
    %c1_0 = arith.constant 1 : index
    %c0_1 = arith.constant 0 : index
    %0 = vector.load %arg1[%c0, %c1, %c1_0, %c0_1] : memref<1x18x18x16xf32, #tpu.memory_space<vmem>>, vector<1x16x16x16xf32>
    %1 = vector.shape_cast %0 : vector<1x16x16x16xf32> to vector<16x16x16xf32>
    %2 = vector.shape_cast %1 : vector<16x16x16xf32> to vector<256x16xf32>
    %c0_2 = arith.constant 0 : index
    %c0_3 = arith.constant 0 : index
    %3 = vector.load %arg2[%c0_2, %c0_3] : memref<16x8xf32, #tpu.memory_space<vmem>>, vector<16x8xf32>
    %cst = arith.constant dense<0.000000e+00> : vector<256x8xf32>
    %4 = tpu.matmul %2, %3, %cst {dimension_numbers = #tpu.dot_dimension_numbers<[1], [0], [0], [1], [0, 0, 1, 1], [], []>} : vector<256x16xf32>, vector<16x8xf32>, vector<256x8xf32> -> vector<256x8xf32>
    %c0_4 = arith.constant 0 : index
    %c0_5 = arith.constant 0 : index
    %5 = vector.load %arg3[%c0_4, %c0_5] : memref<1x8xf32, #tpu.memory_space<vmem>>, vector<1x8xf32>
    %6 = vector.broadcast %5 : vector<1x8xf32> to vector<256x8xf32>
    %7 = arith.addf %4, %6 : vector<256x8xf32>
    %cst_6 = arith.constant 0.000000e+00 : f32
    %8 = vector.broadcast %cst_6 : f32 to vector<256x16xf32>
    %c0_7 = arith.constant 0 : index
    %c0_8 = arith.constant 0 : index
    %c0_9 = arith.constant 0 : index
    %9 = vector.load %arg4[%c0_7, %c0_8, %c0_9] : memref<9x8x16xf32, #tpu.memory_space<vmem>>, vector<1x8x16xf32>
    %10 = vector.shape_cast %9 : vector<1x8x16xf32> to vector<8x16xf32>
    %cst_10 = arith.constant dense<0.000000e+00> : vector<256x16xf32>
    %11 = tpu.matmul %7, %10, %cst_10 {dimension_numbers = #tpu.dot_dimension_numbers<[1], [0], [0], [1], [0, 0, 1, 1], [], []>} : vector<256x8xf32>, vector<8x16xf32>, vector<256x16xf32> -> vector<256x16xf32>
    %c0_11 = arith.constant 0 : index
    %c0_12 = arith.constant 0 : index
    %c0_13 = arith.constant 0 : index
    %12 = vector.load %arg5[%c0_11, %c0_12, %c0_13] : memref<9x1x16xf32, #tpu.memory_space<vmem>>, vector<1x1x16xf32>
    %13 = vector.shape_cast %12 : vector<1x1x16xf32> to vector<1x16xf32>
    %14 = vector.broadcast %13 : vector<1x16xf32> to vector<256x16xf32>
    %15 = arith.addf %11, %14 : vector<256x16xf32>
    %c0_14 = arith.constant 0 : index
    %c0_15 = arith.constant 0 : index
    %c0_16 = arith.constant 0 : index
    %c0_17 = arith.constant 0 : index
    %16 = vector.load %arg1[%c0_14, %c0_15, %c0_16, %c0_17] : memref<1x18x18x16xf32, #tpu.memory_space<vmem>>, vector<1x16x16x16xf32>
    %17 = vector.shape_cast %16 : vector<1x16x16x16xf32> to vector<16x16x16xf32>
    %18 = vector.shape_cast %17 : vector<16x16x16xf32> to vector<256x16xf32>
    %19 = arith.mulf %15, %18 : vector<256x16xf32>
    %20 = arith.addf %8, %19 : vector<256x16xf32>
    %c1_18 = arith.constant 1 : index
    %c0_19 = arith.constant 0 : index
    %c0_20 = arith.constant 0 : index
    %21 = vector.load %arg4[%c1_18, %c0_19, %c0_20] : memref<9x8x16xf32, #tpu.memory_space<vmem>>, vector<1x8x16xf32>
    %22 = vector.shape_cast %21 : vector<1x8x16xf32> to vector<8x16xf32>
    %cst_21 = arith.constant dense<0.000000e+00> : vector<256x16xf32>
    %23 = tpu.matmul %7, %22, %cst_21 {dimension_numbers = #tpu.dot_dimension_numbers<[1], [0], [0], [1], [0, 0, 1, 1], [], []>} : vector<256x8xf32>, vector<8x16xf32>, vector<256x16xf32> -> vector<256x16xf32>
    %c1_22 = arith.constant 1 : index
    %c0_23 = arith.constant 0 : index
    %c0_24 = arith.constant 0 : index
    %24 = vector.load %arg5[%c1_22, %c0_23, %c0_24] : memref<9x1x16xf32, #tpu.memory_space<vmem>>, vector<1x1x16xf32>
    %25 = vector.shape_cast %24 : vector<1x1x16xf32> to vector<1x16xf32>
    %26 = vector.broadcast %25 : vector<1x16xf32> to vector<256x16xf32>
    %27 = arith.addf %23, %26 : vector<256x16xf32>
    %c0_25 = arith.constant 0 : index
    %c0_26 = arith.constant 0 : index
    %c1_27 = arith.constant 1 : index
    %c0_28 = arith.constant 0 : index
    %28 = vector.load %arg1[%c0_25, %c0_26, %c1_27, %c0_28] : memref<1x18x18x16xf32, #tpu.memory_space<vmem>>, vector<1x16x16x16xf32>
    %29 = vector.shape_cast %28 : vector<1x16x16x16xf32> to vector<16x16x16xf32>
    %30 = vector.shape_cast %29 : vector<16x16x16xf32> to vector<256x16xf32>
    %31 = arith.mulf %27, %30 : vector<256x16xf32>
    %32 = arith.addf %20, %31 : vector<256x16xf32>
    %c2 = arith.constant 2 : index
    %c0_29 = arith.constant 0 : index
    %c0_30 = arith.constant 0 : index
    %33 = vector.load %arg4[%c2, %c0_29, %c0_30] : memref<9x8x16xf32, #tpu.memory_space<vmem>>, vector<1x8x16xf32>
    %34 = vector.shape_cast %33 : vector<1x8x16xf32> to vector<8x16xf32>
    %cst_31 = arith.constant dense<0.000000e+00> : vector<256x16xf32>
    %35 = tpu.matmul %7, %34, %cst_31 {dimension_numbers = #tpu.dot_dimension_numbers<[1], [0], [0], [1], [0, 0, 1, 1], [], []>} : vector<256x8xf32>, vector<8x16xf32>, vector<256x16xf32> -> vector<256x16xf32>
    %c2_32 = arith.constant 2 : index
    %c0_33 = arith.constant 0 : index
    %c0_34 = arith.constant 0 : index
    %36 = vector.load %arg5[%c2_32, %c0_33, %c0_34] : memref<9x1x16xf32, #tpu.memory_space<vmem>>, vector<1x1x16xf32>
    %37 = vector.shape_cast %36 : vector<1x1x16xf32> to vector<1x16xf32>
    %38 = vector.broadcast %37 : vector<1x16xf32> to vector<256x16xf32>
    %39 = arith.addf %35, %38 : vector<256x16xf32>
    %c0_35 = arith.constant 0 : index
    %c0_36 = arith.constant 0 : index
    %c2_37 = arith.constant 2 : index
    %c0_38 = arith.constant 0 : index
    %40 = vector.load %arg1[%c0_35, %c0_36, %c2_37, %c0_38] : memref<1x18x18x16xf32, #tpu.memory_space<vmem>>, vector<1x16x16x16xf32>
    %41 = vector.shape_cast %40 : vector<1x16x16x16xf32> to vector<16x16x16xf32>
    %42 = vector.shape_cast %41 : vector<16x16x16xf32> to vector<256x16xf32>
    %43 = arith.mulf %39, %42 : vector<256x16xf32>
    %44 = arith.addf %32, %43 : vector<256x16xf32>
    %c3 = arith.constant 3 : index
    %c0_39 = arith.constant 0 : index
    %c0_40 = arith.constant 0 : index
    %45 = vector.load %arg4[%c3, %c0_39, %c0_40] : memref<9x8x16xf32, #tpu.memory_space<vmem>>, vector<1x8x16xf32>
    %46 = vector.shape_cast %45 : vector<1x8x16xf32> to vector<8x16xf32>
    %cst_41 = arith.constant dense<0.000000e+00> : vector<256x16xf32>
    %47 = tpu.matmul %7, %46, %cst_41 {dimension_numbers = #tpu.dot_dimension_numbers<[1], [0], [0], [1], [0, 0, 1, 1], [], []>} : vector<256x8xf32>, vector<8x16xf32>, vector<256x16xf32> -> vector<256x16xf32>
    %c3_42 = arith.constant 3 : index
    %c0_43 = arith.constant 0 : index
    %c0_44 = arith.constant 0 : index
    %48 = vector.load %arg5[%c3_42, %c0_43, %c0_44] : memref<9x1x16xf32, #tpu.memory_space<vmem>>, vector<1x1x16xf32>
    %49 = vector.shape_cast %48 : vector<1x1x16xf32> to vector<1x16xf32>
    %50 = vector.broadcast %49 : vector<1x16xf32> to vector<256x16xf32>
    %51 = arith.addf %47, %50 : vector<256x16xf32>
    %c0_45 = arith.constant 0 : index
    %c1_46 = arith.constant 1 : index
    %c0_47 = arith.constant 0 : index
    %c0_48 = arith.constant 0 : index
    %52 = vector.load %arg1[%c0_45, %c1_46, %c0_47, %c0_48] : memref<1x18x18x16xf32, #tpu.memory_space<vmem>>, vector<1x16x16x16xf32>
    %53 = vector.shape_cast %52 : vector<1x16x16x16xf32> to vector<16x16x16xf32>
    %54 = vector.shape_cast %53 : vector<16x16x16xf32> to vector<256x16xf32>
    %55 = arith.mulf %51, %54 : vector<256x16xf32>
    %56 = arith.addf %44, %55 : vector<256x16xf32>
    %c4 = arith.constant 4 : index
    %c0_49 = arith.constant 0 : index
    %c0_50 = arith.constant 0 : index
    %57 = vector.load %arg4[%c4, %c0_49, %c0_50] : memref<9x8x16xf32, #tpu.memory_space<vmem>>, vector<1x8x16xf32>
    %58 = vector.shape_cast %57 : vector<1x8x16xf32> to vector<8x16xf32>
    %cst_51 = arith.constant dense<0.000000e+00> : vector<256x16xf32>
    %59 = tpu.matmul %7, %58, %cst_51 {dimension_numbers = #tpu.dot_dimension_numbers<[1], [0], [0], [1], [0, 0, 1, 1], [], []>} : vector<256x8xf32>, vector<8x16xf32>, vector<256x16xf32> -> vector<256x16xf32>
    %c4_52 = arith.constant 4 : index
    %c0_53 = arith.constant 0 : index
    %c0_54 = arith.constant 0 : index
    %60 = vector.load %arg5[%c4_52, %c0_53, %c0_54] : memref<9x1x16xf32, #tpu.memory_space<vmem>>, vector<1x1x16xf32>
    %61 = vector.shape_cast %60 : vector<1x1x16xf32> to vector<1x16xf32>
    %62 = vector.broadcast %61 : vector<1x16xf32> to vector<256x16xf32>
    %63 = arith.addf %59, %62 : vector<256x16xf32>
    %c0_55 = arith.constant 0 : index
    %c1_56 = arith.constant 1 : index
    %c1_57 = arith.constant 1 : index
    %c0_58 = arith.constant 0 : index
    %64 = vector.load %arg1[%c0_55, %c1_56, %c1_57, %c0_58] : memref<1x18x18x16xf32, #tpu.memory_space<vmem>>, vector<1x16x16x16xf32>
    %65 = vector.shape_cast %64 : vector<1x16x16x16xf32> to vector<16x16x16xf32>
    %66 = vector.shape_cast %65 : vector<16x16x16xf32> to vector<256x16xf32>
    %67 = arith.mulf %63, %66 : vector<256x16xf32>
    %68 = arith.addf %56, %67 : vector<256x16xf32>
    %c5 = arith.constant 5 : index
    %c0_59 = arith.constant 0 : index
    %c0_60 = arith.constant 0 : index
    %69 = vector.load %arg4[%c5, %c0_59, %c0_60] : memref<9x8x16xf32, #tpu.memory_space<vmem>>, vector<1x8x16xf32>
    %70 = vector.shape_cast %69 : vector<1x8x16xf32> to vector<8x16xf32>
    %cst_61 = arith.constant dense<0.000000e+00> : vector<256x16xf32>
    %71 = tpu.matmul %7, %70, %cst_61 {dimension_numbers = #tpu.dot_dimension_numbers<[1], [0], [0], [1], [0, 0, 1, 1], [], []>} : vector<256x8xf32>, vector<8x16xf32>, vector<256x16xf32> -> vector<256x16xf32>
    %c5_62 = arith.constant 5 : index
    %c0_63 = arith.constant 0 : index
    %c0_64 = arith.constant 0 : index
    %72 = vector.load %arg5[%c5_62, %c0_63, %c0_64] : memref<9x1x16xf32, #tpu.memory_space<vmem>>, vector<1x1x16xf32>
    %73 = vector.shape_cast %72 : vector<1x1x16xf32> to vector<1x16xf32>
    %74 = vector.broadcast %73 : vector<1x16xf32> to vector<256x16xf32>
    %75 = arith.addf %71, %74 : vector<256x16xf32>
    %c0_65 = arith.constant 0 : index
    %c1_66 = arith.constant 1 : index
    %c2_67 = arith.constant 2 : index
    %c0_68 = arith.constant 0 : index
    %76 = vector.load %arg1[%c0_65, %c1_66, %c2_67, %c0_68] : memref<1x18x18x16xf32, #tpu.memory_space<vmem>>, vector<1x16x16x16xf32>
    %77 = vector.shape_cast %76 : vector<1x16x16x16xf32> to vector<16x16x16xf32>
    %78 = vector.shape_cast %77 : vector<16x16x16xf32> to vector<256x16xf32>
    %79 = arith.mulf %75, %78 : vector<256x16xf32>
    %80 = arith.addf %68, %79 : vector<256x16xf32>
    %c6 = arith.constant 6 : index
    %c0_69 = arith.constant 0 : index
    %c0_70 = arith.constant 0 : index
    %81 = vector.load %arg4[%c6, %c0_69, %c0_70] : memref<9x8x16xf32, #tpu.memory_space<vmem>>, vector<1x8x16xf32>
    %82 = vector.shape_cast %81 : vector<1x8x16xf32> to vector<8x16xf32>
    %cst_71 = arith.constant dense<0.000000e+00> : vector<256x16xf32>
    %83 = tpu.matmul %7, %82, %cst_71 {dimension_numbers = #tpu.dot_dimension_numbers<[1], [0], [0], [1], [0, 0, 1, 1], [], []>} : vector<256x8xf32>, vector<8x16xf32>, vector<256x16xf32> -> vector<256x16xf32>
    %c6_72 = arith.constant 6 : index
    %c0_73 = arith.constant 0 : index
    %c0_74 = arith.constant 0 : index
    %84 = vector.load %arg5[%c6_72, %c0_73, %c0_74] : memref<9x1x16xf32, #tpu.memory_space<vmem>>, vector<1x1x16xf32>
    %85 = vector.shape_cast %84 : vector<1x1x16xf32> to vector<1x16xf32>
    %86 = vector.broadcast %85 : vector<1x16xf32> to vector<256x16xf32>
    %87 = arith.addf %83, %86 : vector<256x16xf32>
    %c0_75 = arith.constant 0 : index
    %c2_76 = arith.constant 2 : index
    %c0_77 = arith.constant 0 : index
    %c0_78 = arith.constant 0 : index
    %88 = vector.load %arg1[%c0_75, %c2_76, %c0_77, %c0_78] : memref<1x18x18x16xf32, #tpu.memory_space<vmem>>, vector<1x16x16x16xf32>
    %89 = vector.shape_cast %88 : vector<1x16x16x16xf32> to vector<16x16x16xf32>
    %90 = vector.shape_cast %89 : vector<16x16x16xf32> to vector<256x16xf32>
    %91 = arith.mulf %87, %90 : vector<256x16xf32>
    %92 = arith.addf %80, %91 : vector<256x16xf32>
    %c7 = arith.constant 7 : index
    %c0_79 = arith.constant 0 : index
    %c0_80 = arith.constant 0 : index
    %93 = vector.load %arg4[%c7, %c0_79, %c0_80] : memref<9x8x16xf32, #tpu.memory_space<vmem>>, vector<1x8x16xf32>
    %94 = vector.shape_cast %93 : vector<1x8x16xf32> to vector<8x16xf32>
    %cst_81 = arith.constant dense<0.000000e+00> : vector<256x16xf32>
    %95 = tpu.matmul %7, %94, %cst_81 {dimension_numbers = #tpu.dot_dimension_numbers<[1], [0], [0], [1], [0, 0, 1, 1], [], []>} : vector<256x8xf32>, vector<8x16xf32>, vector<256x16xf32> -> vector<256x16xf32>
    %c7_82 = arith.constant 7 : index
    %c0_83 = arith.constant 0 : index
    %c0_84 = arith.constant 0 : index
    %96 = vector.load %arg5[%c7_82, %c0_83, %c0_84] : memref<9x1x16xf32, #tpu.memory_space<vmem>>, vector<1x1x16xf32>
    %97 = vector.shape_cast %96 : vector<1x1x16xf32> to vector<1x16xf32>
    %98 = vector.broadcast %97 : vector<1x16xf32> to vector<256x16xf32>
    %99 = arith.addf %95, %98 : vector<256x16xf32>
    %c0_85 = arith.constant 0 : index
    %c2_86 = arith.constant 2 : index
    %c1_87 = arith.constant 1 : index
    %c0_88 = arith.constant 0 : index
    %100 = vector.load %arg1[%c0_85, %c2_86, %c1_87, %c0_88] : memref<1x18x18x16xf32, #tpu.memory_space<vmem>>, vector<1x16x16x16xf32>
    %101 = vector.shape_cast %100 : vector<1x16x16x16xf32> to vector<16x16x16xf32>
    %102 = vector.shape_cast %101 : vector<16x16x16xf32> to vector<256x16xf32>
    %103 = arith.mulf %99, %102 : vector<256x16xf32>
    %104 = arith.addf %92, %103 : vector<256x16xf32>
    %c8 = arith.constant 8 : index
    %c0_89 = arith.constant 0 : index
    %c0_90 = arith.constant 0 : index
    %105 = vector.load %arg4[%c8, %c0_89, %c0_90] : memref<9x8x16xf32, #tpu.memory_space<vmem>>, vector<1x8x16xf32>
    %106 = vector.shape_cast %105 : vector<1x8x16xf32> to vector<8x16xf32>
    %cst_91 = arith.constant dense<0.000000e+00> : vector<256x16xf32>
    %107 = tpu.matmul %7, %106, %cst_91 {dimension_numbers = #tpu.dot_dimension_numbers<[1], [0], [0], [1], [0, 0, 1, 1], [], []>} : vector<256x8xf32>, vector<8x16xf32>, vector<256x16xf32> -> vector<256x16xf32>
    %c8_92 = arith.constant 8 : index
    %c0_93 = arith.constant 0 : index
    %c0_94 = arith.constant 0 : index
    %108 = vector.load %arg5[%c8_92, %c0_93, %c0_94] : memref<9x1x16xf32, #tpu.memory_space<vmem>>, vector<1x1x16xf32>
    %109 = vector.shape_cast %108 : vector<1x1x16xf32> to vector<1x16xf32>
    %110 = vector.broadcast %109 : vector<1x16xf32> to vector<256x16xf32>
    %111 = arith.addf %107, %110 : vector<256x16xf32>
    %c0_95 = arith.constant 0 : index
    %c2_96 = arith.constant 2 : index
    %c2_97 = arith.constant 2 : index
    %c0_98 = arith.constant 0 : index
    %112 = vector.load %arg1[%c0_95, %c2_96, %c2_97, %c0_98] : memref<1x18x18x16xf32, #tpu.memory_space<vmem>>, vector<1x16x16x16xf32>
    %113 = vector.shape_cast %112 : vector<1x16x16x16xf32> to vector<16x16x16xf32>
    %114 = vector.shape_cast %113 : vector<16x16x16xf32> to vector<256x16xf32>
    %115 = arith.mulf %111, %114 : vector<256x16xf32>
    %116 = arith.addf %104, %115 : vector<256x16xf32>
    %c0_99 = arith.constant 0 : index
    %c0_100 = arith.constant 0 : index
    %c0_101 = arith.constant 0 : index
    %117 = vector.load %arg6[%c0_99, %c0_100, %c0_101] : memref<1x256x16xf32, #tpu.memory_space<vmem>>, vector<1x256x16xf32>
    %118 = vector.shape_cast %117 : vector<1x256x16xf32> to vector<256x16xf32>
    %119 = vector.shape_cast %116 : vector<256x16xf32> to vector<1x256x16xf32>
    tpu.vector_store %arg6[%c0_99, %c0_100, %c0_101], %119 {strides = array<i32>} : memref<1x256x16xf32, #tpu.memory_space<vmem>>, vector<1x256x16xf32>,
    return
  }
  func.func @transform_0(%arg0: i32) -> (i32, i32, i32, i32) {
    %c0_i32 = arith.constant 0 : i32
    %c0_i32_0 = arith.constant 0 : i32
    %c0_i32_1 = arith.constant 0 : i32
    %c0_i32_2 = arith.constant 0 : i32
    return %arg0, %c0_i32, %c0_i32_0, %c0_i32_1 : i32, i32, i32, i32
  }
  func.func @transform_1(%arg0: i32) -> (i32, i32) {
    %c0_i32 = arith.constant 0 : i32
    %c0_i32_0 = arith.constant 0 : i32
    %c0_i32_1 = arith.constant 0 : i32
    return %c0_i32, %c0_i32_0 : i32, i32
  }
  func.func @transform_2(%arg0: i32) -> (i32, i32) {
    %c0_i32 = arith.constant 0 : i32
    %c0_i32_0 = arith.constant 0 : i32
    %c0_i32_1 = arith.constant 0 : i32
    return %c0_i32, %c0_i32_0 : i32, i32
  }
  func.func @transform_3(%arg0: i32) -> (i32, i32, i32) {
    %c0_i32 = arith.constant 0 : i32
    %c0_i32_0 = arith.constant 0 : i32
    %c0_i32_1 = arith.constant 0 : i32
    %c0_i32_2 = arith.constant 0 : i32
    return %c0_i32, %c0_i32_0, %c0_i32_1 : i32, i32, i32
  }
  func.func @transform_4(%arg0: i32) -> (i32, i32, i32) {
    %c0_i32 = arith.constant 0 : i32
    %c0_i32_0 = arith.constant 0 : i32
    %c0_i32_1 = arith.constant 0 : i32
    %c0_i32_2 = arith.constant 0 : i32
    return %c0_i32, %c0_i32_0, %c0_i32_1 : i32, i32, i32
  }
  func.func @transform_5(%arg0: i32) -> (i32, i32, i32) {
    %c0_i32 = arith.constant 0 : i32
    %c0_i32_0 = arith.constant 0 : i32
    %c0_i32_1 = arith.constant 0 : i32
    return %arg0, %c0_i32, %c0_i32_0 : i32, i32, i32
  }
}

</mosaic_0001>

<llo_original>
// kernel: tpu_custom_call.1
$region0: #{tpu_custom_call.1}
  #allocation0 [shape = 'u32[]', space=smem, size = 0x4, offset = 0x4, fixed_abs, tag = 'smem constant byte address 0x4 - core index']
  #allocation1 [shape = 'u32[144,128]{1,0:T(1,128)}', space=vmem, size = 0x12000, scoped, tag = 'internal scratch']
  %s0 = inlined_call_operand.vmem [shape: f32[2,18,18,16], index: 0, kind: input, shape index: {}]
  %s1 = inlined_call_operand.vmem [shape: f32[16,8], index: 1, kind: input, shape index: {}]
  %s2 = inlined_call_operand.vmem [shape: f32[1,8], index: 2, kind: input, shape index: {}]
  %s3 = inlined_call_operand.vmem [shape: f32[9,8,16], index: 3, kind: input, shape index: {}]
  %s4 = inlined_call_operand.vmem [shape: f32[9,1,16], index: 4, kind: input, shape index: {}]
  %s5 = inlined_call_operand.vmem [shape: f32[2,256,16], index: 5, kind: output, shape index: {}]
  %s6 = sld [smem:[#allocation0]]
  $region53: #{tpu_custom_call.1} parent=0
    _
  %s8 = ssub.s32 1, %s6
  %s9 = scalar_select 0, %s8, %s6
  loop: start=0, step=1, limit=4
  $region2: #{tpu_custom_call.1} parent=0 // loop_pre_header
    _
  $region3: #{tpu_custom_call.1} parent=0 // loop_header
    %s11 = sphi 0, %s15
    %p12 = scmp.ge.s32.totalorder %s11, 4
    %s21 = sphi 0, %s23
    %s24 = sphi 0, %s21
    %s25 = sphi 0, %s24
    %s41 = sphi 0, %s25
    %s45 = sphi 0, %s45
    %s47 = sphi 0, %s45
    %s48 = sphi 0, %s47
    %s62 = sphi 0, %s48
    %s66 = sphi 0, %s66
    %s68 = sphi 0, %s66
    %s69 = sphi 0, %s68
    %s83 = sphi 0, %s69
    %s87 = sphi 0, %s87
    %s89 = sphi 0, %s87
    %s90 = sphi 0, %s89
    %s104 = sphi 0, %s90
    %s108 = sphi 0, %s108
    %s110 = sphi 0, %s108
    %s111 = sphi 0, %s110
    %s125 = sphi 0, %s111
    %s131 = sphi 0, %s133
    %s134 = sphi 0, %s131
    %s135 = sphi 0, %s134
    %s151 = sphi 0, %s135
  $region4: #{tpu_custom_call.1} parent=0 // loop_header_branch
    %14 = sbr.rel (%p12) target = $region8
  $region5: #{tpu_custom_call.1} parent=0 // loop_body
    %s16 = ssub.s32 %s11, 1
    %s17 = ssub.s32 %s11, 2
    %s18 = sadd.s32 %s11, 1
    %s19 = ssub.s32 %s11, %s18
    %p20 = scmp.eq.s32.totalorder %s19, 0
    %s22 = sadd.s32 %s21, 1
    %s23 = scalar_select %p20, %s21, %s22
    %p26 = pneg %p20
    %p27 = scmp.eq.s32.totalorder %s11, 1
    %p28 = por %p26, %p27
    %p29 = scmp.ne.s32.totalorder %s21, %s24
    %p30 = scmp.eq.s32.totalorder %s11, 0
    %p31 = por %p29, %p30
    %p32 = scmp.ne.s32.totalorder %s21, %s24
    %p33 = scmp.eq.s32.totalorder %s16, 1
    %p34 = por %p32, %p33
    %p35 = scmp.ne.s32.totalorder %s24, %s25
    %p36 = scmp.eq.s32.totalorder %s16, 0
    %p37 = por %p35, %p36
    %p38 = scmp.ne.s32.totalorder %s24, %s25
    %p39 = scmp.eq.s32.totalorder %s17, 1
    %p40 = por %p38, %p39
    %p42 = scmp.ne.s32.totalorder %s25, %s41
    %p43 = scmp.eq.s32.totalorder %s17, 0
    %p44 = por %p42, %p43
    %s46 = sadd.s32 %s45, 1
    %p49 = scmp.eq.s32.totalorder %s11, 1
    %p50 = scmp.ne.s32.totalorder %s45, %s47
    %p51 = scmp.eq.s32.totalorder %s11, 0
    %p52 = por %p50, %p51
    %p53 = scmp.ne.s32.totalorder %s45, %s47
    %p54 = scmp.eq.s32.totalorder %s16, 1
    %p55 = por %p53, %p54
    %p56 = scmp.ne.s32.totalorder %s47, %s48
    %p57 = scmp.eq.s32.totalorder %s16, 0
    %p58 = por %p56, %p57
    %p59 = scmp.ne.s32.totalorder %s47, %s48
    %p60 = scmp.eq.s32.totalorder %s17, 1
    %p61 = por %p59, %p60
    %p63 = scmp.ne.s32.totalorder %s48, %s62
    %p64 = scmp.eq.s32.totalorder %s17, 0
    %p65 = por %p63, %p64
    %s67 = sadd.s32 %s66, 1
    %p70 = scmp.eq.s32.totalorder %s11, 1
    %p71 = scmp.ne.s32.totalorder %s66, %s68
    %p72 = scmp.eq.s32.totalorder %s11, 0
    %p73 = por %p71, %p72
    %p74 = scmp.ne.s32.totalorder %s66, %s68
    %p75 = scmp.eq.s32.totalorder %s16, 1
    %p76 = por %p74, %p75
    %p77 = scmp.ne.s32.totalorder %s68, %s69
    %p78 = scmp.eq.s32.totalorder %s16, 0
    %p79 = por %p77, %p78
    %p80 = scmp.ne.s32.totalorder %s68, %s69
    %p81 = scmp.eq.s32.totalorder %s17, 1
    %p82 = por %p80, %p81
    %p84 = scmp.ne.s32.totalorder %s69, %s83
    %p85 = scmp.eq.s32.totalorder %s17, 0
    %p86 = por %p84, %p85
    %s88 = sadd.s32 %s87, 1
    %p91 = scmp.eq.s32.totalorder %s11, 1
    %p92 = scmp.ne.s32.totalorder %s87, %s89
    %p93 = scmp.eq.s32.totalorder %s11, 0
    %p94 = por %p92, %p93
    %p95 = scmp.ne.s32.totalorder %s87, %s89
    %p96 = scmp.eq.s32.totalorder %s16, 1
    %p97 = por %p95, %p96
    %p98 = scmp.ne.s32.totalorder %s89, %s90
    %p99 = scmp.eq.s32.totalorder %s16, 0
    %p100 = por %p98, %p99
    %p101 = scmp.ne.s32.totalorder %s89, %s90
    %p102 = scmp.eq.s32.totalorder %s17, 1
    %p103 = por %p101, %p102
    %p105 = scmp.ne.s32.totalorder %s90, %s104
    %p106 = scmp.eq.s32.totalorder %s17, 0
    %p107 = por %p105, %p106
    %s109 = sadd.s32 %s108, 1
    %p112 = scmp.eq.s32.totalorder %s11, 1
    %p113 = scmp.ne.s32.totalorder %s108, %s110
    %p114 = scmp.eq.s32.totalorder %s11, 0
    %p115 = por %p113, %p114
    %p116 = scmp.ne.s32.totalorder %s108, %s110
    %p117 = scmp.eq.s32.totalorder %s16, 1
    %p118 = por %p116, %p117
    %p119 = scmp.ne.s32.totalorder %s110, %s111
    %p120 = scmp.eq.s32.totalorder %s16, 0
    %p121 = por %p119, %p120
    %p122 = scmp.ne.s32.totalorder %s110, %s111
    %p123 = scmp.eq.s32.totalorder %s17, 1
    %p124 = por %p122, %p123
    %p126 = scmp.ne.s32.totalorder %s111, %s125
    %p127 = scmp.eq.s32.totalorder %s17, 0
    %p128 = por %p126, %p127
    %s129 = ssub.s32 %s11, %s18
    %p130 = scmp.eq.s32.totalorder %s129, 0
    %s132 = sadd.s32 %s131, 1
    %s133 = scalar_select %p130, %s131, %s132
    %p136 = pneg %p130
    %p137 = scmp.eq.s32.totalorder %s11, 1
    %p138 = por %p136, %p137
    %p139 = scmp.ne.s32.totalorder %s131, %s134
    %p140 = scmp.eq.s32.totalorder %s11, 0
    %p141 = por %p139, %p140
    %p142 = scmp.ne.s32.totalorder %s131, %s134
    %p143 = scmp.eq.s32.totalorder %s16, 1
    %p144 = por %p142, %p143
    %p145 = scmp.ne.s32.totalorder %s134, %s135
    %p146 = scmp.eq.s32.totalorder %s16, 0
    %p147 = por %p145, %p146
    %p148 = scmp.ne.s32.totalorder %s134, %s135
    %p149 = scmp.eq.s32.totalorder %s17, 1
    %p150 = por %p148, %p149
    %p152 = scmp.ne.s32.totalorder %s135, %s151
    %p153 = scmp.eq.s32.totalorder %s17, 0
    %p154 = por %p152, %p153
    %p155 = scmp.le.s32.totalorder 1, %s11
    %p156 = scmp.lt.s32.totalorder %s11, 3
    %p157 = pnand %p155, %p156
    %p158 = pneg %p157
    // Predicated region
    $region9: #{tpu_custom_call.1} parent=5 // pred_check
      _
    $region10: #{tpu_custom_call.1} parent=5 // pred_check_branch
      %160 = sbr.rel (%p157) target = $region12
    $region11: #{tpu_custom_call.1} parent=5 // pred_region
      %s161 = ssub.s32 %s11, 1
      // Predicated region
      $region13: #{tpu_custom_call.1} parent=11 // pred_check
        %p162 = pneg %p58
      $region14: #{tpu_custom_call.1} parent=11 // pred_check_branch
        %164 = sbr.rel (%p162) target = $region16
      $region15: #{tpu_custom_call.1} parent=11 // pred_region
        _
      $region16: #{tpu_custom_call.1} parent=11 // pred_fallthru
        _
      // Predicated region
      $region17: #{tpu_custom_call.1} parent=11 // pred_check
        %p165 = pneg %p79
      $region18: #{tpu_custom_call.1} parent=11 // pred_check_branch
        %167 = sbr.rel (%p165) target = $region20
      $region19: #{tpu_custom_call.1} parent=11 // pred_region
        _
      $region20: #{tpu_custom_call.1} parent=11 // pred_fallthru
        _
      // Predicated region
      $region21: #{tpu_custom_call.1} parent=11 // pred_check
        %p168 = pneg %p100
      $region22: #{tpu_custom_call.1} parent=11 // pred_check_branch
        %170 = sbr.rel (%p168) target = $region24
      $region23: #{tpu_custom_call.1} parent=11 // pred_region
        _
      $region24: #{tpu_custom_call.1} parent=11 // pred_fallthru
        _
      // Predicated region
      $region25: #{tpu_custom_call.1} parent=11 // pred_check
        %p171 = pneg %p121
      $region26: #{tpu_custom_call.1} parent=11 // pred_check_branch
        %173 = sbr.rel (%p171) target = $region28
      $region27: #{tpu_custom_call.1} parent=11 // pred_region
        _
      $region28: #{tpu_custom_call.1} parent=11 // pred_fallthru
        _
    $region12: #{tpu_custom_call.1} parent=5 // pred_fallthru
      _
    %p174 = scmp.lt.s32.totalorder %s11, 2
    // Predicated region
    $region29: #{tpu_custom_call.1} parent=5 // pred_check
      %p175 = pneg %p174
    $region30: #{tpu_custom_call.1} parent=5 // pred_check_branch
      %177 = sbr.rel (%p175) target = $region32
    $region31: #{tpu_custom_call.1} parent=5 // pred_region
      // Predicated region
      $region33: #{tpu_custom_call.1} parent=31 // pred_check
        %p178 = pneg %p31
      $region34: #{tpu_custom_call.1} parent=31 // pred_check_branch
        %180 = sbr.rel (%p178) target = $region36
      $region35: #{tpu_custom_call.1} parent=31 // pred_region
        %p181 = scmp.lt.s32.totalorder %s11, 1
        %s182 = scalar_select %p181, %s11, 1
        %s183 = smul.addr %s182, 54
        %s184 = smul.addr %s183, 8
        %s185 = scalar_lea.vmem %s0, %s184
      $region36: #{tpu_custom_call.1} parent=31 // pred_fallthru
        _
    $region32: #{tpu_custom_call.1} parent=5 // pred_fallthru
      _
    %p186 = scmp.le.s32.totalorder 1, %s11
    %p187 = scmp.lt.s32.totalorder %s11, 3
    %p188 = pnand %p186, %p187
    %p189 = pneg %p188
    // Predicated region
    $region37: #{tpu_custom_call.1} parent=5 // pred_check
      _
    $region38: #{tpu_custom_call.1} parent=5 // pred_check_branch
      %191 = sbr.rel (%p188) target = $region40
    $region39: #{tpu_custom_call.1} parent=5 // pred_region
      %s192 = ssub.s32 %s11, 1
      %p193 = scmp.lt.s32.totalorder %s16, 1
      %s194 = scalar_select %p193, %s16, 1
      %s195 = smul.addr %s194, 54
      %s196 = smul.addr %s195, 8
      %s197 = scalar_lea.vmem %s0, %s196
      %p198 = pneg %p37
      %p199 = pneg %p34
      %p200 = pneg %p58
      %p201 = pneg %p55
      %p202 = pneg %p79
      %p203 = pneg %p76
      %p204 = pneg %p100
      %p205 = pneg %p97
      %p206 = pneg %p121
      %p207 = pneg %p118
      %p208 = pneg %p147
      %p209 = pneg %p144
      %p210 = scmp.lt.s32.totalorder %s16, 1
      %s211 = scalar_select %p210, %s16, 1
      %s212 = smul.addr %s211, 32
      %s213 = smul.addr %s212, 8
      %s214 = scalar_lea.vmem %s5, %s213
      %p215 = scmp.lt.s32.totalorder %s16, 1
      %s216 = scalar_select %p215, %s16, 1
      %s217 = smul.addr %s216, 54
      %s218 = smul.addr %s217, 8
      %s219 = scalar_lea.vmem %s0, %s218
      %p220 = scmp.lt.s32.totalorder %s16, 1
      %s221 = scalar_select %p220, %s16, 1
      %s222 = smul.addr %s221, 32
      %s223 = smul.addr %s222, 8
      %s224 = scalar_lea.vmem %s5, %s223
      %s225 = scalar_lea.vmem %s219, 24
      %v226 = vld [vmem:[%s225 + $0x1] sm:$0xff]
      %v227 = vld [vmem:[%s225 + $0x9] sm:$0xff]
      %v228 = vld [vmem:[%s225 + $0x19] sm:$0xff]
      %v229 = vld [vmem:[%s225 + $0x21] sm:$0xff]
      %v230 = vld [vmem:[%s225 + $0x31] sm:$0xff]
      %v231 = vld [vmem:[%s225 + $0x39] sm:$0xff]
      %v232 = vld [vmem:[%s225 + $0x49] sm:$0xff]
      %v233 = vld [vmem:[%s225 + $0x51] sm:$0xff]
      %v234 = vld [vmem:[%s225 + $0x61] sm:$0xff]
      %v235 = vld [vmem:[%s225 + $0x69] sm:$0xff]
      %v236 = vld [vmem:[%s225 + $0x79] sm:$0xff]
      %v237 = vld [vmem:[%s225 + $0x81] sm:$0xff]
      %v238 = vld [vmem:[%s225 + $0x91] sm:$0xff]
      %v239 = vld [vmem:[%s225 + $0x99] sm:$0xff]
      %v240 = vld [vmem:[%s225 + $0xa9] sm:$0xff]
      %v241 = vld [vmem:[%s225 + $0xb1] sm:$0xff]
      %v242 = vld [vmem:[%s225 + $0xc1] sm:$0xff]
      %v243 = vld [vmem:[%s225 + $0xc9] sm:$0xff]
      %v244 = vld [vmem:[%s225 + $0xd9] sm:$0xff]
      %v245 = vld [vmem:[%s225 + $0xe1] sm:$0xff]
      %v246 = vld [vmem:[%s225 + $0xf1] sm:$0xff]
      %v247 = vld [vmem:[%s225 + $0xf9] sm:$0xff]
      %v248 = vld [vmem:[%s225 + $0x109] sm:$0xff]
      %v249 = vld [vmem:[%s225 + $0x111] sm:$0xff]
      %v250 = vld [vmem:[%s225 + $0x121] sm:$0xff]
      %v251 = vld [vmem:[%s225 + $0x129] sm:$0xff]
      %v252 = vld [vmem:[%s225 + $0x139] sm:$0xff]
      %v253 = vld [vmem:[%s225 + $0x141] sm:$0xff]
      %v254 = vld [vmem:[%s225 + $0x151] sm:$0xff]
      %v255 = vld [vmem:[%s225 + $0x159] sm:$0xff]
      %v256 = vld [vmem:[%s225 + $0x169] sm:$0xff]
      %v257 = vld [vmem:[%s225 + $0x171] sm:$0xff]
      %v258 = vld [vmem:[%s1] sm:$0xff]
      %v259 = vld [vmem:[%s1 + $0x8] sm:$0xff]
      %v260 = vld [vmem:[%s2] sm:$0x1]
      %v262 = vlaneseq
      %v263 = vshrl.u32 %v262, 7
      %v264 = vsub.s32 0, %v263
      %v265 = vrot.slane %v260, %v264
      %vm267 = vcmask 130048
      %v269 = vsel %vm267, %v226, 0
      %v272 = vsel %vm267, %v227, 0
      %v275 = vsel %vm267, %v228, 0
      %v278 = vsel %vm267, %v229, 0
      %v281 = vsel %vm267, %v230, 0
      %v284 = vsel %vm267, %v231, 0
      %v287 = vsel %vm267, %v232, 0
      %v290 = vsel %vm267, %v233, 0
      %v293 = vsel %vm267, %v234, 0
      %v296 = vsel %vm267, %v235, 0
      %v299 = vsel %vm267, %v236, 0
      %v302 = vsel %vm267, %v237, 0
      %v305 = vsel %vm267, %v238, 0
      %v308 = vsel %vm267, %v239, 0
      %v311 = vsel %vm267, %v240, 0
      %v314 = vsel %vm267, %v241, 0
      %v317 = vsel %vm267, %v242, 0
      %v320 = vsel %vm267, %v243, 0
      %v323 = vsel %vm267, %v244, 0
      %v326 = vsel %vm267, %v245, 0
      %v329 = vsel %vm267, %v246, 0
      %v332 = vsel %vm267, %v247, 0
      %v335 = vsel %vm267, %v248, 0
      %v338 = vsel %vm267, %v249, 0
      %v341 = vsel %vm267, %v250, 0
      %v344 = vsel %vm267, %v251, 0
      %v347 = vsel %vm267, %v252, 0
      %v350 = vsel %vm267, %v253, 0
      %v353 = vsel %vm267, %v254, 0
      %v356 = vsel %vm267, %v255, 0
      %v359 = vsel %vm267, %v256, 0
      %v362 = vsel %vm267, %v257, 0
      %364 = vmatprep.subr.mxu0 0.0
      %365 = vmatpush1.msra.mxu0 0.0
      %366 = vmatprep.subr.mxu0 0.0
      %367 = vmatpush1.msra.mxu0 0.0
      %368 = vmatprep.subr.mxu0 0.0
      %369 = vmatpush1.msra.mxu0 0.0
      %370 = vmatprep.subr.mxu0 0.0
      %371 = vmatpush1.msra.mxu0 0.0
      %372 = vmatprep.subr.mxu0 0.0
      %373 = vmatpush1.msra.mxu0 0.0
      %374 = vmatprep.subr.mxu0 0.0
      %375 = vmatpush1.msra.mxu0 0.0
      %376 = vmatprep.subr.mxu0 0.0
      %377 = vmatpush1.msra.mxu0 0.0
      %378 = vmatprep.subr.mxu0 0.0
      %379 = vmatpush1.msra.mxu0 0.0
      %380 = vmatprep.subr.mxu0 0.0
      %381 = vmatpush1.msra.mxu0 0.0
      %382 = vmatprep.subr.mxu0 0.0
      %383 = vmatpush1.msra.mxu0 0.0
      %384 = vmatprep.subr.mxu0 0.0
      %385 = vmatpush1.msra.mxu0 0.0
      %386 = vmatprep.subr.mxu0 0.0
      %387 = vmatpush1.msra.mxu0 0.0
      %388 = vmatprep.subr.mxu0 0.0
      %389 = vmatpush1.msra.mxu0 0.0
      %390 = vmatprep.subr.mxu0 0.0
      %391 = vmatpush1.msra.mxu0 0.0
      %392 = vmatprep.subr.mxu0 0.0
      %393 = vmatpush1.msra.mxu0 %v259
      %394 = vmatprep.subr.mxu0 0.0
      %395 = vmatpush1.msra.mxu0 %v258
      %396 = vmatprep.subr.mxu0 0.0
      %397 = vmatpush2.msra.mxu0 0.0
      %398 = vmatprep.subr.mxu0 0.0
      %399 = vmatpush2.msra.mxu0 0.0
      %400 = vmatprep.subr.mxu0 0.0
      %401 = vmatpush2.msra.mxu0 0.0
      %402 = vmatprep.subr.mxu0 0.0
      %403 = vmatpush2.msra.mxu0 0.0
      %404 = vmatprep.subr.mxu0 0.0
      %405 = vmatpush2.msra.mxu0 0.0
      %406 = vmatprep.subr.mxu0 0.0
      %407 = vmatpush2.msra.mxu0 0.0
      %408 = vmatprep.subr.mxu0 0.0
      %409 = vmatpush2.msra.mxu0 0.0
      %410 = vmatprep.subr.mxu0 0.0
      %411 = vmatpush2.msra.mxu0 0.0
      %412 = vmatprep.subr.mxu0 0.0
      %413 = vmatpush2.msra.mxu0 0.0
      %414 = vmatprep.subr.mxu0 0.0
      %415 = vmatpush2.msra.mxu0 0.0
      %416 = vmatprep.subr.mxu0 0.0
      %417 = vmatpush2.msra.mxu0 0.0
      %418 = vmatprep.subr.mxu0 0.0
      %419 = vmatpush2.msra.mxu0 0.0
      %420 = vmatprep.subr.mxu0 0.0
      %421 = vmatpush2.msra.mxu0 0.0
      %422 = vmatprep.subr.mxu0 0.0
      %423 = vmatpush2.msra.mxu0 0.0
      %424 = vmatprep.subr.mxu0 0.0
      %425 = vmatpush2.msra.mxu0 0.0
      %426 = vmatprep.subr.mxu0 0.0
      %427 = vmatpush2.msra.mxu0 0.0
      %428 = vmatprep.mubr.f32.mxu0 0.0
      %429 = vmatmul.mubr.f32.gmra.mxu0 %v269
      %v430 = vpop.f32.mrf.mxu0
      %v431 = vadd.f32 %v265, %v430
      %v432 = vpop.f32.mrf.mxu0
      %433 = vmatprep.mubr.f32.mxu0 0.0
      %434 = vmatmul.mubr.f32.gmra.mxu0 %v272
      %v435 = vpop.f32.mrf.mxu0
      %v436 = vadd.f32 %v265, %v435
      %v437 = vpop.f32.mrf.mxu0
      %438 = vmatprep.mubr.f32.mxu0 0.0
      %439 = vmatmul.mubr.f32.gmra.mxu0 %v275
      %v440 = vpop.f32.mrf.mxu0
      %v441 = vadd.f32 %v265, %v440
      %v442 = vpop.f32.mrf.mxu0
      %443 = vmatprep.mubr.f32.mxu0 0.0
      %444 = vmatmul.mubr.f32.gmra.mxu0 %v278
      %v445 = vpop.f32.mrf.mxu0
      %v446 = vadd.f32 %v265, %v445
      %v447 = vpop.f32.mrf.mxu0
      %448 = vmatprep.mubr.f32.mxu0 0.0
      %449 = vmatmul.mubr.f32.gmra.mxu0 %v281
      %v450 = vpop.f32.mrf.mxu0
      %v451 = vadd.f32 %v265, %v450
      %v452 = vpop.f32.mrf.mxu0
      %453 = vmatprep.mubr.f32.mxu0 0.0
      %454 = vmatmul.mubr.f32.gmra.mxu0 %v284
      %v455 = vpop.f32.mrf.mxu0
      %v456 = vadd.f32 %v265, %v455
      %v457 = vpop.f32.mrf.mxu0
      %458 = vmatprep.mubr.f32.mxu0 0.0
      %459 = vmatmul.mubr.f32.gmra.mxu0 %v287
      %v460 = vpop.f32.mrf.mxu0
      %v461 = vadd.f32 %v265, %v460
      %v462 = vpop.f32.mrf.mxu0
      %463 = vmatprep.mubr.f32.mxu0 0.0
      %464 = vmatmul.mubr.f32.gmra.mxu0 %v290
      %v465 = vpop.f32.mrf.mxu0
      %v466 = vadd.f32 %v265, %v465
      %v467 = vpop.f32.mrf.mxu0
      %468 = vmatprep.mubr.f32.mxu0 0.0
      %469 = vmatmul.mubr.f32.gmra.mxu0 %v293
      %v470 = vpop.f32.mrf.mxu0
      %v471 = vadd.f32 %v265, %v470
      %v472 = vpop.f32.mrf.mxu0
      %473 = vmatprep.mubr.f32.mxu0 0.0
      %474 = vmatmul.mubr.f32.gmra.mxu0 %v296
      %v475 = vpop.f32.mrf.mxu0
      %v476 = vadd.f32 %v265, %v475
      %v477 = vpop.f32.mrf.mxu0
      %478 = vmatprep.mubr.f32.mxu0 0.0
      %479 = vmatmul.mubr.f32.gmra.mxu0 %v299
      %v480 = vpop.f32.mrf.mxu0
      %v481 = vadd.f32 %v265, %v480
      %v482 = vpop.f32.mrf.mxu0
      %483 = vmatprep.mubr.f32.mxu0 0.0
      %484 = vmatmul.mubr.f32.gmra.mxu0 %v302
      %v485 = vpop.f32.mrf.mxu0
      %v486 = vadd.f32 %v265, %v485
      %v487 = vpop.f32.mrf.mxu0
      %488 = vmatprep.mubr.f32.mxu0 0.0
      %489 = vmatmul.mubr.f32.gmra.mxu0 %v305
      %v490 = vpop.f32.mrf.mxu0
      %v491 = vadd.f32 %v265, %v490
      %v492 = vpop.f32.mrf.mxu0
      %493 = vmatprep.mubr.f32.mxu0 0.0
      %494 = vmatmul.mubr.f32.gmra.mxu0 %v308
      %v495 = vpop.f32.mrf.mxu0
      %v496 = vadd.f32 %v265, %v495
      %v497 = vpop.f32.mrf.mxu0
      %498 = vmatprep.mubr.f32.mxu0 0.0
      %499 = vmatmul.mubr.f32.gmra.mxu0 %v311
      %v500 = vpop.f32.mrf.mxu0
      %v501 = vadd.f32 %v265, %v500
      %v502 = vpop.f32.mrf.mxu0
      %503 = vmatprep.mubr.f32.mxu0 0.0
      %504 = vmatmul.mubr.f32.gmra.mxu0 %v314
      %v505 = vpop.f32.mrf.mxu0
      %v506 = vadd.f32 %v265, %v505
      %v507 = vpop.f32.mrf.mxu0
      %508 = vmatprep.mubr.f32.mxu0 0.0
      %509 = vmatmul.mubr.f32.gmra.mxu0 %v317
      %v510 = vpop.f32.mrf.mxu0
      %v511 = vadd.f32 %v265, %v510
      %v512 = vpop.f32.mrf.mxu0
      %513 = vmatprep.mubr.f32.mxu0 0.0
      %514 = vmatmul.mubr.f32.gmra.mxu0 %v320
      %v515 = vpop.f32.mrf.mxu0
      %v516 = vadd.f32 %v265, %v515
      %v517 = vpop.f32.mrf.mxu0
      %518 = vmatprep.mubr.f32.mxu0 0.0
      %519 = vmatmul.mubr.f32.gmra.mxu0 %v323
      %v520 = vpop.f32.mrf.mxu0
      %v521 = vadd.f32 %v265, %v520
      %v522 = vpop.f32.mrf.mxu0
      %523 = vmatprep.mubr.f32.mxu0 0.0
      %524 = vmatmul.mubr.f32.gmra.mxu0 %v326
      %v525 = vpop.f32.mrf.mxu0
      %v526 = vadd.f32 %v265, %v525
      %v527 = vpop.f32.mrf.mxu0
      %528 = vmatprep.mubr.f32.mxu0 0.0
      %529 = vmatmul.mubr.f32.gmra.mxu0 %v329
      %v530 = vpop.f32.mrf.mxu0
      %v531 = vadd.f32 %v265, %v530
      %v532 = vpop.f32.mrf.mxu0
      %533 = vmatprep.mubr.f32.mxu0 0.0
      %534 = vmatmul.mubr.f32.gmra.mxu0 %v332
      %v535 = vpop.f32.mrf.mxu0
      %v536 = vadd.f32 %v265, %v535
      %v537 = vpop.f32.mrf.mxu0
      %538 = vmatprep.mubr.f32.mxu0 0.0
      %539 = vmatmul.mubr.f32.gmra.mxu0 %v335
      %v540 = vpop.f32.mrf.mxu0
      %v541 = vadd.f32 %v265, %v540
      %v542 = vpop.f32.mrf.mxu0
      %543 = vmatprep.mubr.f32.mxu0 0.0
      %544 = vmatmul.mubr.f32.gmra.mxu0 %v338
      %v545 = vpop.f32.mrf.mxu0
      %v546 = vadd.f32 %v265, %v545
      %v547 = vpop.f32.mrf.mxu0
      %548 = vmatprep.mubr.f32.mxu0 0.0
      %549 = vmatmul.mubr.f32.gmra.mxu0 %v341
      %v550 = vpop.f32.mrf.mxu0
      %v551 = vadd.f32 %v265, %v550
      %v552 = vpop.f32.mrf.mxu0
      %553 = vmatprep.mubr.f32.mxu0 0.0
      %554 = vmatmul.mubr.f32.gmra.mxu0 %v344
      %v555 = vpop.f32.mrf.mxu0
      %v556 = vadd.f32 %v265, %v555
      %v557 = vpop.f32.mrf.mxu0
      %558 = vmatprep.mubr.f32.mxu0 0.0
      %559 = vmatmul.mubr.f32.gmra.mxu0 %v347
      %v560 = vpop.f32.mrf.mxu0
      %v561 = vadd.f32 %v265, %v560
      %v562 = vpop.f32.mrf.mxu0
      %563 = vmatprep.mubr.f32.mxu0 0.0
      %564 = vmatmul.mubr.f32.gmra.mxu0 %v350
      %v565 = vpop.f32.mrf.mxu0
      %v566 = vadd.f32 %v265, %v565
      %v567 = vpop.f32.mrf.mxu0
      %568 = vmatprep.mubr.f32.mxu0 0.0
      %569 = vmatmul.mubr.f32.gmra.mxu0 %v353
      %v570 = vpop.f32.mrf.mxu0
      %v571 = vadd.f32 %v265, %v570
      %v572 = vpop.f32.mrf.mxu0
      %573 = vmatprep.mubr.f32.mxu0 0.0
      %574 = vmatmul.mubr.f32.gmra.mxu0 %v356
      %v575 = vpop.f32.mrf.mxu0
      %v576 = vadd.f32 %v265, %v575
      %v577 = vpop.f32.mrf.mxu0
      %578 = vmatprep.mubr.f32.mxu0 0.0
      %579 = vmatmul.mubr.f32.gmra.mxu0 %v359
      %v580 = vpop.f32.mrf.mxu0
      %v581 = vadd.f32 %v265, %v580
      %v582 = vpop.f32.mrf.mxu0
      %583 = vmatprep.mubr.f32.mxu0 0.0
      %584 = vmatmul.mubr.f32.gmra.mxu0 %v362
      %v585 = vpop.f32.mrf.mxu0
      %v586 = vadd.f32 %v265, %v585
      %v587 = vpop.f32.mrf.mxu0
      %588 = vdwg.mxu0
      %v589 = vld [vmem:[%s3] sm:$0xff]
      %v590 = vld [vmem:[%s4] sm:$0x1]
      %v592 = vlaneseq
      %v593 = vshrl.u32 %v592, 7
      %v594 = vsub.s32 0, %v593
      %v595 = vrot.slane %v590, %v594
      %vm597 = vcmask 64512
      %v599 = vsel %vm597, %v431, 0
      %v602 = vsel %vm597, %v436, 0
      %v605 = vsel %vm597, %v441, 0
      %v608 = vsel %vm597, %v446, 0
      %v611 = vsel %vm597, %v451, 0
      %v614 = vsel %vm597, %v456, 0
      %v617 = vsel %vm597, %v461, 0
      %v620 = vsel %vm597, %v466, 0
      %v623 = vsel %vm597, %v471, 0
      %v626 = vsel %vm597, %v476, 0
      %v629 = vsel %vm597, %v481, 0
      %v632 = vsel %vm597, %v486, 0
      %v635 = vsel %vm597, %v491, 0
      %v638 = vsel %vm597, %v496, 0
      %v641 = vsel %vm597, %v501, 0
      %v644 = vsel %vm597, %v506, 0
      %v647 = vsel %vm597, %v511, 0
      %v650 = vsel %vm597, %v516, 0
      %v653 = vsel %vm597, %v521, 0
      %v656 = vsel %vm597, %v526, 0
      %v659 = vsel %vm597, %v531, 0
      %v662 = vsel %vm597, %v536, 0
      %v665 = vsel %vm597, %v541, 0
      %v668 = vsel %vm597, %v546, 0
      %v671 = vsel %vm597, %v551, 0
      %v674 = vsel %vm597, %v556, 0
      %v677 = vsel %vm597, %v561, 0
      %v680 = vsel %vm597, %v566, 0
      %v683 = vsel %vm597, %v571, 0
      %v686 = vsel %vm597, %v576, 0
      %v689 = vsel %vm597, %v581, 0
      %v692 = vsel %vm597, %v586, 0
      %694 = vmatprep.subr.mxu0 0.0
      %695 = vmatpush1.msra.mxu0 0.0
      %696 = vmatprep.subr.mxu0 0.0
      %697 = vmatpush1.msra.mxu0 0.0
      %698 = vmatprep.subr.mxu0 0.0
      %699 = vmatpush1.msra.mxu0 0.0
      %700 = vmatprep.subr.mxu0 0.0
      %701 = vmatpush1.msra.mxu0 0.0
      %702 = vmatprep.subr.mxu0 0.0
      %703 = vmatpush1.msra.mxu0 0.0
      %704 = vmatprep.subr.mxu0 0.0
      %705 = vmatpush1.msra.mxu0 0.0
      %706 = vmatprep.subr.mxu0 0.0
      %707 = vmatpush1.msra.mxu0 0.0
      %708 = vmatprep.subr.mxu0 0.0
      %709 = vmatpush1.msra.mxu0 0.0
      %710 = vmatprep.subr.mxu0 0.0
      %711 = vmatpush1.msra.mxu0 0.0
      %712 = vmatprep.subr.mxu0 0.0
      %713 = vmatpush1.msra.mxu0 0.0
      %714 = vmatprep.subr.mxu0 0.0
      %715 = vmatpush1.msra.mxu0 0.0
      %716 = vmatprep.subr.mxu0 0.0
      %717 = vmatpush1.msra.mxu0 0.0
      %718 = vmatprep.subr.mxu0 0.0
      %719 = vmatpush1.msra.mxu0 0.0
      %720 = vmatprep.subr.mxu0 0.0
      %721 = vmatpush1.msra.mxu0 0.0
      %722 = vmatprep.subr.mxu0 0.0
      %723 = vmatpush1.msra.mxu0 0.0
      %724 = vmatprep.subr.mxu0 0.0
      %725 = vmatpush1.msra.mxu0 %v589
      %726 = vmatprep.subr.mxu0 0.0
      %727 = vmatpush2.msra.mxu0 0.0
      %728 = vmatprep.subr.mxu0 0.0
      %729 = vmatpush2.msra.mxu0 0.0
      %730 = vmatprep.subr.mxu0 0.0
      %731 = vmatpush2.msra.mxu0 0.0
      %732 = vmatprep.subr.mxu0 0.0
      %733 = vmatpush2.msra.mxu0 0.0
      %734 = vmatprep.subr.mxu0 0.0
      %735 = vmatpush2.msra.mxu0 0.0
      %736 = vmatprep.subr.mxu0 0.0
      %737 = vmatpush2.msra.mxu0 0.0
      %738 = vmatprep.subr.mxu0 0.0
      %739 = vmatpush2.msra.mxu0 0.0
      %740 = vmatprep.subr.mxu0 0.0
      %741 = vmatpush2.msra.mxu0 0.0
      %742 = vmatprep.subr.mxu0 0.0
      %743 = vmatpush2.msra.mxu0 0.0
      %744 = vmatprep.subr.mxu0 0.0
      %745 = vmatpush2.msra.mxu0 0.0
      %746 = vmatprep.subr.mxu0 0.0
      %747 = vmatpush2.msra.mxu0 0.0
      %748 = vmatprep.subr.mxu0 0.0
      %749 = vmatpush2.msra.mxu0 0.0
      %750 = vmatprep.subr.mxu0 0.0
      %751 = vmatpush2.msra.mxu0 0.0
      %752 = vmatprep.subr.mxu0 0.0
      %753 = vmatpush2.msra.mxu0 0.0
      %754 = vmatprep.subr.mxu0 0.0
      %755 = vmatpush2.msra.mxu0 0.0
      %756 = vmatprep.subr.mxu0 0.0
      %757 = vmatpush2.msra.mxu0 0.0
      %758 = vmatprep.mubr.f32.mxu0 0.0
      %759 = vmatmul.mubr.f32.gmra.mxu0 %v599
      %v760 = vpop.f32.mrf.mxu0
      %v761 = vadd.f32 %v595, %v760
      %v762 = vpop.f32.mrf.mxu0
      %763 = vmatprep.mubr.f32.mxu0 0.0
      %764 = vmatmul.mubr.f32.gmra.mxu0 %v602
      %v765 = vpop.f32.mrf.mxu0
      %v766 = vadd.f32 %v595, %v765
      %v767 = vpop.f32.mrf.mxu0
      %768 = vmatprep.mubr.f32.mxu0 0.0
      %769 = vmatmul.mubr.f32.gmra.mxu0 %v605
      %v770 = vpop.f32.mrf.mxu0
      %v771 = vadd.f32 %v595, %v770
      %v772 = vpop.f32.mrf.mxu0
      %773 = vmatprep.mubr.f32.mxu0 0.0
      %774 = vmatmul.mubr.f32.gmra.mxu0 %v608
      %v775 = vpop.f32.mrf.mxu0
      %v776 = vadd.f32 %v595, %v775
      %v777 = vpop.f32.mrf.mxu0
      %778 = vmatprep.mubr.f32.mxu0 0.0
      %779 = vmatmul.mubr.f32.gmra.mxu0 %v611
      %v780 = vpop.f32.mrf.mxu0
      %v781 = vadd.f32 %v595, %v780
      %v782 = vpop.f32.mrf.mxu0
      %783 = vmatprep.mubr.f32.mxu0 0.0
      %784 = vmatmul.mubr.f32.gmra.mxu0 %v614
      %v785 = vpop.f32.mrf.mxu0
      %v786 = vadd.f32 %v595, %v785
      %v787 = vpop.f32.mrf.mxu0
      %788 = vmatprep.mubr.f32.mxu0 0.0
      %789 = vmatmul.mubr.f32.gmra.mxu0 %v617
      %v790 = vpop.f32.mrf.mxu0
      %v791 = vadd.f32 %v595, %v790
      %v792 = vpop.f32.mrf.mxu0
      %793 = vmatprep.mubr.f32.mxu0 0.0
      %794 = vmatmul.mubr.f32.gmra.mxu0 %v620
      %v795 = vpop.f32.mrf.mxu0
      %v796 = vadd.f32 %v595, %v795
      %v797 = vpop.f32.mrf.mxu0
      %798 = vmatprep.mubr.f32.mxu0 0.0
      %799 = vmatmul.mubr.f32.gmra.mxu0 %v623
      %v800 = vpop.f32.mrf.mxu0
      %v801 = vadd.f32 %v595, %v800
      %v802 = vpop.f32.mrf.mxu0
      %803 = vmatprep.mubr.f32.mxu0 0.0
      %804 = vmatmul.mubr.f32.gmra.mxu0 %v626
      %v805 = vpop.f32.mrf.mxu0
      %v806 = vadd.f32 %v595, %v805
      %v807 = vpop.f32.mrf.mxu0
      %808 = vmatprep.mubr.f32.mxu0 0.0
      %809 = vmatmul.mubr.f32.gmra.mxu0 %v629
      %v810 = vpop.f32.mrf.mxu0
      %v811 = vadd.f32 %v595, %v810
      %v812 = vpop.f32.mrf.mxu0
      %813 = vmatprep.mubr.f32.mxu0 0.0
      %814 = vmatmul.mubr.f32.gmra.mxu0 %v632
      %v815 = vpop.f32.mrf.mxu0
      %v816 = vadd.f32 %v595, %v815
      %v817 = vpop.f32.mrf.mxu0
      %818 = vmatprep.mubr.f32.mxu0 0.0
      %819 = vmatmul.mubr.f32.gmra.mxu0 %v635
      %v820 = vpop.f32.mrf.mxu0
      %v821 = vadd.f32 %v595, %v820
      %v822 = vpop.f32.mrf.mxu0
      %823 = vmatprep.mubr.f32.mxu0 0.0
      %824 = vmatmul.mubr.f32.gmra.mxu0 %v638
      %v825 = vpop.f32.mrf.mxu0
      %v826 = vadd.f32 %v595, %v825
      %v827 = vpop.f32.mrf.mxu0
      %828 = vmatprep.mubr.f32.mxu0 0.0
      %829 = vmatmul.mubr.f32.gmra.mxu0 %v641
      %v830 = vpop.f32.mrf.mxu0
      %v831 = vadd.f32 %v595, %v830
      %v832 = vpop.f32.mrf.mxu0
      %833 = vmatprep.mubr.f32.mxu0 0.0
      %834 = vmatmul.mubr.f32.gmra.mxu0 %v644
      %v835 = vpop.f32.mrf.mxu0
      %v836 = vadd.f32 %v595, %v835
      %v837 = vpop.f32.mrf.mxu0
      %838 = vmatprep.mubr.f32.mxu0 0.0
      %839 = vmatmul.mubr.f32.gmra.mxu0 %v647
      %v840 = vpop.f32.mrf.mxu0
      %v841 = vadd.f32 %v595, %v840
      %v842 = vpop.f32.mrf.mxu0
      %843 = vmatprep.mubr.f32.mxu0 0.0
      %844 = vmatmul.mubr.f32.gmra.mxu0 %v650
      %v845 = vpop.f32.mrf.mxu0
      %v846 = vadd.f32 %v595, %v845
      %v847 = vpop.f32.mrf.mxu0
      %848 = vmatprep.mubr.f32.mxu0 0.0
      %849 = vmatmul.mubr.f32.gmra.mxu0 %v653
      %v850 = vpop.f32.mrf.mxu0
      %v851 = vadd.f32 %v595, %v850
      %v852 = vpop.f32.mrf.mxu0
      %853 = vmatprep.mubr.f32.mxu0 0.0
      %854 = vmatmul.mubr.f32.gmra.mxu0 %v656
      %v855 = vpop.f32.mrf.mxu0
      %v856 = vadd.f32 %v595, %v855
      %v857 = vpop.f32.mrf.mxu0
      %858 = vmatprep.mubr.f32.mxu0 0.0
      %859 = vmatmul.mubr.f32.gmra.mxu0 %v659
      %v860 = vpop.f32.mrf.mxu0
      %v861 = vadd.f32 %v595, %v860
      %v862 = vpop.f32.mrf.mxu0
      %863 = vmatprep.mubr.f32.mxu0 0.0
      %864 = vmatmul.mubr.f32.gmra.mxu0 %v662
      %v865 = vpop.f32.mrf.mxu0
      %v866 = vadd.f32 %v595, %v865
      %v867 = vpop.f32.mrf.mxu0
      %868 = vmatprep.mubr.f32.mxu0 0.0
      %869 = vmatmul.mubr.f32.gmra.mxu0 %v665
      %v870 = vpop.f32.mrf.mxu0
      %v871 = vadd.f32 %v595, %v870
      %v872 = vpop.f32.mrf.mxu0
      %873 = vmatprep.mubr.f32.mxu0 0.0
      %874 = vmatmul.mubr.f32.gmra.mxu0 %v668
      %v875 = vpop.f32.mrf.mxu0
      %v876 = vadd.f32 %v595, %v875
      %v877 = vpop.f32.mrf.mxu0
      %878 = vmatprep.mubr.f32.mxu0 0.0
      %879 = vmatmul.mubr.f32.gmra.mxu0 %v671
      %v880 = vpop.f32.mrf.mxu0
      %v881 = vadd.f32 %v595, %v880
      %v882 = vpop.f32.mrf.mxu0
      %883 = vmatprep.mubr.f32.mxu0 0.0
      %884 = vmatmul.mubr.f32.gmra.mxu0 %v674
      %v885 = vpop.f32.mrf.mxu0
      %v886 = vadd.f32 %v595, %v885
      %v887 = vpop.f32.mrf.mxu0
      %888 = vmatprep.mubr.f32.mxu0 0.0
      %889 = vmatmul.mubr.f32.gmra.mxu0 %v677
      %v890 = vpop.f32.mrf.mxu0
      %v891 = vadd.f32 %v595, %v890
      %v892 = vpop.f32.mrf.mxu0
      %893 = vmatprep.mubr.f32.mxu0 0.0
      %894 = vmatmul.mubr.f32.gmra.mxu0 %v680
      %v895 = vpop.f32.mrf.mxu0
      %v896 = vadd.f32 %v595, %v895
      %v897 = vpop.f32.mrf.mxu0
      %898 = vmatprep.mubr.f32.mxu0 0.0
      %899 = vmatmul.mubr.f32.gmra.mxu0 %v683
      %v900 = vpop.f32.mrf.mxu0
      %v901 = vadd.f32 %v595, %v900
      %v902 = vpop.f32.mrf.mxu0
      %903 = vmatprep.mubr.f32.mxu0 0.0
      %904 = vmatmul.mubr.f32.gmra.mxu0 %v686
      %v905 = vpop.f32.mrf.mxu0
      %v906 = vadd.f32 %v595, %v905
      %v907 = vpop.f32.mrf.mxu0
      %908 = vmatprep.mubr.f32.mxu0 0.0
      %909 = vmatmul.mubr.f32.gmra.mxu0 %v689
      %v910 = vpop.f32.mrf.mxu0
      %v911 = vadd.f32 %v595, %v910
      %v912 = vpop.f32.mrf.mxu0
      %913 = vmatprep.mubr.f32.mxu0 0.0
      %914 = vmatmul.mubr.f32.gmra.mxu0 %v692
      %v915 = vpop.f32.mrf.mxu0
      %v916 = vadd.f32 %v595, %v915
      %v917 = vpop.f32.mrf.mxu0
      %918 = vdwg.mxu0
      %v919 = vld [vmem:[%s219] sm:$0xff]
      %v920 = vld [vmem:[%s219 + $0x8] sm:$0xff]
      %v921 = vld [vmem:[%s219 + $0x18] sm:$0xff]
      %v922 = vld [vmem:[%s219 + $0x20] sm:$0xff]
      %v923 = vld [vmem:[%s219 + $0x30] sm:$0xff]
      %v924 = vld [vmem:[%s219 + $0x38] sm:$0xff]
      %v925 = vld [vmem:[%s219 + $0x48] sm:$0xff]
      %v926 = vld [vmem:[%s219 + $0x50] sm:$0xff]
      %v927 = vld [vmem:[%s219 + $0x60] sm:$0xff]
      %v928 = vld [vmem:[%s219 + $0x68] sm:$0xff]
      %v929 = vld [vmem:[%s219 + $0x78] sm:$0xff]
      %v930 = vld [vmem:[%s219 + $0x80] sm:$0xff]
      %v931 = vld [vmem:[%s219 + $0x90] sm:$0xff]
      %v932 = vld [vmem:[%s219 + $0x98] sm:$0xff]
      %v933 = vld [vmem:[%s219 + $0xa8] sm:$0xff]
      %v934 = vld [vmem:[%s219 + $0xb0] sm:$0xff]
      %v935 = vld [vmem:[%s219 + $0xc0] sm:$0xff]
      %v936 = vld [vmem:[%s219 + $0xc8] sm:$0xff]
      %v937 = vld [vmem:[%s219 + $0xd8] sm:$0xff]
      %v938 = vld [vmem:[%s219 + $0xe0] sm:$0xff]
      %v939 = vld [vmem:[%s219 + $0xf0] sm:$0xff]
      %v940 = vld [vmem:[%s219 + $0xf8] sm:$0xff]
      %v941 = vld [vmem:[%s219 + $0x108] sm:$0xff]
      %v942 = vld [vmem:[%s219 + $0x110] sm:$0xff]
      %v943 = vld [vmem:[%s219 + $0x120] sm:$0xff]
      %v944 = vld [vmem:[%s219 + $0x128] sm:$0xff]
      %v945 = vld [vmem:[%s219 + $0x138] sm:$0xff]
      %v946 = vld [vmem:[%s219 + $0x140] sm:$0xff]
      %v947 = vld [vmem:[%s219 + $0x150] sm:$0xff]
      %v948 = vld [vmem:[%s219 + $0x158] sm:$0xff]
      %v949 = vld [vmem:[%s219 + $0x168] sm:$0xff]
      %v950 = vld [vmem:[%s219 + $0x170] sm:$0xff]
      %v951 = vmul.f32 %v761, %v919
      %v952 = vmul.f32 %v766, %v920
      %v953 = vmul.f32 %v771, %v921
      %v954 = vmul.f32 %v776, %v922
      %v955 = vmul.f32 %v781, %v923
      %v956 = vmul.f32 %v786, %v924
      %v957 = vmul.f32 %v791, %v925
      %v958 = vmul.f32 %v796, %v926
      %v959 = vmul.f32 %v801, %v927
      %v960 = vmul.f32 %v806, %v928
      %v961 = vmul.f32 %v811, %v929
      %v962 = vmul.f32 %v816, %v930
      %v963 = vmul.f32 %v821, %v931
      %v964 = vmul.f32 %v826, %v932
      %v965 = vmul.f32 %v831, %v933
      %v966 = vmul.f32 %v836, %v934
      %v967 = vmul.f32 %v841, %v935
      %v968 = vmul.f32 %v846, %v936
      %v969 = vmul.f32 %v851, %v937
      %v970 = vmul.f32 %v856, %v938
      %v971 = vmul.f32 %v861, %v939
      %v972 = vmul.f32 %v866, %v940
      %v973 = vmul.f32 %v871, %v941
      %v974 = vmul.f32 %v876, %v942
      %v975 = vmul.f32 %v881, %v943
      %v976 = vmul.f32 %v886, %v944
      %v977 = vmul.f32 %v891, %v945
      %v978 = vmul.f32 %v896, %v946
      %v979 = vmul.f32 %v901, %v947
      %v980 = vmul.f32 %v906, %v948
      %v981 = vmul.f32 %v911, %v949
      %v982 = vmul.f32 %v916, %v950
      %v983 = vadd.f32 %v951, 0.0
      %v984 = vadd.f32 %v952, 0.0
      %v985 = vadd.f32 %v953, 0.0
      %v986 = vadd.f32 %v954, 0.0
      %v987 = vadd.f32 %v955, 0.0
      %v988 = vadd.f32 %v956, 0.0
      %v989 = vadd.f32 %v957, 0.0
      %v990 = vadd.f32 %v958, 0.0
      %v991 = vadd.f32 %v959, 0.0
      %v992 = vadd.f32 %v960, 0.0
      %v993 = vadd.f32 %v961, 0.0
      %v994 = vadd.f32 %v962, 0.0
      %v995 = vadd.f32 %v963, 0.0
      %v996 = vadd.f32 %v964, 0.0
      %v997 = vadd.f32 %v965, 0.0
      %v998 = vadd.f32 %v966, 0.0
      %v999 = vadd.f32 %v967, 0.0
      %v1000 = vadd.f32 %v968, 0.0
      %v1001 = vadd.f32 %v969, 0.0
      %v1002 = vadd.f32 %v970, 0.0
      %v1003 = vadd.f32 %v971, 0.0
      %v1004 = vadd.f32 %v972, 0.0
      %v1005 = vadd.f32 %v973, 0.0
      %v1006 = vadd.f32 %v974, 0.0
      %v1007 = vadd.f32 %v975, 0.0
      %v1008 = vadd.f32 %v976, 0.0
      %v1009 = vadd.f32 %v977, 0.0
      %v1010 = vadd.f32 %v978, 0.0
      %v1011 = vadd.f32 %v979, 0.0
      %v1012 = vadd.f32 %v980, 0.0
      %v1013 = vadd.f32 %v981, 0.0
      %v1014 = vadd.f32 %v982, 0.0
      %s1015 = scalar_lea.vmem %s3, 8
      %v1016 = vld [vmem:[%s1015] sm:$0xff]
      %s1017 = scalar_lea.vmem %s4, 1
      %v1018 = vld [vmem:[%s1017] sm:$0x1]
      %v1020 = vlaneseq
      %v1021 = vshrl.u32 %v1020, 7
      %v1022 = vsub.s32 0, %v1021
      %v1023 = vrot.slane %v1018, %v1022
      %1025 = vmatprep.subr.mxu0 0.0
      %1026 = vmatpush1.msra.mxu0 0.0
      %1027 = vmatprep.subr.mxu0 0.0
      %1028 = vmatpush1.msra.mxu0 0.0
      %1029 = vmatprep.subr.mxu0 0.0
      %1030 = vmatpush1.msra.mxu0 0.0
      %1031 = vmatprep.subr.mxu0 0.0
      %1032 = vmatpush1.msra.mxu0 0.0
      %1033 = vmatprep.subr.mxu0 0.0
      %1034 = vmatpush1.msra.mxu0 0.0
      %1035 = vmatprep.subr.mxu0 0.0
      %1036 = vmatpush1.msra.mxu0 0.0
      %1037 = vmatprep.subr.mxu0 0.0
      %1038 = vmatpush1.msra.mxu0 0.0
      %1039 = vmatprep.subr.mxu0 0.0
      %1040 = vmatpush1.msra.mxu0 0.0
      %1041 = vmatprep.subr.mxu0 0.0
      %1042 = vmatpush1.msra.mxu0 0.0
      %1043 = vmatprep.subr.mxu0 0.0
      %1044 = vmatpush1.msra.mxu0 0.0
      %1045 = vmatprep.subr.mxu0 0.0
      %1046 = vmatpush1.msra.mxu0 0.0
      %1047 = vmatprep.subr.mxu0 0.0
      %1048 = vmatpush1.msra.mxu0 0.0
      %1049 = vmatprep.subr.mxu0 0.0
      %1050 = vmatpush1.msra.mxu0 0.0
      %1051 = vmatprep.subr.mxu0 0.0
      %1052 = vmatpush1.msra.mxu0 0.0
      %1053 = vmatprep.subr.mxu0 0.0
      %1054 = vmatpush1.msra.mxu0 0.0
      %1055 = vmatprep.subr.mxu0 0.0
      %1056 = vmatpush1.msra.mxu0 %v1016
      %1057 = vmatprep.subr.mxu0 0.0
      %1058 = vmatpush2.msra.mxu0 0.0
      %1059 = vmatprep.subr.mxu0 0.0
      %1060 = vmatpush2.msra.mxu0 0.0
      %1061 = vmatprep.subr.mxu0 0.0
      %1062 = vmatpush2.msra.mxu0 0.0
      %1063 = vmatprep.subr.mxu0 0.0
      %1064 = vmatpush2.msra.mxu0 0.0
      %1065 = vmatprep.subr.mxu0 0.0
      %1066 = vmatpush2.msra.mxu0 0.0
      %1067 = vmatprep.subr.mxu0 0.0
      %1068 = vmatpush2.msra.mxu0 0.0
      %1069 = vmatprep.subr.mxu0 0.0
      %1070 = vmatpush2.msra.mxu0 0.0
      %1071 = vmatprep.subr.mxu0 0.0
      %1072 = vmatpush2.msra.mxu0 0.0
      %1073 = vmatprep.subr.mxu0 0.0
      %1074 = vmatpush2.msra.mxu0 0.0
      %1075 = vmatprep.subr.mxu0 0.0
      %1076 = vmatpush2.msra.mxu0 0.0
      %1077 = vmatprep.subr.mxu0 0.0
      %1078 = vmatpush2.msra.mxu0 0.0
      %1079 = vmatprep.subr.mxu0 0.0
      %1080 = vmatpush2.msra.mxu0 0.0
      %1081 = vmatprep.subr.mxu0 0.0
      %1082 = vmatpush2.msra.mxu0 0.0
      %1083 = vmatprep.subr.mxu0 0.0
      %1084 = vmatpush2.msra.mxu0 0.0
      %1085 = vmatprep.subr.mxu0 0.0
      %1086 = vmatpush2.msra.mxu0 0.0
      %1087 = vmatprep.subr.mxu0 0.0
      %1088 = vmatpush2.msra.mxu0 0.0
      %1089 = vmatprep.mubr.f32.mxu0 0.0
      %1090 = vmatmul.mubr.f32.gmra.mxu0 %v599
      %v1091 = vpop.f32.mrf.mxu0
      %v1092 = vadd.f32 %v1023, %v1091
      %v1093 = vpop.f32.mrf.mxu0
      %1094 = vmatprep.mubr.f32.mxu0 0.0
      %1095 = vmatmul.mubr.f32.gmra.mxu0 %v602
      %v1096 = vpop.f32.mrf.mxu0
      %v1097 = vadd.f32 %v1023, %v1096
      %v1098 = vpop.f32.mrf.mxu0
      %1099 = vmatprep.mubr.f32.mxu0 0.0
      %1100 = vmatmul.mubr.f32.gmra.mxu0 %v605
      %v1101 = vpop.f32.mrf.mxu0
      %v1102 = vadd.f32 %v1023, %v1101
      %v1103 = vpop.f32.mrf.mxu0
      %1104 = vmatprep.mubr.f32.mxu0 0.0
      %1105 = vmatmul.mubr.f32.gmra.mxu0 %v608
      %v1106 = vpop.f32.mrf.mxu0
      %v1107 = vadd.f32 %v1023, %v1106
      %v1108 = vpop.f32.mrf.mxu0
      %1109 = vmatprep.mubr.f32.mxu0 0.0
      %1110 = vmatmul.mubr.f32.gmra.mxu0 %v611
      %v1111 = vpop.f32.mrf.mxu0
      %v1112 = vadd.f32 %v1023, %v1111
      %v1113 = vpop.f32.mrf.mxu0
      %1114 = vmatprep.mubr.f32.mxu0 0.0
      %1115 = vmatmul.mubr.f32.gmra.mxu0 %v614
      %v1116 = vpop.f32.mrf.mxu0
      %v1117 = vadd.f32 %v1023, %v1116
      %v1118 = vpop.f32.mrf.mxu0
      %1119 = vmatprep.mubr.f32.mxu0 0.0
      %1120 = vmatmul.mubr.f32.gmra.mxu0 %v617
      %v1121 = vpop.f32.mrf.mxu0
      %v1122 = vadd.f32 %v1023, %v1121
      %v1123 = vpop.f32.mrf.mxu0
      %1124 = vmatprep.mubr.f32.mxu0 0.0
      %1125 = vmatmul.mubr.f32.gmra.mxu0 %v620
      %v1126 = vpop.f32.mrf.mxu0
      %v1127 = vadd.f32 %v1023, %v1126
      %v1128 = vpop.f32.mrf.mxu0
      %1129 = vmatprep.mubr.f32.mxu0 0.0
      %1130 = vmatmul.mubr.f32.gmra.mxu0 %v623
      %v1131 = vpop.f32.mrf.mxu0
      %v1132 = vadd.f32 %v1023, %v1131
      %v1133 = vpop.f32.mrf.mxu0
      %1134 = vmatprep.mubr.f32.mxu0 0.0
      %1135 = vmatmul.mubr.f32.gmra.mxu0 %v626
      %v1136 = vpop.f32.mrf.mxu0
      %v1137 = vadd.f32 %v1023, %v1136
      %v1138 = vpop.f32.mrf.mxu0
      %1139 = vmatprep.mubr.f32.mxu0 0.0
      %1140 = vmatmul.mubr.f32.gmra.mxu0 %v629
      %v1141 = vpop.f32.mrf.mxu0
      %v1142 = vadd.f32 %v1023, %v1141
      %v1143 = vpop.f32.mrf.mxu0
      %1144 = vmatprep.mubr.f32.mxu0 0.0
      %1145 = vmatmul.mubr.f32.gmra.mxu0 %v632
      %v1146 = vpop.f32.mrf.mxu0
      %v1147 = vadd.f32 %v1023, %v1146
      %v1148 = vpop.f32.mrf.mxu0
      %1149 = vmatprep.mubr.f32.mxu0 0.0
      %1150 = vmatmul.mubr.f32.gmra.mxu0 %v635
      %v1151 = vpop.f32.mrf.mxu0
      %v1152 = vadd.f32 %v1023, %v1151
      %v1153 = vpop.f32.mrf.mxu0
      %1154 = vmatprep.mubr.f32.mxu0 0.0
      %1155 = vmatmul.mubr.f32.gmra.mxu0 %v638
      %v1156 = vpop.f32.mrf.mxu0
      %v1157 = vadd.f32 %v1023, %v1156
      %v1158 = vpop.f32.mrf.mxu0
      %1159 = vmatprep.mubr.f32.mxu0 0.0
      %1160 = vmatmul.mubr.f32.gmra.mxu0 %v641
      %v1161 = vpop.f32.mrf.mxu0
      %v1162 = vadd.f32 %v1023, %v1161
      %v1163 = vpop.f32.mrf.mxu0
      %1164 = vmatprep.mubr.f32.mxu0 0.0
      %1165 = vmatmul.mubr.f32.gmra.mxu0 %v644
      %v1166 = vpop.f32.mrf.mxu0
      %v1167 = vadd.f32 %v1023, %v1166
      %v1168 = vpop.f32.mrf.mxu0
      %1169 = vmatprep.mubr.f32.mxu0 0.0
      %1170 = vmatmul.mubr.f32.gmra.mxu0 %v647
      %v1171 = vpop.f32.mrf.mxu0
      %v1172 = vadd.f32 %v1023, %v1171
      %v1173 = vpop.f32.mrf.mxu0
      %1174 = vmatprep.mubr.f32.mxu0 0.0
      %1175 = vmatmul.mubr.f32.gmra.mxu0 %v650
      %v1176 = vpop.f32.mrf.mxu0
      %v1177 = vadd.f32 %v1023, %v1176
      %v1178 = vpop.f32.mrf.mxu0
      %1179 = vmatprep.mubr.f32.mxu0 0.0
      %1180 = vmatmul.mubr.f32.gmra.mxu0 %v653
      %v1181 = vpop.f32.mrf.mxu0
      %v1182 = vadd.f32 %v1023, %v1181
      %v1183 = vpop.f32.mrf.mxu0
      %1184 = vmatprep.mubr.f32.mxu0 0.0
      %1185 = vmatmul.mubr.f32.gmra.mxu0 %v656
      %v1186 = vpop.f32.mrf.mxu0
      %v1187 = vadd.f32 %v1023, %v1186
      %v1188 = vpop.f32.mrf.mxu0
      %1189 = vmatprep.mubr.f32.mxu0 0.0
      %1190 = vmatmul.mubr.f32.gmra.mxu0 %v659
      %v1191 = vpop.f32.mrf.mxu0
      %v1192 = vadd.f32 %v1023, %v1191
      %v1193 = vpop.f32.mrf.mxu0
      %1194 = vmatprep.mubr.f32.mxu0 0.0
      %1195 = vmatmul.mubr.f32.gmra.mxu0 %v662
      %v1196 = vpop.f32.mrf.mxu0
      %v1197 = vadd.f32 %v1023, %v1196
      %v1198 = vpop.f32.mrf.mxu0
      %1199 = vmatprep.mubr.f32.mxu0 0.0
      %1200 = vmatmul.mubr.f32.gmra.mxu0 %v665
      %v1201 = vpop.f32.mrf.mxu0
      %v1202 = vadd.f32 %v1023, %v1201
      %v1203 = vpop.f32.mrf.mxu0
      %1204 = vmatprep.mubr.f32.mxu0 0.0
      %1205 = vmatmul.mubr.f32.gmra.mxu0 %v668
      %v1206 = vpop.f32.mrf.mxu0
      %v1207 = vadd.f32 %v1023, %v1206
      %v1208 = vpop.f32.mrf.mxu0
      %1209 = vmatprep.mubr.f32.mxu0 0.0
      %1210 = vmatmul.mubr.f32.gmra.mxu0 %v671
      %v1211 = vpop.f32.mrf.mxu0
      %v1212 = vadd.f32 %v1023, %v1211
      %v1213 = vpop.f32.mrf.mxu0
      %1214 = vmatprep.mubr.f32.mxu0 0.0
      %1215 = vmatmul.mubr.f32.gmra.mxu0 %v674
      %v1216 = vpop.f32.mrf.mxu0
      %v1217 = vadd.f32 %v1023, %v1216
      %v1218 = vpop.f32.mrf.mxu0
      %1219 = vmatprep.mubr.f32.mxu0 0.0
      %1220 = vmatmul.mubr.f32.gmra.mxu0 %v677
      %v1221 = vpop.f32.mrf.mxu0
      %v1222 = vadd.f32 %v1023, %v1221
      %v1223 = vpop.f32.mrf.mxu0
      %1224 = vmatprep.mubr.f32.mxu0 0.0
      %1225 = vmatmul.mubr.f32.gmra.mxu0 %v680
      %v1226 = vpop.f32.mrf.mxu0
      %v1227 = vadd.f32 %v1023, %v1226
      %v1228 = vpop.f32.mrf.mxu0
      %1229 = vmatprep.mubr.f32.mxu0 0.0
      %1230 = vmatmul.mubr.f32.gmra.mxu0 %v683
      %v1231 = vpop.f32.mrf.mxu0
      %v1232 = vadd.f32 %v1023, %v1231
      %v1233 = vpop.f32.mrf.mxu0
      %1234 = vmatprep.mubr.f32.mxu0 0.0
      %1235 = vmatmul.mubr.f32.gmra.mxu0 %v686
      %v1236 = vpop.f32.mrf.mxu0
      %v1237 = vadd.f32 %v1023, %v1236
      %v1238 = vpop.f32.mrf.mxu0
      %1239 = vmatprep.mubr.f32.mxu0 0.0
      %1240 = vmatmul.mubr.f32.gmra.mxu0 %v689
      %v1241 = vpop.f32.mrf.mxu0
      %v1242 = vadd.f32 %v1023, %v1241
      %v1243 = vpop.f32.mrf.mxu0
      %1244 = vmatprep.mubr.f32.mxu0 0.0
      %1245 = vmatmul.mubr.f32.gmra.mxu0 %v692
      %v1246 = vpop.f32.mrf.mxu0
      %v1247 = vadd.f32 %v1023, %v1246
      %v1248 = vpop.f32.mrf.mxu0
      %1249 = vdwg.mxu0
      %v1250 = vld [vmem:[%s219 + $0x1] sm:$0xff]
      %v1251 = vld [vmem:[%s219 + $0x9] sm:$0xff]
      %v1252 = vld [vmem:[%s219 + $0x19] sm:$0xff]
      %v1253 = vld [vmem:[%s219 + $0x21] sm:$0xff]
      %v1254 = vld [vmem:[%s219 + $0x31] sm:$0xff]
      %v1255 = vld [vmem:[%s219 + $0x39] sm:$0xff]
      %v1256 = vld [vmem:[%s219 + $0x49] sm:$0xff]
      %v1257 = vld [vmem:[%s219 + $0x51] sm:$0xff]
      %v1258 = vld [vmem:[%s219 + $0x61] sm:$0xff]
      %v1259 = vld [vmem:[%s219 + $0x69] sm:$0xff]
      %v1260 = vld [vmem:[%s219 + $0x79] sm:$0xff]
      %v1261 = vld [vmem:[%s219 + $0x81] sm:$0xff]
      %v1262 = vld [vmem:[%s219 + $0x91] sm:$0xff]
      %v1263 = vld [vmem:[%s219 + $0x99] sm:$0xff]
      %v1264 = vld [vmem:[%s219 + $0xa9] sm:$0xff]
      %v1265 = vld [vmem:[%s219 + $0xb1] sm:$0xff]
      %v1266 = vld [vmem:[%s219 + $0xc1] sm:$0xff]
      %v1267 = vld [vmem:[%s219 + $0xc9] sm:$0xff]
      %v1268 = vld [vmem:[%s219 + $0xd9] sm:$0xff]
      %v1269 = vld [vmem:[%s219 + $0xe1] sm:$0xff]
      %v1270 = vld [vmem:[%s219 + $0xf1] sm:$0xff]
      %v1271 = vld [vmem:[%s219 + $0xf9] sm:$0xff]
      %v1272 = vld [vmem:[%s219 + $0x109] sm:$0xff]
      %v1273 = vld [vmem:[%s219 + $0x111] sm:$0xff]
      %v1274 = vld [vmem:[%s219 + $0x121] sm:$0xff]
      %v1275 = vld [vmem:[%s219 + $0x129] sm:$0xff]
      %v1276 = vld [vmem:[%s219 + $0x139] sm:$0xff]
      %v1277 = vld [vmem:[%s219 + $0x141] sm:$0xff]
      %v1278 = vld [vmem:[%s219 + $0x151] sm:$0xff]
      %v1279 = vld [vmem:[%s219 + $0x159] sm:$0xff]
      %v1280 = vld [vmem:[%s219 + $0x169] sm:$0xff]
      %v1281 = vld [vmem:[%s219 + $0x171] sm:$0xff]
      %v1282 = vmul.f32 %v1092, %v1250
      %v1283 = vmul.f32 %v1097, %v1251
      %v1284 = vmul.f32 %v1102, %v1252
      %v1285 = vmul.f32 %v1107, %v1253
      %v1286 = vmul.f32 %v1112, %v1254
      %v1287 = vmul.f32 %v1117, %v1255
      %v1288 = vmul.f32 %v1122, %v1256
      %v1289 = vmul.f32 %v1127, %v1257
      %v1290 = vmul.f32 %v1132, %v1258
      %v1291 = vmul.f32 %v1137, %v1259
      %v1292 = vmul.f32 %v1142, %v1260
      %v1293 = vmul.f32 %v1147, %v1261
      %v1294 = vmul.f32 %v1152, %v1262
      %v1295 = vmul.f32 %v1157, %v1263
      %v1296 = vmul.f32 %v1162, %v1264
      %v1297 = vmul.f32 %v1167, %v1265
      %v1298 = vmul.f32 %v1172, %v1266
      %v1299 = vmul.f32 %v1177, %v1267
      %v1300 = vmul.f32 %v1182, %v1268
      %v1301 = vmul.f32 %v1187, %v1269
      %v1302 = vmul.f32 %v1192, %v1270
      %v1303 = vmul.f32 %v1197, %v1271
      %v1304 = vmul.f32 %v1202, %v1272
      %v1305 = vmul.f32 %v1207, %v1273
      %v1306 = vmul.f32 %v1212, %v1274
      %v1307 = vmul.f32 %v1217, %v1275
      %v1308 = vmul.f32 %v1222, %v1276
      %v1309 = vmul.f32 %v1227, %v1277
      %v1310 = vmul.f32 %v1232, %v1278
      %v1311 = vmul.f32 %v1237, %v1279
      %v1312 = vmul.f32 %v1242, %v1280
      %v1313 = vmul.f32 %v1247, %v1281
      %v1314 = vadd.f32 %v983, %v1282
      %v1315 = vadd.f32 %v984, %v1283
      %v1316 = vadd.f32 %v985, %v1284
      %v1317 = vadd.f32 %v986, %v1285
      %v1318 = vadd.f32 %v987, %v1286
      %v1319 = vadd.f32 %v988, %v1287
      %v1320 = vadd.f32 %v989, %v1288
      %v1321 = vadd.f32 %v990, %v1289
      %v1322 = vadd.f32 %v991, %v1290
      %v1323 = vadd.f32 %v992, %v1291
      %v1324 = vadd.f32 %v993, %v1292
      %v1325 = vadd.f32 %v994, %v1293
      %v1326 = vadd.f32 %v995, %v1294
      %v1327 = vadd.f32 %v996, %v1295
      %v1328 = vadd.f32 %v997, %v1296
      %v1329 = vadd.f32 %v998, %v1297
      %v1330 = vadd.f32 %v999, %v1298
      %v1331 = vadd.f32 %v1000, %v1299
      %v1332 = vadd.f32 %v1001, %v1300
      %v1333 = vadd.f32 %v1002, %v1301
      %v1334 = vadd.f32 %v1003, %v1302
      %v1335 = vadd.f32 %v1004, %v1303
      %v1336 = vadd.f32 %v1005, %v1304
      %v1337 = vadd.f32 %v1006, %v1305
      %v1338 = vadd.f32 %v1007, %v1306
      %v1339 = vadd.f32 %v1008, %v1307
      %v1340 = vadd.f32 %v1009, %v1308
      %v1341 = vadd.f32 %v1010, %v1309
      %v1342 = vadd.f32 %v1011, %v1310
      %v1343 = vadd.f32 %v1012, %v1311
      %v1344 = vadd.f32 %v1013, %v1312
      %v1345 = vadd.f32 %v1014, %v1313
      %s1346 = scalar_lea.vmem %s3, 16
      %v1347 = vld [vmem:[%s1346] sm:$0xff]
      %s1348 = scalar_lea.vmem %s4, 2
      %v1349 = vld [vmem:[%s1348] sm:$0x1]
      %v1351 = vlaneseq
      %v1352 = vshrl.u32 %v1351, 7
      %v1353 = vsub.s32 0, %v1352
      %v1354 = vrot.slane %v1349, %v1353
      %1356 = vmatprep.subr.mxu0 0.0
      %1357 = vmatpush1.msra.mxu0 0.0
      %1358 = vmatprep.subr.mxu0 0.0
      %1359 = vmatpush1.msra.mxu0 0.0
      %1360 = vmatprep.subr.mxu0 0.0
      %1361 = vmatpush1.msra.mxu0 0.0
      %1362 = vmatprep.subr.mxu0 0.0
      %1363 = vmatpush1.msra.mxu0 0.0
      %1364 = vmatprep.subr.mxu0 0.0
      %1365 = vmatpush1.msra.mxu0 0.0
      %1366 = vmatprep.subr.mxu0 0.0
      %1367 = vmatpush1.msra.mxu0 0.0
      %1368 = vmatprep.subr.mxu0 0.0
      %1369 = vmatpush1.msra.mxu0 0.0
      %1370 = vmatprep.subr.mxu0 0.0
      %1371 = vmatpush1.msra.mxu0 0.0
      %1372 = vmatprep.subr.mxu0 0.0
      %1373 = vmatpush1.msra.mxu0 0.0
      %1374 = vmatprep.subr.mxu0 0.0
      %1375 = vmatpush1.msra.mxu0 0.0
      %1376 = vmatprep.subr.mxu0 0.0
      %1377 = vmatpush1.msra.mxu0 0.0
      %1378 = vmatprep.subr.mxu0 0.0
      %1379 = vmatpush1.msra.mxu0 0.0
      %1380 = vmatprep.subr.mxu0 0.0
      %1381 = vmatpush1.msra.mxu0 0.0
      %1382 = vmatprep.subr.mxu0 0.0
      %1383 = vmatpush1.msra.mxu0 0.0
      %1384 = vmatprep.subr.mxu0 0.0
      %1385 = vmatpush1.msra.mxu0 0.0
      %1386 = vmatprep.subr.mxu0 0.0
      %1387 = vmatpush1.msra.mxu0 %v1347
      %1388 = vmatprep.subr.mxu0 0.0
      %1389 = vmatpush2.msra.mxu0 0.0
      %1390 = vmatprep.subr.mxu0 0.0
      %1391 = vmatpush2.msra.mxu0 0.0
      %1392 = vmatprep.subr.mxu0 0.0
      %1393 = vmatpush2.msra.mxu0 0.0
      %1394 = vmatprep.subr.mxu0 0.0
      %1395 = vmatpush2.msra.mxu0 0.0
      %1396 = vmatprep.subr.mxu0 0.0
      %1397 = vmatpush2.msra.mxu0 0.0
      %1398 = vmatprep.subr.mxu0 0.0
      %1399 = vmatpush2.msra.mxu0 0.0
      %1400 = vmatprep.subr.mxu0 0.0
      %1401 = vmatpush2.msra.mxu0 0.0
      %1402 = vmatprep.subr.mxu0 0.0
      %1403 = vmatpush2.msra.mxu0 0.0
      %1404 = vmatprep.subr.mxu0 0.0
      %1405 = vmatpush2.msra.mxu0 0.0
      %1406 = vmatprep.subr.mxu0 0.0
      %1407 = vmatpush2.msra.mxu0 0.0
      %1408 = vmatprep.subr.mxu0 0.0
      %1409 = vmatpush2.msra.mxu0 0.0
      %1410 = vmatprep.subr.mxu0 0.0
      %1411 = vmatpush2.msra.mxu0 0.0
      %1412 = vmatprep.subr.mxu0 0.0
      %1413 = vmatpush2.msra.mxu0 0.0
      %1414 = vmatprep.subr.mxu0 0.0
      %1415 = vmatpush2.msra.mxu0 0.0
      %1416 = vmatprep.subr.mxu0 0.0
      %1417 = vmatpush2.msra.mxu0 0.0
      %1418 = vmatprep.subr.mxu0 0.0
      %1419 = vmatpush2.msra.mxu0 0.0
      %1420 = vmatprep.mubr.f32.mxu0 0.0
      %1421 = vmatmul.mubr.f32.gmra.mxu0 %v599
      %v1422 = vpop.f32.mrf.mxu0
      %v1423 = vadd.f32 %v1354, %v1422
      %v1424 = vpop.f32.mrf.mxu0
      %1425 = vmatprep.mubr.f32.mxu0 0.0
      %1426 = vmatmul.mubr.f32.gmra.mxu0 %v602
      %v1427 = vpop.f32.mrf.mxu0
      %v1428 = vadd.f32 %v1354, %v1427
      %v1429 = vpop.f32.mrf.mxu0
      %1430 = vmatprep.mubr.f32.mxu0 0.0
      %1431 = vmatmul.mubr.f32.gmra.mxu0 %v605
      %v1432 = vpop.f32.mrf.mxu0
      %v1433 = vadd.f32 %v1354, %v1432
      %v1434 = vpop.f32.mrf.mxu0
      %1435 = vmatprep.mubr.f32.mxu0 0.0
      %1436 = vmatmul.mubr.f32.gmra.mxu0 %v608
      %v1437 = vpop.f32.mrf.mxu0
      %v1438 = vadd.f32 %v1354, %v1437
      %v1439 = vpop.f32.mrf.mxu0
      %1440 = vmatprep.mubr.f32.mxu0 0.0
      %1441 = vmatmul.mubr.f32.gmra.mxu0 %v611
      %v1442 = vpop.f32.mrf.mxu0
      %v1443 = vadd.f32 %v1354, %v1442
      %v1444 = vpop.f32.mrf.mxu0
      %1445 = vmatprep.mubr.f32.mxu0 0.0
      %1446 = vmatmul.mubr.f32.gmra.mxu0 %v614
      %v1447 = vpop.f32.mrf.mxu0
      %v1448 = vadd.f32 %v1354, %v1447
      %v1449 = vpop.f32.mrf.mxu0
      %1450 = vmatprep.mubr.f32.mxu0 0.0
      %1451 = vmatmul.mubr.f32.gmra.mxu0 %v617
      %v1452 = vpop.f32.mrf.mxu0
      %v1453 = vadd.f32 %v1354, %v1452
      %v1454 = vpop.f32.mrf.mxu0
      %1455 = vmatprep.mubr.f32.mxu0 0.0
      %1456 = vmatmul.mubr.f32.gmra.mxu0 %v620
      %v1457 = vpop.f32.mrf.mxu0
      %v1458 = vadd.f32 %v1354, %v1457
      %v1459 = vpop.f32.mrf.mxu0
      %1460 = vmatprep.mubr.f32.mxu0 0.0
      %1461 = vmatmul.mubr.f32.gmra.mxu0 %v623
      %v1462 = vpop.f32.mrf.mxu0
      %v1463 = vadd.f32 %v1354, %v1462
      %v1464 = vpop.f32.mrf.mxu0
      %1465 = vmatprep.mubr.f32.mxu0 0.0
      %1466 = vmatmul.mubr.f32.gmra.mxu0 %v626
      %v1467 = vpop.f32.mrf.mxu0
      %v1468 = vadd.f32 %v1354, %v1467
      %v1469 = vpop.f32.mrf.mxu0
      %1470 = vmatprep.mubr.f32.mxu0 0.0
      %1471 = vmatmul.mubr.f32.gmra.mxu0 %v629
      %v1472 = vpop.f32.mrf.mxu0
      %v1473 = vadd.f32 %v1354, %v1472
      %v1474 = vpop.f32.mrf.mxu0
      %1475 = vmatprep.mubr.f32.mxu0 0.0
      %1476 = vmatmul.mubr.f32.gmra.mxu0 %v632
      %v1477 = vpop.f32.mrf.mxu0
      %v1478 = vadd.f32 %v1354, %v1477
      %v1479 = vpop.f32.mrf.mxu0
      %1480 = vmatprep.mubr.f32.mxu0 0.0
      %1481 = vmatmul.mubr.f32.gmra.mxu0 %v635
      %v1482 = vpop.f32.mrf.mxu0
      %v1483 = vadd.f32 %v1354, %v1482
      %v1484 = vpop.f32.mrf.mxu0
      %1485 = vmatprep.mubr.f32.mxu0 0.0
      %1486 = vmatmul.mubr.f32.gmra.mxu0 %v638
      %v1487 = vpop.f32.mrf.mxu0
      %v1488 = vadd.f32 %v1354, %v1487
      %v1489 = vpop.f32.mrf.mxu0
      %1490 = vmatprep.mubr.f32.mxu0 0.0
      %1491 = vmatmul.mubr.f32.gmra.mxu0 %v641
      %v1492 = vpop.f32.mrf.mxu0
      %v1493 = vadd.f32 %v1354, %v1492
      %v1494 = vpop.f32.mrf.mxu0
      %1495 = vmatprep.mubr.f32.mxu0 0.0
      %1496 = vmatmul.mubr.f32.gmra.mxu0 %v644
      %v1497 = vpop.f32.mrf.mxu0
      %v1498 = vadd.f32 %v1354, %v1497
      %v1499 = vpop.f32.mrf.mxu0
      %1500 = vmatprep.mubr.f32.mxu0 0.0
      %1501 = vmatmul.mubr.f32.gmra.mxu0 %v647
      %v1502 = vpop.f32.mrf.mxu0
      %v1503 = vadd.f32 %v1354, %v1502
      %v1504 = vpop.f32.mrf.mxu0
      %1505 = vmatprep.mubr.f32.mxu0 0.0
      %1506 = vmatmul.mubr.f32.gmra.mxu0 %v650
      %v1507 = vpop.f32.mrf.mxu0
      %v1508 = vadd.f32 %v1354, %v1507
      %v1509 = vpop.f32.mrf.mxu0
      %1510 = vmatprep.mubr.f32.mxu0 0.0
      %1511 = vmatmul.mubr.f32.gmra.mxu0 %v653
      %v1512 = vpop.f32.mrf.mxu0
      %v1513 = vadd.f32 %v1354, %v1512
      %v1514 = vpop.f32.mrf.mxu0
      %1515 = vmatprep.mubr.f32.mxu0 0.0
      %1516 = vmatmul.mubr.f32.gmra.mxu0 %v656
      %v1517 = vpop.f32.mrf.mxu0
      %v1518 = vadd.f32 %v1354, %v1517
      %v1519 = vpop.f32.mrf.mxu0
      %1520 = vmatprep.mubr.f32.mxu0 0.0
      %1521 = vmatmul.mubr.f32.gmra.mxu0 %v659
      %v1522 = vpop.f32.mrf.mxu0
      %v1523 = vadd.f32 %v1354, %v1522
      %v1524 = vpop.f32.mrf.mxu0
      %1525 = vmatprep.mubr.f32.mxu0 0.0
      %1526 = vmatmul.mubr.f32.gmra.mxu0 %v662
      %v1527 = vpop.f32.mrf.mxu0
      %v1528 = vadd.f32 %v1354, %v1527
      %v1529 = vpop.f32.mrf.mxu0
      %1530 = vmatprep.mubr.f32.mxu0 0.0
      %1531 = vmatmul.mubr.f32.gmra.mxu0 %v665
      %v1532 = vpop.f32.mrf.mxu0
      %v1533 = vadd.f32 %v1354, %v1532
      %v1534 = vpop.f32.mrf.mxu0
      %1535 = vmatprep.mubr.f32.mxu0 0.0
      %1536 = vmatmul.mubr.f32.gmra.mxu0 %v668
      %v1537 = vpop.f32.mrf.mxu0
      %v1538 = vadd.f32 %v1354, %v1537
      %v1539 = vpop.f32.mrf.mxu0
      %1540 = vmatprep.mubr.f32.mxu0 0.0
      %1541 = vmatmul.mubr.f32.gmra.mxu0 %v671
      %v1542 = vpop.f32.mrf.mxu0
      %v1543 = vadd.f32 %v1354, %v1542
      %v1544 = vpop.f32.mrf.mxu0
      %1545 = vmatprep.mubr.f32.mxu0 0.0
      %1546 = vmatmul.mubr.f32.gmra.mxu0 %v674
      %v1547 = vpop.f32.mrf.mxu0
      %v1548 = vadd.f32 %v1354, %v1547
      %v1549 = vpop.f32.mrf.mxu0
      %1550 = vmatprep.mubr.f32.mxu0 0.0
      %1551 = vmatmul.mubr.f32.gmra.mxu0 %v677
      %v1552 = vpop.f32.mrf.mxu0
      %v1553 = vadd.f32 %v1354, %v1552
      %v1554 = vpop.f32.mrf.mxu0
      %1555 = vmatprep.mubr.f32.mxu0 0.0
      %1556 = vmatmul.mubr.f32.gmra.mxu0 %v680
      %v1557 = vpop.f32.mrf.mxu0
      %v1558 = vadd.f32 %v1354, %v1557
      %v1559 = vpop.f32.mrf.mxu0
      %1560 = vmatprep.mubr.f32.mxu0 0.0
      %1561 = vmatmul.mubr.f32.gmra.mxu0 %v683
      %v1562 = vpop.f32.mrf.mxu0
      %v1563 = vadd.f32 %v1354, %v1562
      %v1564 = vpop.f32.mrf.mxu0
      %1565 = vmatprep.mubr.f32.mxu0 0.0
      %1566 = vmatmul.mubr.f32.gmra.mxu0 %v686
      %v1567 = vpop.f32.mrf.mxu0
      %v1568 = vadd.f32 %v1354, %v1567
      %v1569 = vpop.f32.mrf.mxu0
      %1570 = vmatprep.mubr.f32.mxu0 0.0
      %1571 = vmatmul.mubr.f32.gmra.mxu0 %v689
      %v1572 = vpop.f32.mrf.mxu0
      %v1573 = vadd.f32 %v1354, %v1572
      %v1574 = vpop.f32.mrf.mxu0
      %1575 = vmatprep.mubr.f32.mxu0 0.0
      %1576 = vmatmul.mubr.f32.gmra.mxu0 %v692
      %v1577 = vpop.f32.mrf.mxu0
      %v1578 = vadd.f32 %v1354, %v1577
      %v1579 = vpop.f32.mrf.mxu0
      %1580 = vdwg.mxu0
      %v1581 = vld [vmem:[%s219 + $0x2] sm:$0xff]
      %v1582 = vld [vmem:[%s219 + $0xa] sm:$0xff]
      %v1583 = vld [vmem:[%s219 + $0x1a] sm:$0xff]
      %v1584 = vld [vmem:[%s219 + $0x22] sm:$0xff]
      %v1585 = vld [vmem:[%s219 + $0x32] sm:$0xff]
      %v1586 = vld [vmem:[%s219 + $0x3a] sm:$0xff]
      %v1587 = vld [vmem:[%s219 + $0x4a] sm:$0xff]
      %v1588 = vld [vmem:[%s219 + $0x52] sm:$0xff]
      %v1589 = vld [vmem:[%s219 + $0x62] sm:$0xff]
      %v1590 = vld [vmem:[%s219 + $0x6a] sm:$0xff]
      %v1591 = vld [vmem:[%s219 + $0x7a] sm:$0xff]
      %v1592 = vld [vmem:[%s219 + $0x82] sm:$0xff]
      %v1593 = vld [vmem:[%s219 + $0x92] sm:$0xff]
      %v1594 = vld [vmem:[%s219 + $0x9a] sm:$0xff]
      %v1595 = vld [vmem:[%s219 + $0xaa] sm:$0xff]
      %v1596 = vld [vmem:[%s219 + $0xb2] sm:$0xff]
      %v1597 = vld [vmem:[%s219 + $0xc2] sm:$0xff]
      %v1598 = vld [vmem:[%s219 + $0xca] sm:$0xff]
      %v1599 = vld [vmem:[%s219 + $0xda] sm:$0xff]
      %v1600 = vld [vmem:[%s219 + $0xe2] sm:$0xff]
      %v1601 = vld [vmem:[%s219 + $0xf2] sm:$0xff]
      %v1602 = vld [vmem:[%s219 + $0xfa] sm:$0xff]
      %v1603 = vld [vmem:[%s219 + $0x10a] sm:$0xff]
      %v1604 = vld [vmem:[%s219 + $0x112] sm:$0xff]
      %v1605 = vld [vmem:[%s219 + $0x122] sm:$0xff]
      %v1606 = vld [vmem:[%s219 + $0x12a] sm:$0xff]
      %v1607 = vld [vmem:[%s219 + $0x13a] sm:$0xff]
      %v1608 = vld [vmem:[%s219 + $0x142] sm:$0xff]
      %v1609 = vld [vmem:[%s219 + $0x152] sm:$0xff]
      %v1610 = vld [vmem:[%s219 + $0x15a] sm:$0xff]
      %v1611 = vld [vmem:[%s219 + $0x16a] sm:$0xff]
      %v1612 = vld [vmem:[%s219 + $0x172] sm:$0xff]
      %v1613 = vmul.f32 %v1423, %v1581
      %v1614 = vmul.f32 %v1428, %v1582
      %v1615 = vmul.f32 %v1433, %v1583
      %v1616 = vmul.f32 %v1438, %v1584
      %v1617 = vmul.f32 %v1443, %v1585
      %v1618 = vmul.f32 %v1448, %v1586
      %v1619 = vmul.f32 %v1453, %v1587
      %v1620 = vmul.f32 %v1458, %v1588
      %v1621 = vmul.f32 %v1463, %v1589
      %v1622 = vmul.f32 %v1468, %v1590
      %v1623 = vmul.f32 %v1473, %v1591
      %v1624 = vmul.f32 %v1478, %v1592
      %v1625 = vmul.f32 %v1483, %v1593
      %v1626 = vmul.f32 %v1488, %v1594
      %v1627 = vmul.f32 %v1493, %v1595
      %v1628 = vmul.f32 %v1498, %v1596
      %v1629 = vmul.f32 %v1503, %v1597
      %v1630 = vmul.f32 %v1508, %v1598
      %v1631 = vmul.f32 %v1513, %v1599
      %v1632 = vmul.f32 %v1518, %v1600
      %v1633 = vmul.f32 %v1523, %v1601
      %v1634 = vmul.f32 %v1528, %v1602
      %v1635 = vmul.f32 %v1533, %v1603
      %v1636 = vmul.f32 %v1538, %v1604
      %v1637 = vmul.f32 %v1543, %v1605
      %v1638 = vmul.f32 %v1548, %v1606
      %v1639 = vmul.f32 %v1553, %v1607
      %v1640 = vmul.f32 %v1558, %v1608
      %v1641 = vmul.f32 %v1563, %v1609
      %v1642 = vmul.f32 %v1568, %v1610
      %v1643 = vmul.f32 %v1573, %v1611
      %v1644 = vmul.f32 %v1578, %v1612
      %v1645 = vadd.f32 %v1314, %v1613
      %v1646 = vadd.f32 %v1315, %v1614
      %v1647 = vadd.f32 %v1316, %v1615
      %v1648 = vadd.f32 %v1317, %v1616
      %v1649 = vadd.f32 %v1318, %v1617
      %v1650 = vadd.f32 %v1319, %v1618
      %v1651 = vadd.f32 %v1320, %v1619
      %v1652 = vadd.f32 %v1321, %v1620
      %v1653 = vadd.f32 %v1322, %v1621
      %v1654 = vadd.f32 %v1323, %v1622
      %v1655 = vadd.f32 %v1324, %v1623
      %v1656 = vadd.f32 %v1325, %v1624
      %v1657 = vadd.f32 %v1326, %v1625
      %v1658 = vadd.f32 %v1327, %v1626
      %v1659 = vadd.f32 %v1328, %v1627
      %v1660 = vadd.f32 %v1329, %v1628
      %v1661 = vadd.f32 %v1330, %v1629
      %v1662 = vadd.f32 %v1331, %v1630
      %v1663 = vadd.f32 %v1332, %v1631
      %v1664 = vadd.f32 %v1333, %v1632
      %v1665 = vadd.f32 %v1334, %v1633
      %v1666 = vadd.f32 %v1335, %v1634
      %v1667 = vadd.f32 %v1336, %v1635
      %v1668 = vadd.f32 %v1337, %v1636
      %v1669 = vadd.f32 %v1338, %v1637
      %v1670 = vadd.f32 %v1339, %v1638
      %v1671 = vadd.f32 %v1340, %v1639
      %v1672 = vadd.f32 %v1341, %v1640
      %v1673 = vadd.f32 %v1342, %v1641
      %v1674 = vadd.f32 %v1343, %v1642
      %v1675 = vadd.f32 %v1344, %v1643
      %v1676 = vadd.f32 %v1345, %v1644
      %s1677 = scalar_lea.vmem %s3, 24
      %v1678 = vld [vmem:[%s1677] sm:$0xff]
      %s1679 = scalar_lea.vmem %s4, 3
      %v1680 = vld [vmem:[%s1679] sm:$0x1]
      %v1682 = vlaneseq
      %v1683 = vshrl.u32 %v1682, 7
      %v1684 = vsub.s32 0, %v1683
      %v1685 = vrot.slane %v1680, %v1684
      %1687 = vmatprep.subr.mxu0 0.0
      %1688 = vmatpush1.msra.mxu0 0.0
      %1689 = vmatprep.subr.mxu0 0.0
      %1690 = vmatpush1.msra.mxu0 0.0
      %1691 = vmatprep.subr.mxu0 0.0
      %1692 = vmatpush1.msra.mxu0 0.0
      %1693 = vmatprep.subr.mxu0 0.0
      %1694 = vmatpush1.msra.mxu0 0.0
      %1695 = vmatprep.subr.mxu0 0.0
      %1696 = vmatpush1.msra.mxu0 0.0
      %1697 = vmatprep.subr.mxu0 0.0
      %1698 = vmatpush1.msra.mxu0 0.0
      %1699 = vmatprep.subr.mxu0 0.0
      %1700 = vmatpush1.msra.mxu0 0.0
      %1701 = vmatprep.subr.mxu0 0.0
      %1702 = vmatpush1.msra.mxu0 0.0
      %1703 = vmatprep.subr.mxu0 0.0
      %1704 = vmatpush1.msra.mxu0 0.0
      %1705 = vmatprep.subr.mxu0 0.0
      %1706 = vmatpush1.msra.mxu0 0.0
      %1707 = vmatprep.subr.mxu0 0.0
      %1708 = vmatpush1.msra.mxu0 0.0
      %1709 = vmatprep.subr.mxu0 0.0
      %1710 = vmatpush1.msra.mxu0 0.0
      %1711 = vmatprep.subr.mxu0 0.0
      %1712 = vmatpush1.msra.mxu0 0.0
      %1713 = vmatprep.subr.mxu0 0.0
      %1714 = vmatpush1.msra.mxu0 0.0
      %1715 = vmatprep.subr.mxu0 0.0
      %1716 = vmatpush1.msra.mxu0 0.0
      %1717 = vmatprep.subr.mxu0 0.0
      %1718 = vmatpush1.msra.mxu0 %v1678
      %1719 = vmatprep.subr.mxu0 0.0
      %1720 = vmatpush2.msra.mxu0 0.0
      %1721 = vmatprep.subr.mxu0 0.0
      %1722 = vmatpush2.msra.mxu0 0.0
      %1723 = vmatprep.subr.mxu0 0.0
      %1724 = vmatpush2.msra.mxu0 0.0
      %1725 = vmatprep.subr.mxu0 0.0
      %1726 = vmatpush2.msra.mxu0 0.0
      %1727 = vmatprep.subr.mxu0 0.0
      %1728 = vmatpush2.msra.mxu0 0.0
      %1729 = vmatprep.subr.mxu0 0.0
      %1730 = vmatpush2.msra.mxu0 0.0
      %1731 = vmatprep.subr.mxu0 0.0
      %1732 = vmatpush2.msra.mxu0 0.0
      %1733 = vmatprep.subr.mxu0 0.0
      %1734 = vmatpush2.msra.mxu0 0.0
      %1735 = vmatprep.subr.mxu0 0.0
      %1736 = vmatpush2.msra.mxu0 0.0
      %1737 = vmatprep.subr.mxu0 0.0
      %1738 = vmatpush2.msra.mxu0 0.0
      %1739 = vmatprep.subr.mxu0 0.0
      %1740 = vmatpush2.msra.mxu0 0.0
      %1741 = vmatprep.subr.mxu0 0.0
      %1742 = vmatpush2.msra.mxu0 0.0
      %1743 = vmatprep.subr.mxu0 0.0
      %1744 = vmatpush2.msra.mxu0 0.0
      %1745 = vmatprep.subr.mxu0 0.0
      %1746 = vmatpush2.msra.mxu0 0.0
      %1747 = vmatprep.subr.mxu0 0.0
      %1748 = vmatpush2.msra.mxu0 0.0
      %1749 = vmatprep.subr.mxu0 0.0
      %1750 = vmatpush2.msra.mxu0 0.0
      %1751 = vmatprep.mubr.f32.mxu0 0.0
      %1752 = vmatmul.mubr.f32.gmra.mxu0 %v599
      %v1753 = vpop.f32.mrf.mxu0
      %v1754 = vadd.f32 %v1685, %v1753
      %v1755 = vpop.f32.mrf.mxu0
      %1756 = vmatprep.mubr.f32.mxu0 0.0
      %1757 = vmatmul.mubr.f32.gmra.mxu0 %v602
      %v1758 = vpop.f32.mrf.mxu0
      %v1759 = vadd.f32 %v1685, %v1758
      %v1760 = vpop.f32.mrf.mxu0
      %1761 = vmatprep.mubr.f32.mxu0 0.0
      %1762 = vmatmul.mubr.f32.gmra.mxu0 %v605
      %v1763 = vpop.f32.mrf.mxu0
      %v1764 = vadd.f32 %v1685, %v1763
      %v1765 = vpop.f32.mrf.mxu0
      %1766 = vmatprep.mubr.f32.mxu0 0.0
      %1767 = vmatmul.mubr.f32.gmra.mxu0 %v608
      %v1768 = vpop.f32.mrf.mxu0
      %v1769 = vadd.f32 %v1685, %v1768
      %v1770 = vpop.f32.mrf.mxu0
      %1771 = vmatprep.mubr.f32.mxu0 0.0
      %1772 = vmatmul.mubr.f32.gmra.mxu0 %v611
      %v1773 = vpop.f32.mrf.mxu0
      %v1774 = vadd.f32 %v1685, %v1773
      %v1775 = vpop.f32.mrf.mxu0
      %1776 = vmatprep.mubr.f32.mxu0 0.0
      %1777 = vmatmul.mubr.f32.gmra.mxu0 %v614
      %v1778 = vpop.f32.mrf.mxu0
      %v1779 = vadd.f32 %v1685, %v1778
      %v1780 = vpop.f32.mrf.mxu0
      %1781 = vmatprep.mubr.f32.mxu0 0.0
      %1782 = vmatmul.mubr.f32.gmra.mxu0 %v617
      %v1783 = vpop.f32.mrf.mxu0
      %v1784 = vadd.f32 %v1685, %v1783
      %v1785 = vpop.f32.mrf.mxu0
      %1786 = vmatprep.mubr.f32.mxu0 0.0
      %1787 = vmatmul.mubr.f32.gmra.mxu0 %v620
      %v1788 = vpop.f32.mrf.mxu0
      %v1789 = vadd.f32 %v1685, %v1788
      %v1790 = vpop.f32.mrf.mxu0
      %1791 = vmatprep.mubr.f32.mxu0 0.0
      %1792 = vmatmul.mubr.f32.gmra.mxu0 %v623
      %v1793 = vpop.f32.mrf.mxu0
      %v1794 = vadd.f32 %v1685, %v1793
      %v1795 = vpop.f32.mrf.mxu0
      %1796 = vmatprep.mubr.f32.mxu0 0.0
      %1797 = vmatmul.mubr.f32.gmra.mxu0 %v626
      %v1798 = vpop.f32.mrf.mxu0
      %v1799 = vadd.f32 %v1685, %v1798
      %v1800 = vpop.f32.mrf.mxu0
      %1801 = vmatprep.mubr.f32.mxu0 0.0
      %1802 = vmatmul.mubr.f32.gmra.mxu0 %v629
      %v1803 = vpop.f32.mrf.mxu0
      %v1804 = vadd.f32 %v1685, %v1803
      %v1805 = vpop.f32.mrf.mxu0
      %1806 = vmatprep.mubr.f32.mxu0 0.0
      %1807 = vmatmul.mubr.f32.gmra.mxu0 %v632
      %v1808 = vpop.f32.mrf.mxu0
      %v1809 = vadd.f32 %v1685, %v1808
      %v1810 = vpop.f32.mrf.mxu0
      %1811 = vmatprep.mubr.f32.mxu0 0.0
      %1812 = vmatmul.mubr.f32.gmra.mxu0 %v635
      %v1813 = vpop.f32.mrf.mxu0
      %v1814 = vadd.f32 %v1685, %v1813
      %v1815 = vpop.f32.mrf.mxu0
      %1816 = vmatprep.mubr.f32.mxu0 0.0
      %1817 = vmatmul.mubr.f32.gmra.mxu0 %v638
      %v1818 = vpop.f32.mrf.mxu0
      %v1819 = vadd.f32 %v1685, %v1818
      %v1820 = vpop.f32.mrf.mxu0
      %1821 = vmatprep.mubr.f32.mxu0 0.0
      %1822 = vmatmul.mubr.f32.gmra.mxu0 %v641
      %v1823 = vpop.f32.mrf.mxu0
      %v1824 = vadd.f32 %v1685, %v1823
      %v1825 = vpop.f32.mrf.mxu0
      %1826 = vmatprep.mubr.f32.mxu0 0.0
      %1827 = vmatmul.mubr.f32.gmra.mxu0 %v644
      %v1828 = vpop.f32.mrf.mxu0
      %v1829 = vadd.f32 %v1685, %v1828
      %v1830 = vpop.f32.mrf.mxu0
      %1831 = vmatprep.mubr.f32.mxu0 0.0
      %1832 = vmatmul.mubr.f32.gmra.mxu0 %v647
      %v1833 = vpop.f32.mrf.mxu0
      %v1834 = vadd.f32 %v1685, %v1833
      %v1835 = vpop.f32.mrf.mxu0
      %1836 = vmatprep.mubr.f32.mxu0 0.0
      %1837 = vmatmul.mubr.f32.gmra.mxu0 %v650
      %v1838 = vpop.f32.mrf.mxu0
      %v1839 = vadd.f32 %v1685, %v1838
      %v1840 = vpop.f32.mrf.mxu0
      %1841 = vmatprep.mubr.f32.mxu0 0.0
      %1842 = vmatmul.mubr.f32.gmra.mxu0 %v653
      %v1843 = vpop.f32.mrf.mxu0
      %v1844 = vadd.f32 %v1685, %v1843
      %v1845 = vpop.f32.mrf.mxu0
      %1846 = vmatprep.mubr.f32.mxu0 0.0
      %1847 = vmatmul.mubr.f32.gmra.mxu0 %v656
      %v1848 = vpop.f32.mrf.mxu0
      %v1849 = vadd.f32 %v1685, %v1848
      %v1850 = vpop.f32.mrf.mxu0
      %1851 = vmatprep.mubr.f32.mxu0 0.0
      %1852 = vmatmul.mubr.f32.gmra.mxu0 %v659
      %v1853 = vpop.f32.mrf.mxu0
      %v1854 = vadd.f32 %v1685, %v1853
      %v1855 = vpop.f32.mrf.mxu0
      %1856 = vmatprep.mubr.f32.mxu0 0.0
      %1857 = vmatmul.mubr.f32.gmra.mxu0 %v662
      %v1858 = vpop.f32.mrf.mxu0
      %v1859 = vadd.f32 %v1685, %v1858
      %v1860 = vpop.f32.mrf.mxu0
      %1861 = vmatprep.mubr.f32.mxu0 0.0
      %1862 = vmatmul.mubr.f32.gmra.mxu0 %v665
      %v1863 = vpop.f32.mrf.mxu0
      %v1864 = vadd.f32 %v1685, %v1863
      %v1865 = vpop.f32.mrf.mxu0
      %1866 = vmatprep.mubr.f32.mxu0 0.0
      %1867 = vmatmul.mubr.f32.gmra.mxu0 %v668
      %v1868 = vpop.f32.mrf.mxu0
      %v1869 = vadd.f32 %v1685, %v1868
      %v1870 = vpop.f32.mrf.mxu0
      %1871 = vmatprep.mubr.f32.mxu0 0.0
      %1872 = vmatmul.mubr.f32.gmra.mxu0 %v671
      %v1873 = vpop.f32.mrf.mxu0
      %v1874 = vadd.f32 %v1685, %v1873
      %v1875 = vpop.f32.mrf.mxu0
      %1876 = vmatprep.mubr.f32.mxu0 0.0
      %1877 = vmatmul.mubr.f32.gmra.mxu0 %v674
      %v1878 = vpop.f32.mrf.mxu0
      %v1879 = vadd.f32 %v1685, %v1878
      %v1880 = vpop.f32.mrf.mxu0
      %1881 = vmatprep.mubr.f32.mxu0 0.0
      %1882 = vmatmul.mubr.f32.gmra.mxu0 %v677
      %v1883 = vpop.f32.mrf.mxu0
      %v1884 = vadd.f32 %v1685, %v1883
      %v1885 = vpop.f32.mrf.mxu0
      %1886 = vmatprep.mubr.f32.mxu0 0.0
      %1887 = vmatmul.mubr.f32.gmra.mxu0 %v680
      %v1888 = vpop.f32.mrf.mxu0
      %v1889 = vadd.f32 %v1685, %v1888
      %v1890 = vpop.f32.mrf.mxu0
      %1891 = vmatprep.mubr.f32.mxu0 0.0
      %1892 = vmatmul.mubr.f32.gmra.mxu0 %v683
      %v1893 = vpop.f32.mrf.mxu0
      %v1894 = vadd.f32 %v1685, %v1893
      %v1895 = vpop.f32.mrf.mxu0
      %1896 = vmatprep.mubr.f32.mxu0 0.0
      %1897 = vmatmul.mubr.f32.gmra.mxu0 %v686
      %v1898 = vpop.f32.mrf.mxu0
      %v1899 = vadd.f32 %v1685, %v1898
      %v1900 = vpop.f32.mrf.mxu0
      %1901 = vmatprep.mubr.f32.mxu0 0.0
      %1902 = vmatmul.mubr.f32.gmra.mxu0 %v689
      %v1903 = vpop.f32.mrf.mxu0
      %v1904 = vadd.f32 %v1685, %v1903
      %v1905 = vpop.f32.mrf.mxu0
      %1906 = vmatprep.mubr.f32.mxu0 0.0
      %1907 = vmatmul.mubr.f32.gmra.mxu0 %v692
      %v1908 = vpop.f32.mrf.mxu0
      %v1909 = vadd.f32 %v1685, %v1908
      %v1910 = vpop.f32.mrf.mxu0
      %1911 = vdwg.mxu0
      %v1912 = vld [vmem:[%s225] sm:$0xff]
      %v1913 = vld [vmem:[%s225 + $0x8] sm:$0xff]
      %v1914 = vld [vmem:[%s225 + $0x18] sm:$0xff]
      %v1915 = vld [vmem:[%s225 + $0x20] sm:$0xff]
      %v1916 = vld [vmem:[%s225 + $0x30] sm:$0xff]
      %v1917 = vld [vmem:[%s225 + $0x38] sm:$0xff]
      %v1918 = vld [vmem:[%s225 + $0x48] sm:$0xff]
      %v1919 = vld [vmem:[%s225 + $0x50] sm:$0xff]
      %v1920 = vld [vmem:[%s225 + $0x60] sm:$0xff]
      %v1921 = vld [vmem:[%s225 + $0x68] sm:$0xff]
      %v1922 = vld [vmem:[%s225 + $0x78] sm:$0xff]
      %v1923 = vld [vmem:[%s225 + $0x80] sm:$0xff]
      %v1924 = vld [vmem:[%s225 + $0x90] sm:$0xff]
      %v1925 = vld [vmem:[%s225 + $0x98] sm:$0xff]
      %v1926 = vld [vmem:[%s225 + $0xa8] sm:$0xff]
      %v1927 = vld [vmem:[%s225 + $0xb0] sm:$0xff]
      %v1928 = vld [vmem:[%s225 + $0xc0] sm:$0xff]
      %v1929 = vld [vmem:[%s225 + $0xc8] sm:$0xff]
      %v1930 = vld [vmem:[%s225 + $0xd8] sm:$0xff]
      %v1931 = vld [vmem:[%s225 + $0xe0] sm:$0xff]
      %v1932 = vld [vmem:[%s225 + $0xf0] sm:$0xff]
      %v1933 = vld [vmem:[%s225 + $0xf8] sm:$0xff]
      %v1934 = vld [vmem:[%s225 + $0x108] sm:$0xff]
      %v1935 = vld [vmem:[%s225 + $0x110] sm:$0xff]
      %v1936 = vld [vmem:[%s225 + $0x120] sm:$0xff]
      %v1937 = vld [vmem:[%s225 + $0x128] sm:$0xff]
      %v1938 = vld [vmem:[%s225 + $0x138] sm:$0xff]
      %v1939 = vld [vmem:[%s225 + $0x140] sm:$0xff]
      %v1940 = vld [vmem:[%s225 + $0x150] sm:$0xff]
      %v1941 = vld [vmem:[%s225 + $0x158] sm:$0xff]
      %v1942 = vld [vmem:[%s225 + $0x168] sm:$0xff]
      %v1943 = vld [vmem:[%s225 + $0x170] sm:$0xff]
      %v1944 = vmul.f32 %v1754, %v1912
      %v1945 = vmul.f32 %v1759, %v1913
      %v1946 = vmul.f32 %v1764, %v1914
      %v1947 = vmul.f32 %v1769, %v1915
      %v1948 = vmul.f32 %v1774, %v1916
      %v1949 = vmul.f32 %v1779, %v1917
      %v1950 = vmul.f32 %v1784, %v1918
      %v1951 = vmul.f32 %v1789, %v1919
      %v1952 = vmul.f32 %v1794, %v1920
      %v1953 = vmul.f32 %v1799, %v1921
      %v1954 = vmul.f32 %v1804, %v1922
      %v1955 = vmul.f32 %v1809, %v1923
      %v1956 = vmul.f32 %v1814, %v1924
      %v1957 = vmul.f32 %v1819, %v1925
      %v1958 = vmul.f32 %v1824, %v1926
      %v1959 = vmul.f32 %v1829, %v1927
      %v1960 = vmul.f32 %v1834, %v1928
      %v1961 = vmul.f32 %v1839, %v1929
      %v1962 = vmul.f32 %v1844, %v1930
      %v1963 = vmul.f32 %v1849, %v1931
      %v1964 = vmul.f32 %v1854, %v1932
      %v1965 = vmul.f32 %v1859, %v1933
      %v1966 = vmul.f32 %v1864, %v1934
      %v1967 = vmul.f32 %v1869, %v1935
      %v1968 = vmul.f32 %v1874, %v1936
      %v1969 = vmul.f32 %v1879, %v1937
      %v1970 = vmul.f32 %v1884, %v1938
      %v1971 = vmul.f32 %v1889, %v1939
      %v1972 = vmul.f32 %v1894, %v1940
      %v1973 = vmul.f32 %v1899, %v1941
      %v1974 = vmul.f32 %v1904, %v1942
      %v1975 = vmul.f32 %v1909, %v1943
      %v1976 = vadd.f32 %v1645, %v1944
      %v1977 = vadd.f32 %v1646, %v1945
      %v1978 = vadd.f32 %v1647, %v1946
      %v1979 = vadd.f32 %v1648, %v1947
      %v1980 = vadd.f32 %v1649, %v1948
      %v1981 = vadd.f32 %v1650, %v1949
      %v1982 = vadd.f32 %v1651, %v1950
      %v1983 = vadd.f32 %v1652, %v1951
      %v1984 = vadd.f32 %v1653, %v1952
      %v1985 = vadd.f32 %v1654, %v1953
      %v1986 = vadd.f32 %v1655, %v1954
      %v1987 = vadd.f32 %v1656, %v1955
      %v1988 = vadd.f32 %v1657, %v1956
      %v1989 = vadd.f32 %v1658, %v1957
      %v1990 = vadd.f32 %v1659, %v1958
      %v1991 = vadd.f32 %v1660, %v1959
      %v1992 = vadd.f32 %v1661, %v1960
      %v1993 = vadd.f32 %v1662, %v1961
      %v1994 = vadd.f32 %v1663, %v1962
      %v1995 = vadd.f32 %v1664, %v1963
      %v1996 = vadd.f32 %v1665, %v1964
      %v1997 = vadd.f32 %v1666, %v1965
      %v1998 = vadd.f32 %v1667, %v1966
      %v1999 = vadd.f32 %v1668, %v1967
      %v2000 = vadd.f32 %v1669, %v1968
      %v2001 = vadd.f32 %v1670, %v1969
      %v2002 = vadd.f32 %v1671, %v1970
      %v2003 = vadd.f32 %v1672, %v1971
      %v2004 = vadd.f32 %v1673, %v1972
      %v2005 = vadd.f32 %v1674, %v1973
      %v2006 = vadd.f32 %v1675, %v1974
      %v2007 = vadd.f32 %v1676, %v1975
      %s2008 = scalar_lea.vmem %s3, 32
      %v2009 = vld [vmem:[%s2008] sm:$0xff]
      %s2010 = scalar_lea.vmem %s4, 4
      %v2011 = vld [vmem:[%s2010] sm:$0x1]
      %v2013 = vlaneseq
      %v2014 = vshrl.u32 %v2013, 7
      %v2015 = vsub.s32 0, %v2014
      %v2016 = vrot.slane %v2011, %v2015
      %2018 = vmatprep.subr.mxu0 0.0
      %2019 = vmatpush1.msra.mxu0 0.0
      %2020 = vmatprep.subr.mxu0 0.0
      %2021 = vmatpush1.msra.mxu0 0.0
      %2022 = vmatprep.subr.mxu0 0.0
      %2023 = vmatpush1.msra.mxu0 0.0
      %2024 = vmatprep.subr.mxu0 0.0
      %2025 = vmatpush1.msra.mxu0 0.0
      %2026 = vmatprep.subr.mxu0 0.0
      %2027 = vmatpush1.msra.mxu0 0.0
      %2028 = vmatprep.subr.mxu0 0.0
      %2029 = vmatpush1.msra.mxu0 0.0
      %2030 = vmatprep.subr.mxu0 0.0
      %2031 = vmatpush1.msra.mxu0 0.0
      %2032 = vmatprep.subr.mxu0 0.0
      %2033 = vmatpush1.msra.mxu0 0.0
      %2034 = vmatprep.subr.mxu0 0.0
      %2035 = vmatpush1.msra.mxu0 0.0
      %2036 = vmatprep.subr.mxu0 0.0
      %2037 = vmatpush1.msra.mxu0 0.0
      %2038 = vmatprep.subr.mxu0 0.0
      %2039 = vmatpush1.msra.mxu0 0.0
      %2040 = vmatprep.subr.mxu0 0.0
      %2041 = vmatpush1.msra.mxu0 0.0
      %2042 = vmatprep.subr.mxu0 0.0
      %2043 = vmatpush1.msra.mxu0 0.0
      %2044 = vmatprep.subr.mxu0 0.0
      %2045 = vmatpush1.msra.mxu0 0.0
      %2046 = vmatprep.subr.mxu0 0.0
      %2047 = vmatpush1.msra.mxu0 0.0
      %2048 = vmatprep.subr.mxu0 0.0
      %2049 = vmatpush1.msra.mxu0 %v2009
      %2050 = vmatprep.subr.mxu0 0.0
      %2051 = vmatpush2.msra.mxu0 0.0
      %2052 = vmatprep.subr.mxu0 0.0
      %2053 = vmatpush2.msra.mxu0 0.0
      %2054 = vmatprep.subr.mxu0 0.0
      %2055 = vmatpush2.msra.mxu0 0.0
      %2056 = vmatprep.subr.mxu0 0.0
      %2057 = vmatpush2.msra.mxu0 0.0
      %2058 = vmatprep.subr.mxu0 0.0
      %2059 = vmatpush2.msra.mxu0 0.0
      %2060 = vmatprep.subr.mxu0 0.0
      %2061 = vmatpush2.msra.mxu0 0.0
      %2062 = vmatprep.subr.mxu0 0.0
      %2063 = vmatpush2.msra.mxu0 0.0
      %2064 = vmatprep.subr.mxu0 0.0
      %2065 = vmatpush2.msra.mxu0 0.0
      %2066 = vmatprep.subr.mxu0 0.0
      %2067 = vmatpush2.msra.mxu0 0.0
      %2068 = vmatprep.subr.mxu0 0.0
      %2069 = vmatpush2.msra.mxu0 0.0
      %2070 = vmatprep.subr.mxu0 0.0
      %2071 = vmatpush2.msra.mxu0 0.0
      %2072 = vmatprep.subr.mxu0 0.0
      %2073 = vmatpush2.msra.mxu0 0.0
      %2074 = vmatprep.subr.mxu0 0.0
      %2075 = vmatpush2.msra.mxu0 0.0
      %2076 = vmatprep.subr.mxu0 0.0
      %2077 = vmatpush2.msra.mxu0 0.0
      %2078 = vmatprep.subr.mxu0 0.0
      %2079 = vmatpush2.msra.mxu0 0.0
      %2080 = vmatprep.subr.mxu0 0.0
      %2081 = vmatpush2.msra.mxu0 0.0
      %2082 = vmatprep.mubr.f32.mxu0 0.0
      %2083 = vmatmul.mubr.f32.gmra.mxu0 %v599
      %v2084 = vpop.f32.mrf.mxu0
      %v2085 = vadd.f32 %v2016, %v2084
      %v2086 = vpop.f32.mrf.mxu0
      %2087 = vmatprep.mubr.f32.mxu0 0.0
      %2088 = vmatmul.mubr.f32.gmra.mxu0 %v602
      %v2089 = vpop.f32.mrf.mxu0
      %v2090 = vadd.f32 %v2016, %v2089
      %v2091 = vpop.f32.mrf.mxu0
      %2092 = vmatprep.mubr.f32.mxu0 0.0
      %2093 = vmatmul.mubr.f32.gmra.mxu0 %v605
      %v2094 = vpop.f32.mrf.mxu0
      %v2095 = vadd.f32 %v2016, %v2094
      %v2096 = vpop.f32.mrf.mxu0
      %2097 = vmatprep.mubr.f32.mxu0 0.0
      %2098 = vmatmul.mubr.f32.gmra.mxu0 %v608
      %v2099 = vpop.f32.mrf.mxu0
      %v2100 = vadd.f32 %v2016, %v2099
      %v2101 = vpop.f32.mrf.mxu0
      %2102 = vmatprep.mubr.f32.mxu0 0.0
      %2103 = vmatmul.mubr.f32.gmra.mxu0 %v611
      %v2104 = vpop.f32.mrf.mxu0
      %v2105 = vadd.f32 %v2016, %v2104
      %v2106 = vpop.f32.mrf.mxu0
      %2107 = vmatprep.mubr.f32.mxu0 0.0
      %2108 = vmatmul.mubr.f32.gmra.mxu0 %v614
      %v2109 = vpop.f32.mrf.mxu0
      %v2110 = vadd.f32 %v2016, %v2109
      %v2111 = vpop.f32.mrf.mxu0
      %2112 = vmatprep.mubr.f32.mxu0 0.0
      %2113 = vmatmul.mubr.f32.gmra.mxu0 %v617
      %v2114 = vpop.f32.mrf.mxu0
      %v2115 = vadd.f32 %v2016, %v2114
      %v2116 = vpop.f32.mrf.mxu0
      %2117 = vmatprep.mubr.f32.mxu0 0.0
      %2118 = vmatmul.mubr.f32.gmra.mxu0 %v620
      %v2119 = vpop.f32.mrf.mxu0
      %v2120 = vadd.f32 %v2016, %v2119
      %v2121 = vpop.f32.mrf.mxu0
      %2122 = vmatprep.mubr.f32.mxu0 0.0
      %2123 = vmatmul.mubr.f32.gmra.mxu0 %v623
      %v2124 = vpop.f32.mrf.mxu0
      %v2125 = vadd.f32 %v2016, %v2124
      %v2126 = vpop.f32.mrf.mxu0
      %2127 = vmatprep.mubr.f32.mxu0 0.0
      %2128 = vmatmul.mubr.f32.gmra.mxu0 %v626
      %v2129 = vpop.f32.mrf.mxu0
      %v2130 = vadd.f32 %v2016, %v2129
      %v2131 = vpop.f32.mrf.mxu0
      %2132 = vmatprep.mubr.f32.mxu0 0.0
      %2133 = vmatmul.mubr.f32.gmra.mxu0 %v629
      %v2134 = vpop.f32.mrf.mxu0
      %v2135 = vadd.f32 %v2016, %v2134
      %v2136 = vpop.f32.mrf.mxu0
      %2137 = vmatprep.mubr.f32.mxu0 0.0
      %2138 = vmatmul.mubr.f32.gmra.mxu0 %v632
      %v2139 = vpop.f32.mrf.mxu0
      %v2140 = vadd.f32 %v2016, %v2139
      %v2141 = vpop.f32.mrf.mxu0
      %2142 = vmatprep.mubr.f32.mxu0 0.0
      %2143 = vmatmul.mubr.f32.gmra.mxu0 %v635
      %v2144 = vpop.f32.mrf.mxu0
      %v2145 = vadd.f32 %v2016, %v2144
      %v2146 = vpop.f32.mrf.mxu0
      %2147 = vmatprep.mubr.f32.mxu0 0.0
      %2148 = vmatmul.mubr.f32.gmra.mxu0 %v638
      %v2149 = vpop.f32.mrf.mxu0
      %v2150 = vadd.f32 %v2016, %v2149
      %v2151 = vpop.f32.mrf.mxu0
      %2152 = vmatprep.mubr.f32.mxu0 0.0
      %2153 = vmatmul.mubr.f32.gmra.mxu0 %v641
      %v2154 = vpop.f32.mrf.mxu0
      %v2155 = vadd.f32 %v2016, %v2154
      %v2156 = vpop.f32.mrf.mxu0
      %2157 = vmatprep.mubr.f32.mxu0 0.0
      %2158 = vmatmul.mubr.f32.gmra.mxu0 %v644
      %v2159 = vpop.f32.mrf.mxu0
      %v2160 = vadd.f32 %v2016, %v2159
      %v2161 = vpop.f32.mrf.mxu0
      %2162 = vmatprep.mubr.f32.mxu0 0.0
      %2163 = vmatmul.mubr.f32.gmra.mxu0 %v647
      %v2164 = vpop.f32.mrf.mxu0
      %v2165 = vadd.f32 %v2016, %v2164
      %v2166 = vpop.f32.mrf.mxu0
      %2167 = vmatprep.mubr.f32.mxu0 0.0
      %2168 = vmatmul.mubr.f32.gmra.mxu0 %v650
      %v2169 = vpop.f32.mrf.mxu0
      %v2170 = vadd.f32 %v2016, %v2169
      %v2171 = vpop.f32.mrf.mxu0
      %2172 = vmatprep.mubr.f32.mxu0 0.0
      %2173 = vmatmul.mubr.f32.gmra.mxu0 %v653
      %v2174 = vpop.f32.mrf.mxu0
      %v2175 = vadd.f32 %v2016, %v2174
      %v2176 = vpop.f32.mrf.mxu0
      %2177 = vmatprep.mubr.f32.mxu0 0.0
      %2178 = vmatmul.mubr.f32.gmra.mxu0 %v656
      %v2179 = vpop.f32.mrf.mxu0
      %v2180 = vadd.f32 %v2016, %v2179
      %v2181 = vpop.f32.mrf.mxu0
      %2182 = vmatprep.mubr.f32.mxu0 0.0
      %2183 = vmatmul.mubr.f32.gmra.mxu0 %v659
      %v2184 = vpop.f32.mrf.mxu0
      %v2185 = vadd.f32 %v2016, %v2184
      %v2186 = vpop.f32.mrf.mxu0
      %2187 = vmatprep.mubr.f32.mxu0 0.0
      %2188 = vmatmul.mubr.f32.gmra.mxu0 %v662
      %v2189 = vpop.f32.mrf.mxu0
      %v2190 = vadd.f32 %v2016, %v2189
      %v2191 = vpop.f32.mrf.mxu0
      %2192 = vmatprep.mubr.f32.mxu0 0.0
      %2193 = vmatmul.mubr.f32.gmra.mxu0 %v665
      %v2194 = vpop.f32.mrf.mxu0
      %v2195 = vadd.f32 %v2016, %v2194
      %v2196 = vpop.f32.mrf.mxu0
      %2197 = vmatprep.mubr.f32.mxu0 0.0
      %2198 = vmatmul.mubr.f32.gmra.mxu0 %v668
      %v2199 = vpop.f32.mrf.mxu0
      %v2200 = vadd.f32 %v2016, %v2199
      %v2201 = vpop.f32.mrf.mxu0
      %2202 = vmatprep.mubr.f32.mxu0 0.0
      %2203 = vmatmul.mubr.f32.gmra.mxu0 %v671
      %v2204 = vpop.f32.mrf.mxu0
      %v2205 = vadd.f32 %v2016, %v2204
      %v2206 = vpop.f32.mrf.mxu0
      %2207 = vmatprep.mubr.f32.mxu0 0.0
      %2208 = vmatmul.mubr.f32.gmra.mxu0 %v674
      %v2209 = vpop.f32.mrf.mxu0
      %v2210 = vadd.f32 %v2016, %v2209
      %v2211 = vpop.f32.mrf.mxu0
      %2212 = vmatprep.mubr.f32.mxu0 0.0
      %2213 = vmatmul.mubr.f32.gmra.mxu0 %v677
      %v2214 = vpop.f32.mrf.mxu0
      %v2215 = vadd.f32 %v2016, %v2214
      %v2216 = vpop.f32.mrf.mxu0
      %2217 = vmatprep.mubr.f32.mxu0 0.0
      %2218 = vmatmul.mubr.f32.gmra.mxu0 %v680
      %v2219 = vpop.f32.mrf.mxu0
      %v2220 = vadd.f32 %v2016, %v2219
      %v2221 = vpop.f32.mrf.mxu0
      %2222 = vmatprep.mubr.f32.mxu0 0.0
      %2223 = vmatmul.mubr.f32.gmra.mxu0 %v683
      %v2224 = vpop.f32.mrf.mxu0
      %v2225 = vadd.f32 %v2016, %v2224
      %v2226 = vpop.f32.mrf.mxu0
      %2227 = vmatprep.mubr.f32.mxu0 0.0
      %2228 = vmatmul.mubr.f32.gmra.mxu0 %v686
      %v2229 = vpop.f32.mrf.mxu0
      %v2230 = vadd.f32 %v2016, %v2229
      %v2231 = vpop.f32.mrf.mxu0
      %2232 = vmatprep.mubr.f32.mxu0 0.0
      %2233 = vmatmul.mubr.f32.gmra.mxu0 %v689
      %v2234 = vpop.f32.mrf.mxu0
      %v2235 = vadd.f32 %v2016, %v2234
      %v2236 = vpop.f32.mrf.mxu0
      %2237 = vmatprep.mubr.f32.mxu0 0.0
      %2238 = vmatmul.mubr.f32.gmra.mxu0 %v692
      %v2239 = vpop.f32.mrf.mxu0
      %v2240 = vadd.f32 %v2016, %v2239
      %v2241 = vpop.f32.mrf.mxu0
      %2242 = vdwg.mxu0
      %v2243 = vmul.f32 %v2085, %v226
      %v2244 = vmul.f32 %v2090, %v227
      %v2245 = vmul.f32 %v2095, %v228
      %v2246 = vmul.f32 %v2100, %v229
      %v2247 = vmul.f32 %v2105, %v230
      %v2248 = vmul.f32 %v2110, %v231
      %v2249 = vmul.f32 %v2115, %v232
      %v2250 = vmul.f32 %v2120, %v233
      %v2251 = vmul.f32 %v2125, %v234
      %v2252 = vmul.f32 %v2130, %v235
      %v2253 = vmul.f32 %v2135, %v236
      %v2254 = vmul.f32 %v2140, %v237
      %v2255 = vmul.f32 %v2145, %v238
      %v2256 = vmul.f32 %v2150, %v239
      %v2257 = vmul.f32 %v2155, %v240
      %v2258 = vmul.f32 %v2160, %v241
      %v2259 = vmul.f32 %v2165, %v242
      %v2260 = vmul.f32 %v2170, %v243
      %v2261 = vmul.f32 %v2175, %v244
      %v2262 = vmul.f32 %v2180, %v245
      %v2263 = vmul.f32 %v2185, %v246
      %v2264 = vmul.f32 %v2190, %v247
      %v2265 = vmul.f32 %v2195, %v248
      %v2266 = vmul.f32 %v2200, %v249
      %v2267 = vmul.f32 %v2205, %v250
      %v2268 = vmul.f32 %v2210, %v251
      %v2269 = vmul.f32 %v2215, %v252
      %v2270 = vmul.f32 %v2220, %v253
      %v2271 = vmul.f32 %v2225, %v254
      %v2272 = vmul.f32 %v2230, %v255
      %v2273 = vmul.f32 %v2235, %v256
      %v2274 = vmul.f32 %v2240, %v257
      %v2275 = vadd.f32 %v1976, %v2243
      %v2276 = vadd.f32 %v1977, %v2244
      %v2277 = vadd.f32 %v1978, %v2245
      %v2278 = vadd.f32 %v1979, %v2246
      %v2279 = vadd.f32 %v1980, %v2247
      %v2280 = vadd.f32 %v1981, %v2248
      %v2281 = vadd.f32 %v1982, %v2249
      %v2282 = vadd.f32 %v1983, %v2250
      %v2283 = vadd.f32 %v1984, %v2251
      %v2284 = vadd.f32 %v1985, %v2252
      %v2285 = vadd.f32 %v1986, %v2253
      %v2286 = vadd.f32 %v1987, %v2254
      %v2287 = vadd.f32 %v1988, %v2255
      %v2288 = vadd.f32 %v1989, %v2256
      %v2289 = vadd.f32 %v1990, %v2257
      %v2290 = vadd.f32 %v1991, %v2258
      %v2291 = vadd.f32 %v1992, %v2259
      %v2292 = vadd.f32 %v1993, %v2260
      %v2293 = vadd.f32 %v1994, %v2261
      %v2294 = vadd.f32 %v1995, %v2262
      %v2295 = vadd.f32 %v1996, %v2263
      %v2296 = vadd.f32 %v1997, %v2264
      %v2297 = vadd.f32 %v1998, %v2265
      %v2298 = vadd.f32 %v1999, %v2266
      %v2299 = vadd.f32 %v2000, %v2267
      %v2300 = vadd.f32 %v2001, %v2268
      %v2301 = vadd.f32 %v2002, %v2269
      %v2302 = vadd.f32 %v2003, %v2270
      %v2303 = vadd.f32 %v2004, %v2271
      %v2304 = vadd.f32 %v2005, %v2272
      %v2305 = vadd.f32 %v2006, %v2273
      %v2306 = vadd.f32 %v2007, %v2274
      %s2307 = scalar_lea.vmem %s3, 40
      %v2308 = vld [vmem:[%s2307] sm:$0xff]
      %s2309 = scalar_lea.vmem %s4, 5
      %v2310 = vld [vmem:[%s2309] sm:$0x1]
      %v2312 = vlaneseq
      %v2313 = vshrl.u32 %v2312, 7
      %v2314 = vsub.s32 0, %v2313
      %v2315 = vrot.slane %v2310, %v2314
      %2317 = vmatprep.subr.mxu0 0.0
      %2318 = vmatpush1.msra.mxu0 0.0
      %2319 = vmatprep.subr.mxu0 0.0
      %2320 = vmatpush1.msra.mxu0 0.0
      %2321 = vmatprep.subr.mxu0 0.0
      %2322 = vmatpush1.msra.mxu0 0.0
      %2323 = vmatprep.subr.mxu0 0.0
      %2324 = vmatpush1.msra.mxu0 0.0
      %2325 = vmatprep.subr.mxu0 0.0
      %2326 = vmatpush1.msra.mxu0 0.0
      %2327 = vmatprep.subr.mxu0 0.0
      %2328 = vmatpush1.msra.mxu0 0.0
      %2329 = vmatprep.subr.mxu0 0.0
      %2330 = vmatpush1.msra.mxu0 0.0
      %2331 = vmatprep.subr.mxu0 0.0
      %2332 = vmatpush1.msra.mxu0 0.0
      %2333 = vmatprep.subr.mxu0 0.0
      %2334 = vmatpush1.msra.mxu0 0.0
      %2335 = vmatprep.subr.mxu0 0.0
      %2336 = vmatpush1.msra.mxu0 0.0
      %2337 = vmatprep.subr.mxu0 0.0
      %2338 = vmatpush1.msra.mxu0 0.0
      %2339 = vmatprep.subr.mxu0 0.0
      %2340 = vmatpush1.msra.mxu0 0.0
      %2341 = vmatprep.subr.mxu0 0.0
      %2342 = vmatpush1.msra.mxu0 0.0
      %2343 = vmatprep.subr.mxu0 0.0
      %2344 = vmatpush1.msra.mxu0 0.0
      %2345 = vmatprep.subr.mxu0 0.0
      %2346 = vmatpush1.msra.mxu0 0.0
      %2347 = vmatprep.subr.mxu0 0.0
      %2348 = vmatpush1.msra.mxu0 %v2308
      %2349 = vmatprep.subr.mxu0 0.0
      %2350 = vmatpush2.msra.mxu0 0.0
      %2351 = vmatprep.subr.mxu0 0.0
      %2352 = vmatpush2.msra.mxu0 0.0
      %2353 = vmatprep.subr.mxu0 0.0
      %2354 = vmatpush2.msra.mxu0 0.0
      %2355 = vmatprep.subr.mxu0 0.0
      %2356 = vmatpush2.msra.mxu0 0.0
      %2357 = vmatprep.subr.mxu0 0.0
      %2358 = vmatpush2.msra.mxu0 0.0
      %2359 = vmatprep.subr.mxu0 0.0
      %2360 = vmatpush2.msra.mxu0 0.0
      %2361 = vmatprep.subr.mxu0 0.0
      %2362 = vmatpush2.msra.mxu0 0.0
      %2363 = vmatprep.subr.mxu0 0.0
      %2364 = vmatpush2.msra.mxu0 0.0
      %2365 = vmatprep.subr.mxu0 0.0
      %2366 = vmatpush2.msra.mxu0 0.0
      %2367 = vmatprep.subr.mxu0 0.0
      %2368 = vmatpush2.msra.mxu0 0.0
      %2369 = vmatprep.subr.mxu0 0.0
      %2370 = vmatpush2.msra.mxu0 0.0
      %2371 = vmatprep.subr.mxu0 0.0
      %2372 = vmatpush2.msra.mxu0 0.0
      %2373 = vmatprep.subr.mxu0 0.0
      %2374 = vmatpush2.msra.mxu0 0.0
      %2375 = vmatprep.subr.mxu0 0.0
      %2376 = vmatpush2.msra.mxu0 0.0
      %2377 = vmatprep.subr.mxu0 0.0
      %2378 = vmatpush2.msra.mxu0 0.0
      %2379 = vmatprep.subr.mxu0 0.0
      %2380 = vmatpush2.msra.mxu0 0.0
      %2381 = vmatprep.mubr.f32.mxu0 0.0
      %2382 = vmatmul.mubr.f32.gmra.mxu0 %v599
      %v2383 = vpop.f32.mrf.mxu0
      %v2384 = vadd.f32 %v2315, %v2383
      %v2385 = vpop.f32.mrf.mxu0
      %2386 = vmatprep.mubr.f32.mxu0 0.0
      %2387 = vmatmul.mubr.f32.gmra.mxu0 %v602
      %v2388 = vpop.f32.mrf.mxu0
      %v2389 = vadd.f32 %v2315, %v2388
      %v2390 = vpop.f32.mrf.mxu0
      %2391 = vmatprep.mubr.f32.mxu0 0.0
      %2392 = vmatmul.mubr.f32.gmra.mxu0 %v605
      %v2393 = vpop.f32.mrf.mxu0
      %v2394 = vadd.f32 %v2315, %v2393
      %v2395 = vpop.f32.mrf.mxu0
      %2396 = vmatprep.mubr.f32.mxu0 0.0
      %2397 = vmatmul.mubr.f32.gmra.mxu0 %v608
      %v2398 = vpop.f32.mrf.mxu0
      %v2399 = vadd.f32 %v2315, %v2398
      %v2400 = vpop.f32.mrf.mxu0
      %2401 = vmatprep.mubr.f32.mxu0 0.0
      %2402 = vmatmul.mubr.f32.gmra.mxu0 %v611
      %v2403 = vpop.f32.mrf.mxu0
      %v2404 = vadd.f32 %v2315, %v2403
      %v2405 = vpop.f32.mrf.mxu0
      %2406 = vmatprep.mubr.f32.mxu0 0.0
      %2407 = vmatmul.mubr.f32.gmra.mxu0 %v614
      %v2408 = vpop.f32.mrf.mxu0
      %v2409 = vadd.f32 %v2315, %v2408
      %v2410 = vpop.f32.mrf.mxu0
      %2411 = vmatprep.mubr.f32.mxu0 0.0
      %2412 = vmatmul.mubr.f32.gmra.mxu0 %v617
      %v2413 = vpop.f32.mrf.mxu0
      %v2414 = vadd.f32 %v2315, %v2413
      %v2415 = vpop.f32.mrf.mxu0
      %2416 = vmatprep.mubr.f32.mxu0 0.0
      %2417 = vmatmul.mubr.f32.gmra.mxu0 %v620
      %v2418 = vpop.f32.mrf.mxu0
      %v2419 = vadd.f32 %v2315, %v2418
      %v2420 = vpop.f32.mrf.mxu0
      %2421 = vmatprep.mubr.f32.mxu0 0.0
      %2422 = vmatmul.mubr.f32.gmra.mxu0 %v623
      %v2423 = vpop.f32.mrf.mxu0
      %v2424 = vadd.f32 %v2315, %v2423
      %v2425 = vpop.f32.mrf.mxu0
      %2426 = vmatprep.mubr.f32.mxu0 0.0
      %2427 = vmatmul.mubr.f32.gmra.mxu0 %v626
      %v2428 = vpop.f32.mrf.mxu0
      %v2429 = vadd.f32 %v2315, %v2428
      %v2430 = vpop.f32.mrf.mxu0
      %2431 = vmatprep.mubr.f32.mxu0 0.0
      %2432 = vmatmul.mubr.f32.gmra.mxu0 %v629
      %v2433 = vpop.f32.mrf.mxu0
      %v2434 = vadd.f32 %v2315, %v2433
      %v2435 = vpop.f32.mrf.mxu0
      %2436 = vmatprep.mubr.f32.mxu0 0.0
      %2437 = vmatmul.mubr.f32.gmra.mxu0 %v632
      %v2438 = vpop.f32.mrf.mxu0
      %v2439 = vadd.f32 %v2315, %v2438
      %v2440 = vpop.f32.mrf.mxu0
      %2441 = vmatprep.mubr.f32.mxu0 0.0
      %2442 = vmatmul.mubr.f32.gmra.mxu0 %v635
      %v2443 = vpop.f32.mrf.mxu0
      %v2444 = vadd.f32 %v2315, %v2443
      %v2445 = vpop.f32.mrf.mxu0
      %2446 = vmatprep.mubr.f32.mxu0 0.0
      %2447 = vmatmul.mubr.f32.gmra.mxu0 %v638
      %v2448 = vpop.f32.mrf.mxu0
      %v2449 = vadd.f32 %v2315, %v2448
      %v2450 = vpop.f32.mrf.mxu0
      %2451 = vmatprep.mubr.f32.mxu0 0.0
      %2452 = vmatmul.mubr.f32.gmra.mxu0 %v641
      %v2453 = vpop.f32.mrf.mxu0
      %v2454 = vadd.f32 %v2315, %v2453
      %v2455 = vpop.f32.mrf.mxu0
      %2456 = vmatprep.mubr.f32.mxu0 0.0
      %2457 = vmatmul.mubr.f32.gmra.mxu0 %v644
      %v2458 = vpop.f32.mrf.mxu0
      %v2459 = vadd.f32 %v2315, %v2458
      %v2460 = vpop.f32.mrf.mxu0
      %2461 = vmatprep.mubr.f32.mxu0 0.0
      %2462 = vmatmul.mubr.f32.gmra.mxu0 %v647
      %v2463 = vpop.f32.mrf.mxu0
      %v2464 = vadd.f32 %v2315, %v2463
      %v2465 = vpop.f32.mrf.mxu0
      %2466 = vmatprep.mubr.f32.mxu0 0.0
      %2467 = vmatmul.mubr.f32.gmra.mxu0 %v650
      %v2468 = vpop.f32.mrf.mxu0
      %v2469 = vadd.f32 %v2315, %v2468
      %v2470 = vpop.f32.mrf.mxu0
      %2471 = vmatprep.mubr.f32.mxu0 0.0
      %2472 = vmatmul.mubr.f32.gmra.mxu0 %v653
      %v2473 = vpop.f32.mrf.mxu0
      %v2474 = vadd.f32 %v2315, %v2473
      %v2475 = vpop.f32.mrf.mxu0
      %2476 = vmatprep.mubr.f32.mxu0 0.0
      %2477 = vmatmul.mubr.f32.gmra.mxu0 %v656
      %v2478 = vpop.f32.mrf.mxu0
      %v2479 = vadd.f32 %v2315, %v2478
      %v2480 = vpop.f32.mrf.mxu0
      %2481 = vmatprep.mubr.f32.mxu0 0.0
      %2482 = vmatmul.mubr.f32.gmra.mxu0 %v659
      %v2483 = vpop.f32.mrf.mxu0
      %v2484 = vadd.f32 %v2315, %v2483
      %v2485 = vpop.f32.mrf.mxu0
      %2486 = vmatprep.mubr.f32.mxu0 0.0
      %2487 = vmatmul.mubr.f32.gmra.mxu0 %v662
      %v2488 = vpop.f32.mrf.mxu0
      %v2489 = vadd.f32 %v2315, %v2488
      %v2490 = vpop.f32.mrf.mxu0
      %2491 = vmatprep.mubr.f32.mxu0 0.0
      %2492 = vmatmul.mubr.f32.gmra.mxu0 %v665
      %v2493 = vpop.f32.mrf.mxu0
      %v2494 = vadd.f32 %v2315, %v2493
      %v2495 = vpop.f32.mrf.mxu0
      %2496 = vmatprep.mubr.f32.mxu0 0.0
      %2497 = vmatmul.mubr.f32.gmra.mxu0 %v668
      %v2498 = vpop.f32.mrf.mxu0
      %v2499 = vadd.f32 %v2315, %v2498
      %v2500 = vpop.f32.mrf.mxu0
      %2501 = vmatprep.mubr.f32.mxu0 0.0
      %2502 = vmatmul.mubr.f32.gmra.mxu0 %v671
      %v2503 = vpop.f32.mrf.mxu0
      %v2504 = vadd.f32 %v2315, %v2503
      %v2505 = vpop.f32.mrf.mxu0
      %2506 = vmatprep.mubr.f32.mxu0 0.0
      %2507 = vmatmul.mubr.f32.gmra.mxu0 %v674
      %v2508 = vpop.f32.mrf.mxu0
      %v2509 = vadd.f32 %v2315, %v2508
      %v2510 = vpop.f32.mrf.mxu0
      %2511 = vmatprep.mubr.f32.mxu0 0.0
      %2512 = vmatmul.mubr.f32.gmra.mxu0 %v677
      %v2513 = vpop.f32.mrf.mxu0
      %v2514 = vadd.f32 %v2315, %v2513
      %v2515 = vpop.f32.mrf.mxu0
      %2516 = vmatprep.mubr.f32.mxu0 0.0
      %2517 = vmatmul.mubr.f32.gmra.mxu0 %v680
      %v2518 = vpop.f32.mrf.mxu0
      %v2519 = vadd.f32 %v2315, %v2518
      %v2520 = vpop.f32.mrf.mxu0
      %2521 = vmatprep.mubr.f32.mxu0 0.0
      %2522 = vmatmul.mubr.f32.gmra.mxu0 %v683
      %v2523 = vpop.f32.mrf.mxu0
      %v2524 = vadd.f32 %v2315, %v2523
      %v2525 = vpop.f32.mrf.mxu0
      %2526 = vmatprep.mubr.f32.mxu0 0.0
      %2527 = vmatmul.mubr.f32.gmra.mxu0 %v686
      %v2528 = vpop.f32.mrf.mxu0
      %v2529 = vadd.f32 %v2315, %v2528
      %v2530 = vpop.f32.mrf.mxu0
      %2531 = vmatprep.mubr.f32.mxu0 0.0
      %2532 = vmatmul.mubr.f32.gmra.mxu0 %v689
      %v2533 = vpop.f32.mrf.mxu0
      %v2534 = vadd.f32 %v2315, %v2533
      %v2535 = vpop.f32.mrf.mxu0
      %2536 = vmatprep.mubr.f32.mxu0 0.0
      %2537 = vmatmul.mubr.f32.gmra.mxu0 %v692
      %v2538 = vpop.f32.mrf.mxu0
      %v2539 = vadd.f32 %v2315, %v2538
      %v2540 = vpop.f32.mrf.mxu0
      %2541 = vdwg.mxu0
      %v2542 = vld [vmem:[%s225 + $0x2] sm:$0xff]
      %v2543 = vld [vmem:[%s225 + $0xa] sm:$0xff]
      %v2544 = vld [vmem:[%s225 + $0x1a] sm:$0xff]
      %v2545 = vld [vmem:[%s225 + $0x22] sm:$0xff]
      %v2546 = vld [vmem:[%s225 + $0x32] sm:$0xff]
      %v2547 = vld [vmem:[%s225 + $0x3a] sm:$0xff]
      %v2548 = vld [vmem:[%s225 + $0x4a] sm:$0xff]
      %v2549 = vld [vmem:[%s225 + $0x52] sm:$0xff]
      %v2550 = vld [vmem:[%s225 + $0x62] sm:$0xff]
      %v2551 = vld [vmem:[%s225 + $0x6a] sm:$0xff]
      %v2552 = vld [vmem:[%s225 + $0x7a] sm:$0xff]
      %v2553 = vld [vmem:[%s225 + $0x82] sm:$0xff]
      %v2554 = vld [vmem:[%s225 + $0x92] sm:$0xff]
      %v2555 = vld [vmem:[%s225 + $0x9a] sm:$0xff]
      %v2556 = vld [vmem:[%s225 + $0xaa] sm:$0xff]
      %v2557 = vld [vmem:[%s225 + $0xb2] sm:$0xff]
      %v2558 = vld [vmem:[%s225 + $0xc2] sm:$0xff]
      %v2559 = vld [vmem:[%s225 + $0xca] sm:$0xff]
      %v2560 = vld [vmem:[%s225 + $0xda] sm:$0xff]
      %v2561 = vld [vmem:[%s225 + $0xe2] sm:$0xff]
      %v2562 = vld [vmem:[%s225 + $0xf2] sm:$0xff]
      %v2563 = vld [vmem:[%s225 + $0xfa] sm:$0xff]
      %v2564 = vld [vmem:[%s225 + $0x10a] sm:$0xff]
      %v2565 = vld [vmem:[%s225 + $0x112] sm:$0xff]
      %v2566 = vld [vmem:[%s225 + $0x122] sm:$0xff]
      %v2567 = vld [vmem:[%s225 + $0x12a] sm:$0xff]
      %v2568 = vld [vmem:[%s225 + $0x13a] sm:$0xff]
      %v2569 = vld [vmem:[%s225 + $0x142] sm:$0xff]
      %v2570 = vld [vmem:[%s225 + $0x152] sm:$0xff]
      %v2571 = vld [vmem:[%s225 + $0x15a] sm:$0xff]
      %v2572 = vld [vmem:[%s225 + $0x16a] sm:$0xff]
      %v2573 = vld [vmem:[%s225 + $0x172] sm:$0xff]
      %v2574 = vmul.f32 %v2384, %v2542
      %v2575 = vmul.f32 %v2389, %v2543
      %v2576 = vmul.f32 %v2394, %v2544
      %v2577 = vmul.f32 %v2399, %v2545
      %v2578 = vmul.f32 %v2404, %v2546
      %v2579 = vmul.f32 %v2409, %v2547
      %v2580 = vmul.f32 %v2414, %v2548
      %v2581 = vmul.f32 %v2419, %v2549
      %v2582 = vmul.f32 %v2424, %v2550
      %v2583 = vmul.f32 %v2429, %v2551
      %v2584 = vmul.f32 %v2434, %v2552
      %v2585 = vmul.f32 %v2439, %v2553
      %v2586 = vmul.f32 %v2444, %v2554
      %v2587 = vmul.f32 %v2449, %v2555
      %v2588 = vmul.f32 %v2454, %v2556
      %v2589 = vmul.f32 %v2459, %v2557
      %v2590 = vmul.f32 %v2464, %v2558
      %v2591 = vmul.f32 %v2469, %v2559
      %v2592 = vmul.f32 %v2474, %v2560
      %v2593 = vmul.f32 %v2479, %v2561
      %v2594 = vmul.f32 %v2484, %v2562
      %v2595 = vmul.f32 %v2489, %v2563
      %v2596 = vmul.f32 %v2494, %v2564
      %v2597 = vmul.f32 %v2499, %v2565
      %v2598 = vmul.f32 %v2504, %v2566
      %v2599 = vmul.f32 %v2509, %v2567
      %v2600 = vmul.f32 %v2514, %v2568
      %v2601 = vmul.f32 %v2519, %v2569
      %v2602 = vmul.f32 %v2524, %v2570
      %v2603 = vmul.f32 %v2529, %v2571
      %v2604 = vmul.f32 %v2534, %v2572
      %v2605 = vmul.f32 %v2539, %v2573
      %v2606 = vadd.f32 %v2275, %v2574
      %v2607 = vadd.f32 %v2276, %v2575
      %v2608 = vadd.f32 %v2277, %v2576
      %v2609 = vadd.f32 %v2278, %v2577
      %v2610 = vadd.f32 %v2279, %v2578
      %v2611 = vadd.f32 %v2280, %v2579
      %v2612 = vadd.f32 %v2281, %v2580
      %v2613 = vadd.f32 %v2282, %v2581
      %v2614 = vadd.f32 %v2283, %v2582
      %v2615 = vadd.f32 %v2284, %v2583
      %v2616 = vadd.f32 %v2285, %v2584
      %v2617 = vadd.f32 %v2286, %v2585
      %v2618 = vadd.f32 %v2287, %v2586
      %v2619 = vadd.f32 %v2288, %v2587
      %v2620 = vadd.f32 %v2289, %v2588
      %v2621 = vadd.f32 %v2290, %v2589
      %v2622 = vadd.f32 %v2291, %v2590
      %v2623 = vadd.f32 %v2292, %v2591
      %v2624 = vadd.f32 %v2293, %v2592
      %v2625 = vadd.f32 %v2294, %v2593
      %v2626 = vadd.f32 %v2295, %v2594
      %v2627 = vadd.f32 %v2296, %v2595
      %v2628 = vadd.f32 %v2297, %v2596
      %v2629 = vadd.f32 %v2298, %v2597
      %v2630 = vadd.f32 %v2299, %v2598
      %v2631 = vadd.f32 %v2300, %v2599
      %v2632 = vadd.f32 %v2301, %v2600
      %v2633 = vadd.f32 %v2302, %v2601
      %v2634 = vadd.f32 %v2303, %v2602
      %v2635 = vadd.f32 %v2304, %v2603
      %v2636 = vadd.f32 %v2305, %v2604
      %v2637 = vadd.f32 %v2306, %v2605
      %s2638 = scalar_lea.vmem %s3, 48
      %v2639 = vld [vmem:[%s2638] sm:$0xff]
      %s2640 = scalar_lea.vmem %s4, 6
      %v2641 = vld [vmem:[%s2640] sm:$0x1]
      %v2643 = vlaneseq
      %v2644 = vshrl.u32 %v2643, 7
      %v2645 = vsub.s32 0, %v2644
      %v2646 = vrot.slane %v2641, %v2645
      %2648 = vmatprep.subr.mxu0 0.0
      %2649 = vmatpush1.msra.mxu0 0.0
      %2650 = vmatprep.subr.mxu0 0.0
      %2651 = vmatpush1.msra.mxu0 0.0
      %2652 = vmatprep.subr.mxu0 0.0
      %2653 = vmatpush1.msra.mxu0 0.0
      %2654 = vmatprep.subr.mxu0 0.0
      %2655 = vmatpush1.msra.mxu0 0.0
      %2656 = vmatprep.subr.mxu0 0.0
      %2657 = vmatpush1.msra.mxu0 0.0
      %2658 = vmatprep.subr.mxu0 0.0
      %2659 = vmatpush1.msra.mxu0 0.0
      %2660 = vmatprep.subr.mxu0 0.0
      %2661 = vmatpush1.msra.mxu0 0.0
      %2662 = vmatprep.subr.mxu0 0.0
      %2663 = vmatpush1.msra.mxu0 0.0
      %2664 = vmatprep.subr.mxu0 0.0
      %2665 = vmatpush1.msra.mxu0 0.0
      %2666 = vmatprep.subr.mxu0 0.0
      %2667 = vmatpush1.msra.mxu0 0.0
      %2668 = vmatprep.subr.mxu0 0.0
      %2669 = vmatpush1.msra.mxu0 0.0
      %2670 = vmatprep.subr.mxu0 0.0
      %2671 = vmatpush1.msra.mxu0 0.0
      %2672 = vmatprep.subr.mxu0 0.0
      %2673 = vmatpush1.msra.mxu0 0.0
      %2674 = vmatprep.subr.mxu0 0.0
      %2675 = vmatpush1.msra.mxu0 0.0
      %2676 = vmatprep.subr.mxu0 0.0
      %2677 = vmatpush1.msra.mxu0 0.0
      %2678 = vmatprep.subr.mxu0 0.0
      %2679 = vmatpush1.msra.mxu0 %v2639
      %2680 = vmatprep.subr.mxu0 0.0
      %2681 = vmatpush2.msra.mxu0 0.0
      %2682 = vmatprep.subr.mxu0 0.0
      %2683 = vmatpush2.msra.mxu0 0.0
      %2684 = vmatprep.subr.mxu0 0.0
      %2685 = vmatpush2.msra.mxu0 0.0
      %2686 = vmatprep.subr.mxu0 0.0
      %2687 = vmatpush2.msra.mxu0 0.0
      %2688 = vmatprep.subr.mxu0 0.0
      %2689 = vmatpush2.msra.mxu0 0.0
      %2690 = vmatprep.subr.mxu0 0.0
      %2691 = vmatpush2.msra.mxu0 0.0
      %2692 = vmatprep.subr.mxu0 0.0
      %2693 = vmatpush2.msra.mxu0 0.0
      %2694 = vmatprep.subr.mxu0 0.0
      %2695 = vmatpush2.msra.mxu0 0.0
      %2696 = vmatprep.subr.mxu0 0.0
      %2697 = vmatpush2.msra.mxu0 0.0
      %2698 = vmatprep.subr.mxu0 0.0
      %2699 = vmatpush2.msra.mxu0 0.0
      %2700 = vmatprep.subr.mxu0 0.0
      %2701 = vmatpush2.msra.mxu0 0.0
      %2702 = vmatprep.subr.mxu0 0.0
      %2703 = vmatpush2.msra.mxu0 0.0
      %2704 = vmatprep.subr.mxu0 0.0
      %2705 = vmatpush2.msra.mxu0 0.0
      %2706 = vmatprep.subr.mxu0 0.0
      %2707 = vmatpush2.msra.mxu0 0.0
      %2708 = vmatprep.subr.mxu0 0.0
      %2709 = vmatpush2.msra.mxu0 0.0
      %2710 = vmatprep.subr.mxu0 0.0
      %2711 = vmatpush2.msra.mxu0 0.0
      %2712 = vmatprep.mubr.f32.mxu0 0.0
      %2713 = vmatmul.mubr.f32.gmra.mxu0 %v599
      %v2714 = vpop.f32.mrf.mxu0
      %v2715 = vadd.f32 %v2646, %v2714
      %v2716 = vpop.f32.mrf.mxu0
      %2717 = vmatprep.mubr.f32.mxu0 0.0
      %2718 = vmatmul.mubr.f32.gmra.mxu0 %v602
      %v2719 = vpop.f32.mrf.mxu0
      %v2720 = vadd.f32 %v2646, %v2719
      %v2721 = vpop.f32.mrf.mxu0
      %2722 = vmatprep.mubr.f32.mxu0 0.0
      %2723 = vmatmul.mubr.f32.gmra.mxu0 %v605
      %v2724 = vpop.f32.mrf.mxu0
      %v2725 = vadd.f32 %v2646, %v2724
      %v2726 = vpop.f32.mrf.mxu0
      %2727 = vmatprep.mubr.f32.mxu0 0.0
      %2728 = vmatmul.mubr.f32.gmra.mxu0 %v608
      %v2729 = vpop.f32.mrf.mxu0
      %v2730 = vadd.f32 %v2646, %v2729
      %v2731 = vpop.f32.mrf.mxu0
      %2732 = vmatprep.mubr.f32.mxu0 0.0
      %2733 = vmatmul.mubr.f32.gmra.mxu0 %v611
      %v2734 = vpop.f32.mrf.mxu0
      %v2735 = vadd.f32 %v2646, %v2734
      %v2736 = vpop.f32.mrf.mxu0
      %2737 = vmatprep.mubr.f32.mxu0 0.0
      %2738 = vmatmul.mubr.f32.gmra.mxu0 %v614
      %v2739 = vpop.f32.mrf.mxu0
      %v2740 = vadd.f32 %v2646, %v2739
      %v2741 = vpop.f32.mrf.mxu0
      %2742 = vmatprep.mubr.f32.mxu0 0.0
      %2743 = vmatmul.mubr.f32.gmra.mxu0 %v617
      %v2744 = vpop.f32.mrf.mxu0
      %v2745 = vadd.f32 %v2646, %v2744
      %v2746 = vpop.f32.mrf.mxu0
      %2747 = vmatprep.mubr.f32.mxu0 0.0
      %2748 = vmatmul.mubr.f32.gmra.mxu0 %v620
      %v2749 = vpop.f32.mrf.mxu0
      %v2750 = vadd.f32 %v2646, %v2749
      %v2751 = vpop.f32.mrf.mxu0
      %2752 = vmatprep.mubr.f32.mxu0 0.0
      %2753 = vmatmul.mubr.f32.gmra.mxu0 %v623
      %v2754 = vpop.f32.mrf.mxu0
      %v2755 = vadd.f32 %v2646, %v2754
      %v2756 = vpop.f32.mrf.mxu0
      %2757 = vmatprep.mubr.f32.mxu0 0.0
      %2758 = vmatmul.mubr.f32.gmra.mxu0 %v626
      %v2759 = vpop.f32.mrf.mxu0
      %v2760 = vadd.f32 %v2646, %v2759
      %v2761 = vpop.f32.mrf.mxu0
      %2762 = vmatprep.mubr.f32.mxu0 0.0
      %2763 = vmatmul.mubr.f32.gmra.mxu0 %v629
      %v2764 = vpop.f32.mrf.mxu0
      %v2765 = vadd.f32 %v2646, %v2764
      %v2766 = vpop.f32.mrf.mxu0
      %2767 = vmatprep.mubr.f32.mxu0 0.0
      %2768 = vmatmul.mubr.f32.gmra.mxu0 %v632
      %v2769 = vpop.f32.mrf.mxu0
      %v2770 = vadd.f32 %v2646, %v2769
      %v2771 = vpop.f32.mrf.mxu0
      %2772 = vmatprep.mubr.f32.mxu0 0.0
      %2773 = vmatmul.mubr.f32.gmra.mxu0 %v635
      %v2774 = vpop.f32.mrf.mxu0
      %v2775 = vadd.f32 %v2646, %v2774
      %v2776 = vpop.f32.mrf.mxu0
      %2777 = vmatprep.mubr.f32.mxu0 0.0
      %2778 = vmatmul.mubr.f32.gmra.mxu0 %v638
      %v2779 = vpop.f32.mrf.mxu0
      %v2780 = vadd.f32 %v2646, %v2779
      %v2781 = vpop.f32.mrf.mxu0
      %2782 = vmatprep.mubr.f32.mxu0 0.0
      %2783 = vmatmul.mubr.f32.gmra.mxu0 %v641
      %v2784 = vpop.f32.mrf.mxu0
      %v2785 = vadd.f32 %v2646, %v2784
      %v2786 = vpop.f32.mrf.mxu0
      %2787 = vmatprep.mubr.f32.mxu0 0.0
      %2788 = vmatmul.mubr.f32.gmra.mxu0 %v644
      %v2789 = vpop.f32.mrf.mxu0
      %v2790 = vadd.f32 %v2646, %v2789
      %v2791 = vpop.f32.mrf.mxu0
      %2792 = vmatprep.mubr.f32.mxu0 0.0
      %2793 = vmatmul.mubr.f32.gmra.mxu0 %v647
      %v2794 = vpop.f32.mrf.mxu0
      %v2795 = vadd.f32 %v2646, %v2794
      %v2796 = vpop.f32.mrf.mxu0
      %2797 = vmatprep.mubr.f32.mxu0 0.0
      %2798 = vmatmul.mubr.f32.gmra.mxu0 %v650
      %v2799 = vpop.f32.mrf.mxu0
      %v2800 = vadd.f32 %v2646, %v2799
      %v2801 = vpop.f32.mrf.mxu0
      %2802 = vmatprep.mubr.f32.mxu0 0.0
      %2803 = vmatmul.mubr.f32.gmra.mxu0 %v653
      %v2804 = vpop.f32.mrf.mxu0
      %v2805 = vadd.f32 %v2646, %v2804
      %v2806 = vpop.f32.mrf.mxu0
      %2807 = vmatprep.mubr.f32.mxu0 0.0
      %2808 = vmatmul.mubr.f32.gmra.mxu0 %v656
      %v2809 = vpop.f32.mrf.mxu0
      %v2810 = vadd.f32 %v2646, %v2809
      %v2811 = vpop.f32.mrf.mxu0
      %2812 = vmatprep.mubr.f32.mxu0 0.0
      %2813 = vmatmul.mubr.f32.gmra.mxu0 %v659
      %v2814 = vpop.f32.mrf.mxu0
      %v2815 = vadd.f32 %v2646, %v2814
      %v2816 = vpop.f32.mrf.mxu0
      %2817 = vmatprep.mubr.f32.mxu0 0.0
      %2818 = vmatmul.mubr.f32.gmra.mxu0 %v662
      %v2819 = vpop.f32.mrf.mxu0
      %v2820 = vadd.f32 %v2646, %v2819
      %v2821 = vpop.f32.mrf.mxu0
      %2822 = vmatprep.mubr.f32.mxu0 0.0
      %2823 = vmatmul.mubr.f32.gmra.mxu0 %v665
      %v2824 = vpop.f32.mrf.mxu0
      %v2825 = vadd.f32 %v2646, %v2824
      %v2826 = vpop.f32.mrf.mxu0
      %2827 = vmatprep.mubr.f32.mxu0 0.0
      %2828 = vmatmul.mubr.f32.gmra.mxu0 %v668
      %v2829 = vpop.f32.mrf.mxu0
      %v2830 = vadd.f32 %v2646, %v2829
      %v2831 = vpop.f32.mrf.mxu0
      %2832 = vmatprep.mubr.f32.mxu0 0.0
      %2833 = vmatmul.mubr.f32.gmra.mxu0 %v671
      %v2834 = vpop.f32.mrf.mxu0
      %v2835 = vadd.f32 %v2646, %v2834
      %v2836 = vpop.f32.mrf.mxu0
      %2837 = vmatprep.mubr.f32.mxu0 0.0
      %2838 = vmatmul.mubr.f32.gmra.mxu0 %v674
      %v2839 = vpop.f32.mrf.mxu0
      %v2840 = vadd.f32 %v2646, %v2839
      %v2841 = vpop.f32.mrf.mxu0
      %2842 = vmatprep.mubr.f32.mxu0 0.0
      %2843 = vmatmul.mubr.f32.gmra.mxu0 %v677
      %v2844 = vpop.f32.mrf.mxu0
      %v2845 = vadd.f32 %v2646, %v2844
      %v2846 = vpop.f32.mrf.mxu0
      %2847 = vmatprep.mubr.f32.mxu0 0.0
      %2848 = vmatmul.mubr.f32.gmra.mxu0 %v680
      %v2849 = vpop.f32.mrf.mxu0
      %v2850 = vadd.f32 %v2646, %v2849
      %v2851 = vpop.f32.mrf.mxu0
      %2852 = vmatprep.mubr.f32.mxu0 0.0
      %2853 = vmatmul.mubr.f32.gmra.mxu0 %v683
      %v2854 = vpop.f32.mrf.mxu0
      %v2855 = vadd.f32 %v2646, %v2854
      %v2856 = vpop.f32.mrf.mxu0
      %2857 = vmatprep.mubr.f32.mxu0 0.0
      %2858 = vmatmul.mubr.f32.gmra.mxu0 %v686
      %v2859 = vpop.f32.mrf.mxu0
      %v2860 = vadd.f32 %v2646, %v2859
      %v2861 = vpop.f32.mrf.mxu0
      %2862 = vmatprep.mubr.f32.mxu0 0.0
      %2863 = vmatmul.mubr.f32.gmra.mxu0 %v689
      %v2864 = vpop.f32.mrf.mxu0
      %v2865 = vadd.f32 %v2646, %v2864
      %v2866 = vpop.f32.mrf.mxu0
      %2867 = vmatprep.mubr.f32.mxu0 0.0
      %2868 = vmatmul.mubr.f32.gmra.mxu0 %v692
      %v2869 = vpop.f32.mrf.mxu0
      %v2870 = vadd.f32 %v2646, %v2869
      %v2871 = vpop.f32.mrf.mxu0
      %2872 = vdwg.mxu0
      %s2873 = scalar_lea.vmem %s219, 48
      %v2874 = vld [vmem:[%s2873] sm:$0xff]
      %v2875 = vld [vmem:[%s2873 + $0x8] sm:$0xff]
      %v2876 = vld [vmem:[%s2873 + $0x18] sm:$0xff]
      %v2877 = vld [vmem:[%s2873 + $0x20] sm:$0xff]
      %v2878 = vld [vmem:[%s2873 + $0x30] sm:$0xff]
      %v2879 = vld [vmem:[%s2873 + $0x38] sm:$0xff]
      %v2880 = vld [vmem:[%s2873 + $0x48] sm:$0xff]
      %v2881 = vld [vmem:[%s2873 + $0x50] sm:$0xff]
      %v2882 = vld [vmem:[%s2873 + $0x60] sm:$0xff]
      %v2883 = vld [vmem:[%s2873 + $0x68] sm:$0xff]
      %v2884 = vld [vmem:[%s2873 + $0x78] sm:$0xff]
      %v2885 = vld [vmem:[%s2873 + $0x80] sm:$0xff]
      %v2886 = vld [vmem:[%s2873 + $0x90] sm:$0xff]
      %v2887 = vld [vmem:[%s2873 + $0x98] sm:$0xff]
      %v2888 = vld [vmem:[%s2873 + $0xa8] sm:$0xff]
      %v2889 = vld [vmem:[%s2873 + $0xb0] sm:$0xff]
      %v2890 = vld [vmem:[%s2873 + $0xc0] sm:$0xff]
      %v2891 = vld [vmem:[%s2873 + $0xc8] sm:$0xff]
      %v2892 = vld [vmem:[%s2873 + $0xd8] sm:$0xff]
      %v2893 = vld [vmem:[%s2873 + $0xe0] sm:$0xff]
      %v2894 = vld [vmem:[%s2873 + $0xf0] sm:$0xff]
      %v2895 = vld [vmem:[%s2873 + $0xf8] sm:$0xff]
      %v2896 = vld [vmem:[%s2873 + $0x108] sm:$0xff]
      %v2897 = vld [vmem:[%s2873 + $0x110] sm:$0xff]
      %v2898 = vld [vmem:[%s2873 + $0x120] sm:$0xff]
      %v2899 = vld [vmem:[%s2873 + $0x128] sm:$0xff]
      %v2900 = vld [vmem:[%s2873 + $0x138] sm:$0xff]
      %v2901 = vld [vmem:[%s2873 + $0x140] sm:$0xff]
      %v2902 = vld [vmem:[%s2873 + $0x150] sm:$0xff]
      %v2903 = vld [vmem:[%s2873 + $0x158] sm:$0xff]
      %v2904 = vld [vmem:[%s2873 + $0x168] sm:$0xff]
      %v2905 = vld [vmem:[%s2873 + $0x170] sm:$0xff]
      %v2906 = vmul.f32 %v2715, %v2874
      %v2907 = vmul.f32 %v2720, %v2875
      %v2908 = vmul.f32 %v2725, %v2876
      %v2909 = vmul.f32 %v2730, %v2877
      %v2910 = vmul.f32 %v2735, %v2878
      %v2911 = vmul.f32 %v2740, %v2879
      %v2912 = vmul.f32 %v2745, %v2880
      %v2913 = vmul.f32 %v2750, %v2881
      %v2914 = vmul.f32 %v2755, %v2882
      %v2915 = vmul.f32 %v2760, %v2883
      %v2916 = vmul.f32 %v2765, %v2884
      %v2917 = vmul.f32 %v2770, %v2885
      %v2918 = vmul.f32 %v2775, %v2886
      %v2919 = vmul.f32 %v2780, %v2887
      %v2920 = vmul.f32 %v2785, %v2888
      %v2921 = vmul.f32 %v2790, %v2889
      %v2922 = vmul.f32 %v2795, %v2890
      %v2923 = vmul.f32 %v2800, %v2891
      %v2924 = vmul.f32 %v2805, %v2892
      %v2925 = vmul.f32 %v2810, %v2893
      %v2926 = vmul.f32 %v2815, %v2894
      %v2927 = vmul.f32 %v2820, %v2895
      %v2928 = vmul.f32 %v2825, %v2896
      %v2929 = vmul.f32 %v2830, %v2897
      %v2930 = vmul.f32 %v2835, %v2898
      %v2931 = vmul.f32 %v2840, %v2899
      %v2932 = vmul.f32 %v2845, %v2900
      %v2933 = vmul.f32 %v2850, %v2901
      %v2934 = vmul.f32 %v2855, %v2902
      %v2935 = vmul.f32 %v2860, %v2903
      %v2936 = vmul.f32 %v2865, %v2904
      %v2937 = vmul.f32 %v2870, %v2905
      %v2938 = vadd.f32 %v2606, %v2906
      %v2939 = vadd.f32 %v2607, %v2907
      %v2940 = vadd.f32 %v2608, %v2908
      %v2941 = vadd.f32 %v2609, %v2909
      %v2942 = vadd.f32 %v2610, %v2910
      %v2943 = vadd.f32 %v2611, %v2911
      %v2944 = vadd.f32 %v2612, %v2912
      %v2945 = vadd.f32 %v2613, %v2913
      %v2946 = vadd.f32 %v2614, %v2914
      %v2947 = vadd.f32 %v2615, %v2915
      %v2948 = vadd.f32 %v2616, %v2916
      %v2949 = vadd.f32 %v2617, %v2917
      %v2950 = vadd.f32 %v2618, %v2918
      %v2951 = vadd.f32 %v2619, %v2919
      %v2952 = vadd.f32 %v2620, %v2920
      %v2953 = vadd.f32 %v2621, %v2921
      %v2954 = vadd.f32 %v2622, %v2922
      %v2955 = vadd.f32 %v2623, %v2923
      %v2956 = vadd.f32 %v2624, %v2924
      %v2957 = vadd.f32 %v2625, %v2925
      %v2958 = vadd.f32 %v2626, %v2926
      %v2959 = vadd.f32 %v2627, %v2927
      %v2960 = vadd.f32 %v2628, %v2928
      %v2961 = vadd.f32 %v2629, %v2929
      %v2962 = vadd.f32 %v2630, %v2930
      %v2963 = vadd.f32 %v2631, %v2931
      %v2964 = vadd.f32 %v2632, %v2932
      %v2965 = vadd.f32 %v2633, %v2933
      %v2966 = vadd.f32 %v2634, %v2934
      %v2967 = vadd.f32 %v2635, %v2935
      %v2968 = vadd.f32 %v2636, %v2936
      %v2969 = vadd.f32 %v2637, %v2937
      %s2970 = scalar_lea.vmem %s3, 56
      %v2971 = vld [vmem:[%s2970] sm:$0xff]
      %s2972 = scalar_lea.vmem %s4, 7
      %v2973 = vld [vmem:[%s2972] sm:$0x1]
      %v2975 = vlaneseq
      %v2976 = vshrl.u32 %v2975, 7
      %v2977 = vsub.s32 0, %v2976
      %v2978 = vrot.slane %v2973, %v2977
      %2980 = vmatprep.subr.mxu0 0.0
      %2981 = vmatpush1.msra.mxu0 0.0
      %2982 = vmatprep.subr.mxu0 0.0
      %2983 = vmatpush1.msra.mxu0 0.0
      %2984 = vmatprep.subr.mxu0 0.0
      %2985 = vmatpush1.msra.mxu0 0.0
      %2986 = vmatprep.subr.mxu0 0.0
      %2987 = vmatpush1.msra.mxu0 0.0
      %2988 = vmatprep.subr.mxu0 0.0
      %2989 = vmatpush1.msra.mxu0 0.0
      %2990 = vmatprep.subr.mxu0 0.0
      %2991 = vmatpush1.msra.mxu0 0.0
      %2992 = vmatprep.subr.mxu0 0.0
      %2993 = vmatpush1.msra.mxu0 0.0
      %2994 = vmatprep.subr.mxu0 0.0
      %2995 = vmatpush1.msra.mxu0 0.0
      %2996 = vmatprep.subr.mxu0 0.0
      %2997 = vmatpush1.msra.mxu0 0.0
      %2998 = vmatprep.subr.mxu0 0.0
      %2999 = vmatpush1.msra.mxu0 0.0
      %3000 = vmatprep.subr.mxu0 0.0
      %3001 = vmatpush1.msra.mxu0 0.0
      %3002 = vmatprep.subr.mxu0 0.0
      %3003 = vmatpush1.msra.mxu0 0.0
      %3004 = vmatprep.subr.mxu0 0.0
      %3005 = vmatpush1.msra.mxu0 0.0
      %3006 = vmatprep.subr.mxu0 0.0
      %3007 = vmatpush1.msra.mxu0 0.0
      %3008 = vmatprep.subr.mxu0 0.0
      %3009 = vmatpush1.msra.mxu0 0.0
      %3010 = vmatprep.subr.mxu0 0.0
      %3011 = vmatpush1.msra.mxu0 %v2971
      %3012 = vmatprep.subr.mxu0 0.0
      %3013 = vmatpush2.msra.mxu0 0.0
      %3014 = vmatprep.subr.mxu0 0.0
      %3015 = vmatpush2.msra.mxu0 0.0
      %3016 = vmatprep.subr.mxu0 0.0
      %3017 = vmatpush2.msra.mxu0 0.0
      %3018 = vmatprep.subr.mxu0 0.0
      %3019 = vmatpush2.msra.mxu0 0.0
      %3020 = vmatprep.subr.mxu0 0.0
      %3021 = vmatpush2.msra.mxu0 0.0
      %3022 = vmatprep.subr.mxu0 0.0
      %3023 = vmatpush2.msra.mxu0 0.0
      %3024 = vmatprep.subr.mxu0 0.0
      %3025 = vmatpush2.msra.mxu0 0.0
      %3026 = vmatprep.subr.mxu0 0.0
      %3027 = vmatpush2.msra.mxu0 0.0
      %3028 = vmatprep.subr.mxu0 0.0
      %3029 = vmatpush2.msra.mxu0 0.0
      %3030 = vmatprep.subr.mxu0 0.0
      %3031 = vmatpush2.msra.mxu0 0.0
      %3032 = vmatprep.subr.mxu0 0.0
      %3033 = vmatpush2.msra.mxu0 0.0
      %3034 = vmatprep.subr.mxu0 0.0
      %3035 = vmatpush2.msra.mxu0 0.0
      %3036 = vmatprep.subr.mxu0 0.0
      %3037 = vmatpush2.msra.mxu0 0.0
      %3038 = vmatprep.subr.mxu0 0.0
      %3039 = vmatpush2.msra.mxu0 0.0
      %3040 = vmatprep.subr.mxu0 0.0
      %3041 = vmatpush2.msra.mxu0 0.0
      %3042 = vmatprep.subr.mxu0 0.0
      %3043 = vmatpush2.msra.mxu0 0.0
      %3044 = vmatprep.mubr.f32.mxu0 0.0
      %3045 = vmatmul.mubr.f32.gmra.mxu0 %v599
      %v3046 = vpop.f32.mrf.mxu0
      %v3047 = vadd.f32 %v2978, %v3046
      %v3048 = vpop.f32.mrf.mxu0
      %3049 = vmatprep.mubr.f32.mxu0 0.0
      %3050 = vmatmul.mubr.f32.gmra.mxu0 %v602
      %v3051 = vpop.f32.mrf.mxu0
      %v3052 = vadd.f32 %v2978, %v3051
      %v3053 = vpop.f32.mrf.mxu0
      %3054 = vmatprep.mubr.f32.mxu0 0.0
      %3055 = vmatmul.mubr.f32.gmra.mxu0 %v605
      %v3056 = vpop.f32.mrf.mxu0
      %v3057 = vadd.f32 %v2978, %v3056
      %v3058 = vpop.f32.mrf.mxu0
      %3059 = vmatprep.mubr.f32.mxu0 0.0
      %3060 = vmatmul.mubr.f32.gmra.mxu0 %v608
      %v3061 = vpop.f32.mrf.mxu0
      %v3062 = vadd.f32 %v2978, %v3061
      %v3063 = vpop.f32.mrf.mxu0
      %3064 = vmatprep.mubr.f32.mxu0 0.0
      %3065 = vmatmul.mubr.f32.gmra.mxu0 %v611
      %v3066 = vpop.f32.mrf.mxu0
      %v3067 = vadd.f32 %v2978, %v3066
      %v3068 = vpop.f32.mrf.mxu0
      %3069 = vmatprep.mubr.f32.mxu0 0.0
      %3070 = vmatmul.mubr.f32.gmra.mxu0 %v614
      %v3071 = vpop.f32.mrf.mxu0
      %v3072 = vadd.f32 %v2978, %v3071
      %v3073 = vpop.f32.mrf.mxu0
      %3074 = vmatprep.mubr.f32.mxu0 0.0
      %3075 = vmatmul.mubr.f32.gmra.mxu0 %v617
      %v3076 = vpop.f32.mrf.mxu0
      %v3077 = vadd.f32 %v2978, %v3076
      %v3078 = vpop.f32.mrf.mxu0
      %3079 = vmatprep.mubr.f32.mxu0 0.0
      %3080 = vmatmul.mubr.f32.gmra.mxu0 %v620
      %v3081 = vpop.f32.mrf.mxu0
      %v3082 = vadd.f32 %v2978, %v3081
      %v3083 = vpop.f32.mrf.mxu0
      %3084 = vmatprep.mubr.f32.mxu0 0.0
      %3085 = vmatmul.mubr.f32.gmra.mxu0 %v623
      %v3086 = vpop.f32.mrf.mxu0
      %v3087 = vadd.f32 %v2978, %v3086
      %v3088 = vpop.f32.mrf.mxu0
      %3089 = vmatprep.mubr.f32.mxu0 0.0
      %3090 = vmatmul.mubr.f32.gmra.mxu0 %v626
      %v3091 = vpop.f32.mrf.mxu0
      %v3092 = vadd.f32 %v2978, %v3091
      %v3093 = vpop.f32.mrf.mxu0
      %3094 = vmatprep.mubr.f32.mxu0 0.0
      %3095 = vmatmul.mubr.f32.gmra.mxu0 %v629
      %v3096 = vpop.f32.mrf.mxu0
      %v3097 = vadd.f32 %v2978, %v3096
      %v3098 = vpop.f32.mrf.mxu0
      %3099 = vmatprep.mubr.f32.mxu0 0.0
      %3100 = vmatmul.mubr.f32.gmra.mxu0 %v632
      %v3101 = vpop.f32.mrf.mxu0
      %v3102 = vadd.f32 %v2978, %v3101
      %v3103 = vpop.f32.mrf.mxu0
      %3104 = vmatprep.mubr.f32.mxu0 0.0
      %3105 = vmatmul.mubr.f32.gmra.mxu0 %v635
      %v3106 = vpop.f32.mrf.mxu0
      %v3107 = vadd.f32 %v2978, %v3106
      %v3108 = vpop.f32.mrf.mxu0
      %3109 = vmatprep.mubr.f32.mxu0 0.0
      %3110 = vmatmul.mubr.f32.gmra.mxu0 %v638
      %v3111 = vpop.f32.mrf.mxu0
      %v3112 = vadd.f32 %v2978, %v3111
      %v3113 = vpop.f32.mrf.mxu0
      %3114 = vmatprep.mubr.f32.mxu0 0.0
      %3115 = vmatmul.mubr.f32.gmra.mxu0 %v641
      %v3116 = vpop.f32.mrf.mxu0
      %v3117 = vadd.f32 %v2978, %v3116
      %v3118 = vpop.f32.mrf.mxu0
      %3119 = vmatprep.mubr.f32.mxu0 0.0
      %3120 = vmatmul.mubr.f32.gmra.mxu0 %v644
      %v3121 = vpop.f32.mrf.mxu0
      %v3122 = vadd.f32 %v2978, %v3121
      %v3123 = vpop.f32.mrf.mxu0
      %3124 = vmatprep.mubr.f32.mxu0 0.0
      %3125 = vmatmul.mubr.f32.gmra.mxu0 %v647
      %v3126 = vpop.f32.mrf.mxu0
      %v3127 = vadd.f32 %v2978, %v3126
      %v3128 = vpop.f32.mrf.mxu0
      %3129 = vmatprep.mubr.f32.mxu0 0.0
      %3130 = vmatmul.mubr.f32.gmra.mxu0 %v650
      %v3131 = vpop.f32.mrf.mxu0
      %v3132 = vadd.f32 %v2978, %v3131
      %v3133 = vpop.f32.mrf.mxu0
      %3134 = vmatprep.mubr.f32.mxu0 0.0
      %3135 = vmatmul.mubr.f32.gmra.mxu0 %v653
      %v3136 = vpop.f32.mrf.mxu0
      %v3137 = vadd.f32 %v2978, %v3136
      %v3138 = vpop.f32.mrf.mxu0
      %3139 = vmatprep.mubr.f32.mxu0 0.0
      %3140 = vmatmul.mubr.f32.gmra.mxu0 %v656
      %v3141 = vpop.f32.mrf.mxu0
      %v3142 = vadd.f32 %v2978, %v3141
      %v3143 = vpop.f32.mrf.mxu0
      %3144 = vmatprep.mubr.f32.mxu0 0.0
      %3145 = vmatmul.mubr.f32.gmra.mxu0 %v659
      %v3146 = vpop.f32.mrf.mxu0
      %v3147 = vadd.f32 %v2978, %v3146
      %v3148 = vpop.f32.mrf.mxu0
      %3149 = vmatprep.mubr.f32.mxu0 0.0
      %3150 = vmatmul.mubr.f32.gmra.mxu0 %v662
      %v3151 = vpop.f32.mrf.mxu0
      %v3152 = vadd.f32 %v2978, %v3151
      %v3153 = vpop.f32.mrf.mxu0
      %3154 = vmatprep.mubr.f32.mxu0 0.0
      %3155 = vmatmul.mubr.f32.gmra.mxu0 %v665
      %v3156 = vpop.f32.mrf.mxu0
      %v3157 = vadd.f32 %v2978, %v3156
      %v3158 = vpop.f32.mrf.mxu0
      %3159 = vmatprep.mubr.f32.mxu0 0.0
      %3160 = vmatmul.mubr.f32.gmra.mxu0 %v668
      %v3161 = vpop.f32.mrf.mxu0
      %v3162 = vadd.f32 %v2978, %v3161
      %v3163 = vpop.f32.mrf.mxu0
      %3164 = vmatprep.mubr.f32.mxu0 0.0
      %3165 = vmatmul.mubr.f32.gmra.mxu0 %v671
      %v3166 = vpop.f32.mrf.mxu0
      %v3167 = vadd.f32 %v2978, %v3166
      %v3168 = vpop.f32.mrf.mxu0
      %3169 = vmatprep.mubr.f32.mxu0 0.0
      %3170 = vmatmul.mubr.f32.gmra.mxu0 %v674
      %v3171 = vpop.f32.mrf.mxu0
      %v3172 = vadd.f32 %v2978, %v3171
      %v3173 = vpop.f32.mrf.mxu0
      %3174 = vmatprep.mubr.f32.mxu0 0.0
      %3175 = vmatmul.mubr.f32.gmra.mxu0 %v677
      %v3176 = vpop.f32.mrf.mxu0
      %v3177 = vadd.f32 %v2978, %v3176
      %v3178 = vpop.f32.mrf.mxu0
      %3179 = vmatprep.mubr.f32.mxu0 0.0
      %3180 = vmatmul.mubr.f32.gmra.mxu0 %v680
      %v3181 = vpop.f32.mrf.mxu0
      %v3182 = vadd.f32 %v2978, %v3181
      %v3183 = vpop.f32.mrf.mxu0
      %3184 = vmatprep.mubr.f32.mxu0 0.0
      %3185 = vmatmul.mubr.f32.gmra.mxu0 %v683
      %v3186 = vpop.f32.mrf.mxu0
      %v3187 = vadd.f32 %v2978, %v3186
      %v3188 = vpop.f32.mrf.mxu0
      %3189 = vmatprep.mubr.f32.mxu0 0.0
      %3190 = vmatmul.mubr.f32.gmra.mxu0 %v686
      %v3191 = vpop.f32.mrf.mxu0
      %v3192 = vadd.f32 %v2978, %v3191
      %v3193 = vpop.f32.mrf.mxu0
      %3194 = vmatprep.mubr.f32.mxu0 0.0
      %3195 = vmatmul.mubr.f32.gmra.mxu0 %v689
      %v3196 = vpop.f32.mrf.mxu0
      %v3197 = vadd.f32 %v2978, %v3196
      %v3198 = vpop.f32.mrf.mxu0
      %3199 = vmatprep.mubr.f32.mxu0 0.0
      %3200 = vmatmul.mubr.f32.gmra.mxu0 %v692
      %v3201 = vpop.f32.mrf.mxu0
      %v3202 = vadd.f32 %v2978, %v3201
      %v3203 = vpop.f32.mrf.mxu0
      %3204 = vdwg.mxu0
      %v3205 = vld [vmem:[%s2873 + $0x1] sm:$0xff]
      %v3206 = vld [vmem:[%s2873 + $0x9] sm:$0xff]
      %v3207 = vld [vmem:[%s2873 + $0x19] sm:$0xff]
      %v3208 = vld [vmem:[%s2873 + $0x21] sm:$0xff]
      %v3209 = vld [vmem:[%s2873 + $0x31] sm:$0xff]
      %v3210 = vld [vmem:[%s2873 + $0x39] sm:$0xff]
      %v3211 = vld [vmem:[%s2873 + $0x49] sm:$0xff]
      %v3212 = vld [vmem:[%s2873 + $0x51] sm:$0xff]
      %v3213 = vld [vmem:[%s2873 + $0x61] sm:$0xff]
      %v3214 = vld [vmem:[%s2873 + $0x69] sm:$0xff]
      %v3215 = vld [vmem:[%s2873 + $0x79] sm:$0xff]
      %v3216 = vld [vmem:[%s2873 + $0x81] sm:$0xff]
      %v3217 = vld [vmem:[%s2873 + $0x91] sm:$0xff]
      %v3218 = vld [vmem:[%s2873 + $0x99] sm:$0xff]
      %v3219 = vld [vmem:[%s2873 + $0xa9] sm:$0xff]
      %v3220 = vld [vmem:[%s2873 + $0xb1] sm:$0xff]
      %v3221 = vld [vmem:[%s2873 + $0xc1] sm:$0xff]
      %v3222 = vld [vmem:[%s2873 + $0xc9] sm:$0xff]
      %v3223 = vld [vmem:[%s2873 + $0xd9] sm:$0xff]
      %v3224 = vld [vmem:[%s2873 + $0xe1] sm:$0xff]
      %v3225 = vld [vmem:[%s2873 + $0xf1] sm:$0xff]
      %v3226 = vld [vmem:[%s2873 + $0xf9] sm:$0xff]
      %v3227 = vld [vmem:[%s2873 + $0x109] sm:$0xff]
      %v3228 = vld [vmem:[%s2873 + $0x111] sm:$0xff]
      %v3229 = vld [vmem:[%s2873 + $0x121] sm:$0xff]
      %v3230 = vld [vmem:[%s2873 + $0x129] sm:$0xff]
      %v3231 = vld [vmem:[%s2873 + $0x139] sm:$0xff]
      %v3232 = vld [vmem:[%s2873 + $0x141] sm:$0xff]
      %v3233 = vld [vmem:[%s2873 + $0x151] sm:$0xff]
      %v3234 = vld [vmem:[%s2873 + $0x159] sm:$0xff]
      %v3235 = vld [vmem:[%s2873 + $0x169] sm:$0xff]
      %v3236 = vld [vmem:[%s2873 + $0x171] sm:$0xff]
      %v3237 = vmul.f32 %v3047, %v3205
      %v3238 = vmul.f32 %v3052, %v3206
      %v3239 = vmul.f32 %v3057, %v3207
      %v3240 = vmul.f32 %v3062, %v3208
      %v3241 = vmul.f32 %v3067, %v3209
      %v3242 = vmul.f32 %v3072, %v3210
      %v3243 = vmul.f32 %v3077, %v3211
      %v3244 = vmul.f32 %v3082, %v3212
      %v3245 = vmul.f32 %v3087, %v3213
      %v3246 = vmul.f32 %v3092, %v3214
      %v3247 = vmul.f32 %v3097, %v3215
      %v3248 = vmul.f32 %v3102, %v3216
      %v3249 = vmul.f32 %v3107, %v3217
      %v3250 = vmul.f32 %v3112, %v3218
      %v3251 = vmul.f32 %v3117, %v3219
      %v3252 = vmul.f32 %v3122, %v3220
      %v3253 = vmul.f32 %v3127, %v3221
      %v3254 = vmul.f32 %v3132, %v3222
      %v3255 = vmul.f32 %v3137, %v3223
      %v3256 = vmul.f32 %v3142, %v3224
      %v3257 = vmul.f32 %v3147, %v3225
      %v3258 = vmul.f32 %v3152, %v3226
      %v3259 = vmul.f32 %v3157, %v3227
      %v3260 = vmul.f32 %v3162, %v3228
      %v3261 = vmul.f32 %v3167, %v3229
      %v3262 = vmul.f32 %v3172, %v3230
      %v3263 = vmul.f32 %v3177, %v3231
      %v3264 = vmul.f32 %v3182, %v3232
      %v3265 = vmul.f32 %v3187, %v3233
      %v3266 = vmul.f32 %v3192, %v3234
      %v3267 = vmul.f32 %v3197, %v3235
      %v3268 = vmul.f32 %v3202, %v3236
      %v3269 = vadd.f32 %v2938, %v3237
      %v3270 = vadd.f32 %v2939, %v3238
      %v3271 = vadd.f32 %v2940, %v3239
      %v3272 = vadd.f32 %v2941, %v3240
      %v3273 = vadd.f32 %v2942, %v3241
      %v3274 = vadd.f32 %v2943, %v3242
      %v3275 = vadd.f32 %v2944, %v3243
      %v3276 = vadd.f32 %v2945, %v3244
      %v3277 = vadd.f32 %v2946, %v3245
      %v3278 = vadd.f32 %v2947, %v3246
      %v3279 = vadd.f32 %v2948, %v3247
      %v3280 = vadd.f32 %v2949, %v3248
      %v3281 = vadd.f32 %v2950, %v3249
      %v3282 = vadd.f32 %v2951, %v3250
      %v3283 = vadd.f32 %v2952, %v3251
      %v3284 = vadd.f32 %v2953, %v3252
      %v3285 = vadd.f32 %v2954, %v3253
      %v3286 = vadd.f32 %v2955, %v3254
      %v3287 = vadd.f32 %v2956, %v3255
      %v3288 = vadd.f32 %v2957, %v3256
      %v3289 = vadd.f32 %v2958, %v3257
      %v3290 = vadd.f32 %v2959, %v3258
      %v3291 = vadd.f32 %v2960, %v3259
      %v3292 = vadd.f32 %v2961, %v3260
      %v3293 = vadd.f32 %v2962, %v3261
      %v3294 = vadd.f32 %v2963, %v3262
      %v3295 = vadd.f32 %v2964, %v3263
      %v3296 = vadd.f32 %v2965, %v3264
      %v3297 = vadd.f32 %v2966, %v3265
      %v3298 = vadd.f32 %v2967, %v3266
      %v3299 = vadd.f32 %v2968, %v3267
      %v3300 = vadd.f32 %v2969, %v3268
      %s3301 = scalar_lea.vmem %s3, 64
      %v3302 = vld [vmem:[%s3301] sm:$0xff]
      %s3303 = scalar_lea.vmem %s4, 8
      %v3304 = vld [vmem:[%s3303] sm:$0x1]
      %v3306 = vlaneseq
      %v3307 = vshrl.u32 %v3306, 7
      %v3308 = vsub.s32 0, %v3307
      %v3309 = vrot.slane %v3304, %v3308
      %3311 = vmatprep.subr.mxu0 0.0
      %3312 = vmatpush1.msra.mxu0 0.0
      %3313 = vmatprep.subr.mxu0 0.0
      %3314 = vmatpush1.msra.mxu0 0.0
      %3315 = vmatprep.subr.mxu0 0.0
      %3316 = vmatpush1.msra.mxu0 0.0
      %3317 = vmatprep.subr.mxu0 0.0
      %3318 = vmatpush1.msra.mxu0 0.0
      %3319 = vmatprep.subr.mxu0 0.0
      %3320 = vmatpush1.msra.mxu0 0.0
      %3321 = vmatprep.subr.mxu0 0.0
      %3322 = vmatpush1.msra.mxu0 0.0
      %3323 = vmatprep.subr.mxu0 0.0
      %3324 = vmatpush1.msra.mxu0 0.0
      %3325 = vmatprep.subr.mxu0 0.0
      %3326 = vmatpush1.msra.mxu0 0.0
      %3327 = vmatprep.subr.mxu0 0.0
      %3328 = vmatpush1.msra.mxu0 0.0
      %3329 = vmatprep.subr.mxu0 0.0
      %3330 = vmatpush1.msra.mxu0 0.0
      %3331 = vmatprep.subr.mxu0 0.0
      %3332 = vmatpush1.msra.mxu0 0.0
      %3333 = vmatprep.subr.mxu0 0.0
      %3334 = vmatpush1.msra.mxu0 0.0
      %3335 = vmatprep.subr.mxu0 0.0
      %3336 = vmatpush1.msra.mxu0 0.0
      %3337 = vmatprep.subr.mxu0 0.0
      %3338 = vmatpush1.msra.mxu0 0.0
      %3339 = vmatprep.subr.mxu0 0.0
      %3340 = vmatpush1.msra.mxu0 0.0
      %3341 = vmatprep.subr.mxu0 0.0
      %3342 = vmatpush1.msra.mxu0 %v3302
      %3343 = vmatprep.subr.mxu0 0.0
      %3344 = vmatpush2.msra.mxu0 0.0
      %3345 = vmatprep.subr.mxu0 0.0
      %3346 = vmatpush2.msra.mxu0 0.0
      %3347 = vmatprep.subr.mxu0 0.0
      %3348 = vmatpush2.msra.mxu0 0.0
      %3349 = vmatprep.subr.mxu0 0.0
      %3350 = vmatpush2.msra.mxu0 0.0
      %3351 = vmatprep.subr.mxu0 0.0
      %3352 = vmatpush2.msra.mxu0 0.0
      %3353 = vmatprep.subr.mxu0 0.0
      %3354 = vmatpush2.msra.mxu0 0.0
      %3355 = vmatprep.subr.mxu0 0.0
      %3356 = vmatpush2.msra.mxu0 0.0
      %3357 = vmatprep.subr.mxu0 0.0
      %3358 = vmatpush2.msra.mxu0 0.0
      %3359 = vmatprep.subr.mxu0 0.0
      %3360 = vmatpush2.msra.mxu0 0.0
      %3361 = vmatprep.subr.mxu0 0.0
      %3362 = vmatpush2.msra.mxu0 0.0
      %3363 = vmatprep.subr.mxu0 0.0
      %3364 = vmatpush2.msra.mxu0 0.0
      %3365 = vmatprep.subr.mxu0 0.0
      %3366 = vmatpush2.msra.mxu0 0.0
      %3367 = vmatprep.subr.mxu0 0.0
      %3368 = vmatpush2.msra.mxu0 0.0
      %3369 = vmatprep.subr.mxu0 0.0
      %3370 = vmatpush2.msra.mxu0 0.0
      %3371 = vmatprep.subr.mxu0 0.0
      %3372 = vmatpush2.msra.mxu0 0.0
      %3373 = vmatprep.subr.mxu0 0.0
      %3374 = vmatpush2.msra.mxu0 0.0
      %3375 = vmatprep.mubr.f32.mxu0 0.0
      %3376 = vmatmul.mubr.f32.gmra.mxu0 %v599
      %v3377 = vpop.f32.mrf.mxu0
      %v3378 = vadd.f32 %v3309, %v3377
      %v3379 = vpop.f32.mrf.mxu0
      %3380 = vmatprep.mubr.f32.mxu0 0.0
      %3381 = vmatmul.mubr.f32.gmra.mxu0 %v602
      %v3382 = vpop.f32.mrf.mxu0
      %v3383 = vadd.f32 %v3309, %v3382
      %v3384 = vpop.f32.mrf.mxu0
      %3385 = vmatprep.mubr.f32.mxu0 0.0
      %3386 = vmatmul.mubr.f32.gmra.mxu0 %v605
      %v3387 = vpop.f32.mrf.mxu0
      %v3388 = vadd.f32 %v3309, %v3387
      %v3389 = vpop.f32.mrf.mxu0
      %3390 = vmatprep.mubr.f32.mxu0 0.0
      %3391 = vmatmul.mubr.f32.gmra.mxu0 %v608
      %v3392 = vpop.f32.mrf.mxu0
      %v3393 = vadd.f32 %v3309, %v3392
      %v3394 = vpop.f32.mrf.mxu0
      %3395 = vmatprep.mubr.f32.mxu0 0.0
      %3396 = vmatmul.mubr.f32.gmra.mxu0 %v611
      %v3397 = vpop.f32.mrf.mxu0
      %v3398 = vadd.f32 %v3309, %v3397
      %v3399 = vpop.f32.mrf.mxu0
      %3400 = vmatprep.mubr.f32.mxu0 0.0
      %3401 = vmatmul.mubr.f32.gmra.mxu0 %v614
      %v3402 = vpop.f32.mrf.mxu0
      %v3403 = vadd.f32 %v3309, %v3402
      %v3404 = vpop.f32.mrf.mxu0
      %3405 = vmatprep.mubr.f32.mxu0 0.0
      %3406 = vmatmul.mubr.f32.gmra.mxu0 %v617
      %v3407 = vpop.f32.mrf.mxu0
      %v3408 = vadd.f32 %v3309, %v3407
      %v3409 = vpop.f32.mrf.mxu0
      %3410 = vmatprep.mubr.f32.mxu0 0.0
      %3411 = vmatmul.mubr.f32.gmra.mxu0 %v620
      %v3412 = vpop.f32.mrf.mxu0
      %v3413 = vadd.f32 %v3309, %v3412
      %v3414 = vpop.f32.mrf.mxu0
      %3415 = vmatprep.mubr.f32.mxu0 0.0
      %3416 = vmatmul.mubr.f32.gmra.mxu0 %v623
      %v3417 = vpop.f32.mrf.mxu0
      %v3418 = vadd.f32 %v3309, %v3417
      %v3419 = vpop.f32.mrf.mxu0
      %3420 = vmatprep.mubr.f32.mxu0 0.0
      %3421 = vmatmul.mubr.f32.gmra.mxu0 %v626
      %v3422 = vpop.f32.mrf.mxu0
      %v3423 = vadd.f32 %v3309, %v3422
      %v3424 = vpop.f32.mrf.mxu0
      %3425 = vmatprep.mubr.f32.mxu0 0.0
      %3426 = vmatmul.mubr.f32.gmra.mxu0 %v629
      %v3427 = vpop.f32.mrf.mxu0
      %v3428 = vadd.f32 %v3309, %v3427
      %v3429 = vpop.f32.mrf.mxu0
      %3430 = vmatprep.mubr.f32.mxu0 0.0
      %3431 = vmatmul.mubr.f32.gmra.mxu0 %v632
      %v3432 = vpop.f32.mrf.mxu0
      %v3433 = vadd.f32 %v3309, %v3432
      %v3434 = vpop.f32.mrf.mxu0
      %3435 = vmatprep.mubr.f32.mxu0 0.0
      %3436 = vmatmul.mubr.f32.gmra.mxu0 %v635
      %v3437 = vpop.f32.mrf.mxu0
      %v3438 = vadd.f32 %v3309, %v3437
      %v3439 = vpop.f32.mrf.mxu0
      %3440 = vmatprep.mubr.f32.mxu0 0.0
      %3441 = vmatmul.mubr.f32.gmra.mxu0 %v638
      %v3442 = vpop.f32.mrf.mxu0
      %v3443 = vadd.f32 %v3309, %v3442
      %v3444 = vpop.f32.mrf.mxu0
      %3445 = vmatprep.mubr.f32.mxu0 0.0
      %3446 = vmatmul.mubr.f32.gmra.mxu0 %v641
      %v3447 = vpop.f32.mrf.mxu0
      %v3448 = vadd.f32 %v3309, %v3447
      %v3449 = vpop.f32.mrf.mxu0
      %3450 = vmatprep.mubr.f32.mxu0 0.0
      %3451 = vmatmul.mubr.f32.gmra.mxu0 %v644
      %v3452 = vpop.f32.mrf.mxu0
      %v3453 = vadd.f32 %v3309, %v3452
      %v3454 = vpop.f32.mrf.mxu0
      %3455 = vmatprep.mubr.f32.mxu0 0.0
      %3456 = vmatmul.mubr.f32.gmra.mxu0 %v647
      %v3457 = vpop.f32.mrf.mxu0
      %v3458 = vadd.f32 %v3309, %v3457
      %v3459 = vpop.f32.mrf.mxu0
      %3460 = vmatprep.mubr.f32.mxu0 0.0
      %3461 = vmatmul.mubr.f32.gmra.mxu0 %v650
      %v3462 = vpop.f32.mrf.mxu0
      %v3463 = vadd.f32 %v3309, %v3462
      %v3464 = vpop.f32.mrf.mxu0
      %3465 = vmatprep.mubr.f32.mxu0 0.0
      %3466 = vmatmul.mubr.f32.gmra.mxu0 %v653
      %v3467 = vpop.f32.mrf.mxu0
      %v3468 = vadd.f32 %v3309, %v3467
      %v3469 = vpop.f32.mrf.mxu0
      %3470 = vmatprep.mubr.f32.mxu0 0.0
      %3471 = vmatmul.mubr.f32.gmra.mxu0 %v656
      %v3472 = vpop.f32.mrf.mxu0
      %v3473 = vadd.f32 %v3309, %v3472
      %v3474 = vpop.f32.mrf.mxu0
      %3475 = vmatprep.mubr.f32.mxu0 0.0
      %3476 = vmatmul.mubr.f32.gmra.mxu0 %v659
      %v3477 = vpop.f32.mrf.mxu0
      %v3478 = vadd.f32 %v3309, %v3477
      %v3479 = vpop.f32.mrf.mxu0
      %3480 = vmatprep.mubr.f32.mxu0 0.0
      %3481 = vmatmul.mubr.f32.gmra.mxu0 %v662
      %v3482 = vpop.f32.mrf.mxu0
      %v3483 = vadd.f32 %v3309, %v3482
      %v3484 = vpop.f32.mrf.mxu0
      %3485 = vmatprep.mubr.f32.mxu0 0.0
      %3486 = vmatmul.mubr.f32.gmra.mxu0 %v665
      %v3487 = vpop.f32.mrf.mxu0
      %v3488 = vadd.f32 %v3309, %v3487
      %v3489 = vpop.f32.mrf.mxu0
      %3490 = vmatprep.mubr.f32.mxu0 0.0
      %3491 = vmatmul.mubr.f32.gmra.mxu0 %v668
      %v3492 = vpop.f32.mrf.mxu0
      %v3493 = vadd.f32 %v3309, %v3492
      %v3494 = vpop.f32.mrf.mxu0
      %3495 = vmatprep.mubr.f32.mxu0 0.0
      %3496 = vmatmul.mubr.f32.gmra.mxu0 %v671
      %v3497 = vpop.f32.mrf.mxu0
      %v3498 = vadd.f32 %v3309, %v3497
      %v3499 = vpop.f32.mrf.mxu0
      %3500 = vmatprep.mubr.f32.mxu0 0.0
      %3501 = vmatmul.mubr.f32.gmra.mxu0 %v674
      %v3502 = vpop.f32.mrf.mxu0
      %v3503 = vadd.f32 %v3309, %v3502
      %v3504 = vpop.f32.mrf.mxu0
      %3505 = vmatprep.mubr.f32.mxu0 0.0
      %3506 = vmatmul.mubr.f32.gmra.mxu0 %v677
      %v3507 = vpop.f32.mrf.mxu0
      %v3508 = vadd.f32 %v3309, %v3507
      %v3509 = vpop.f32.mrf.mxu0
      %3510 = vmatprep.mubr.f32.mxu0 0.0
      %3511 = vmatmul.mubr.f32.gmra.mxu0 %v680
      %v3512 = vpop.f32.mrf.mxu0
      %v3513 = vadd.f32 %v3309, %v3512
      %v3514 = vpop.f32.mrf.mxu0
      %3515 = vmatprep.mubr.f32.mxu0 0.0
      %3516 = vmatmul.mubr.f32.gmra.mxu0 %v683
      %v3517 = vpop.f32.mrf.mxu0
      %v3518 = vadd.f32 %v3309, %v3517
      %v3519 = vpop.f32.mrf.mxu0
      %3520 = vmatprep.mubr.f32.mxu0 0.0
      %3521 = vmatmul.mubr.f32.gmra.mxu0 %v686
      %v3522 = vpop.f32.mrf.mxu0
      %v3523 = vadd.f32 %v3309, %v3522
      %v3524 = vpop.f32.mrf.mxu0
      %3525 = vmatprep.mubr.f32.mxu0 0.0
      %3526 = vmatmul.mubr.f32.gmra.mxu0 %v689
      %v3527 = vpop.f32.mrf.mxu0
      %v3528 = vadd.f32 %v3309, %v3527
      %v3529 = vpop.f32.mrf.mxu0
      %3530 = vmatprep.mubr.f32.mxu0 0.0
      %3531 = vmatmul.mubr.f32.gmra.mxu0 %v692
      %v3532 = vpop.f32.mrf.mxu0
      %v3533 = vadd.f32 %v3309, %v3532
      %v3534 = vpop.f32.mrf.mxu0
      %3535 = vdwg.mxu0
      %v3536 = vld [vmem:[%s2873 + $0x2] sm:$0xff]
      %v3537 = vld [vmem:[%s2873 + $0xa] sm:$0xff]
      %v3538 = vld [vmem:[%s2873 + $0x1a] sm:$0xff]
      %v3539 = vld [vmem:[%s2873 + $0x22] sm:$0xff]
      %v3540 = vld [vmem:[%s2873 + $0x32] sm:$0xff]
      %v3541 = vld [vmem:[%s2873 + $0x3a] sm:$0xff]
      %v3542 = vld [vmem:[%s2873 + $0x4a] sm:$0xff]
      %v3543 = vld [vmem:[%s2873 + $0x52] sm:$0xff]
      %v3544 = vld [vmem:[%s2873 + $0x62] sm:$0xff]
      %v3545 = vld [vmem:[%s2873 + $0x6a] sm:$0xff]
      %v3546 = vld [vmem:[%s2873 + $0x7a] sm:$0xff]
      %v3547 = vld [vmem:[%s2873 + $0x82] sm:$0xff]
      %v3548 = vld [vmem:[%s2873 + $0x92] sm:$0xff]
      %v3549 = vld [vmem:[%s2873 + $0x9a] sm:$0xff]
      %v3550 = vld [vmem:[%s2873 + $0xaa] sm:$0xff]
      %v3551 = vld [vmem:[%s2873 + $0xb2] sm:$0xff]
      %v3552 = vld [vmem:[%s2873 + $0xc2] sm:$0xff]
      %v3553 = vld [vmem:[%s2873 + $0xca] sm:$0xff]
      %v3554 = vld [vmem:[%s2873 + $0xda] sm:$0xff]
      %v3555 = vld [vmem:[%s2873 + $0xe2] sm:$0xff]
      %v3556 = vld [vmem:[%s2873 + $0xf2] sm:$0xff]
      %v3557 = vld [vmem:[%s2873 + $0xfa] sm:$0xff]
      %v3558 = vld [vmem:[%s2873 + $0x10a] sm:$0xff]
      %v3559 = vld [vmem:[%s2873 + $0x112] sm:$0xff]
      %v3560 = vld [vmem:[%s2873 + $0x122] sm:$0xff]
      %v3561 = vld [vmem:[%s2873 + $0x12a] sm:$0xff]
      %v3562 = vld [vmem:[%s2873 + $0x13a] sm:$0xff]
      %v3563 = vld [vmem:[%s2873 + $0x142] sm:$0xff]
      %v3564 = vld [vmem:[%s2873 + $0x152] sm:$0xff]
      %v3565 = vld [vmem:[%s2873 + $0x15a] sm:$0xff]
      %v3566 = vld [vmem:[%s2873 + $0x16a] sm:$0xff]
      %v3567 = vld [vmem:[%s2873 + $0x172] sm:$0xff]
      %v3568 = vmul.f32 %v3378, %v3536
      %v3569 = vmul.f32 %v3383, %v3537
      %v3570 = vmul.f32 %v3388, %v3538
      %v3571 = vmul.f32 %v3393, %v3539
      %v3572 = vmul.f32 %v3398, %v3540
      %v3573 = vmul.f32 %v3403, %v3541
      %v3574 = vmul.f32 %v3408, %v3542
      %v3575 = vmul.f32 %v3413, %v3543
      %v3576 = vmul.f32 %v3418, %v3544
      %v3577 = vmul.f32 %v3423, %v3545
      %v3578 = vmul.f32 %v3428, %v3546
      %v3579 = vmul.f32 %v3433, %v3547
      %v3580 = vmul.f32 %v3438, %v3548
      %v3581 = vmul.f32 %v3443, %v3549
      %v3582 = vmul.f32 %v3448, %v3550
      %v3583 = vmul.f32 %v3453, %v3551
      %v3584 = vmul.f32 %v3458, %v3552
      %v3585 = vmul.f32 %v3463, %v3553
      %v3586 = vmul.f32 %v3468, %v3554
      %v3587 = vmul.f32 %v3473, %v3555
      %v3588 = vmul.f32 %v3478, %v3556
      %v3589 = vmul.f32 %v3483, %v3557
      %v3590 = vmul.f32 %v3488, %v3558
      %v3591 = vmul.f32 %v3493, %v3559
      %v3592 = vmul.f32 %v3498, %v3560
      %v3593 = vmul.f32 %v3503, %v3561
      %v3594 = vmul.f32 %v3508, %v3562
      %v3595 = vmul.f32 %v3513, %v3563
      %v3596 = vmul.f32 %v3518, %v3564
      %v3597 = vmul.f32 %v3523, %v3565
      %v3598 = vmul.f32 %v3528, %v3566
      %v3599 = vmul.f32 %v3533, %v3567
      %v3600 = vadd.f32 %v3269, %v3568
      %v3601 = vadd.f32 %v3270, %v3569
      %v3602 = vadd.f32 %v3271, %v3570
      %v3603 = vadd.f32 %v3272, %v3571
      %v3604 = vadd.f32 %v3273, %v3572
      %v3605 = vadd.f32 %v3274, %v3573
      %v3606 = vadd.f32 %v3275, %v3574
      %v3607 = vadd.f32 %v3276, %v3575
      %v3608 = vadd.f32 %v3277, %v3576
      %v3609 = vadd.f32 %v3278, %v3577
      %v3610 = vadd.f32 %v3279, %v3578
      %v3611 = vadd.f32 %v3280, %v3579
      %v3612 = vadd.f32 %v3281, %v3580
      %v3613 = vadd.f32 %v3282, %v3581
      %v3614 = vadd.f32 %v3283, %v3582
      %v3615 = vadd.f32 %v3284, %v3583
      %v3616 = vadd.f32 %v3285, %v3584
      %v3617 = vadd.f32 %v3286, %v3585
      %v3618 = vadd.f32 %v3287, %v3586
      %v3619 = vadd.f32 %v3288, %v3587
      %v3620 = vadd.f32 %v3289, %v3588
      %v3621 = vadd.f32 %v3290, %v3589
      %v3622 = vadd.f32 %v3291, %v3590
      %v3623 = vadd.f32 %v3292, %v3591
      %v3624 = vadd.f32 %v3293, %v3592
      %v3625 = vadd.f32 %v3294, %v3593
      %v3626 = vadd.f32 %v3295, %v3594
      %v3627 = vadd.f32 %v3296, %v3595
      %v3628 = vadd.f32 %v3297, %v3596
      %v3629 = vadd.f32 %v3298, %v3597
      %v3630 = vadd.f32 %v3299, %v3598
      %v3631 = vadd.f32 %v3300, %v3599
      %3632 = vst.msk [vmem:[%s224] sm:$0xff] %vm267, %v3600
      %3633 = vst.msk [vmem:[%s224 + $0x8] sm:$0xff] %vm267, %v3601
      %3634 = vst.msk [vmem:[%s224 + $0x10] sm:$0xff] %vm267, %v3602
      %3635 = vst.msk [vmem:[%s224 + $0x18] sm:$0xff] %vm267, %v3603
      %3636 = vst.msk [vmem:[%s224 + $0x20] sm:$0xff] %vm267, %v3604
      %3637 = vst.msk [vmem:[%s224 + $0x28] sm:$0xff] %vm267, %v3605
      %3638 = vst.msk [vmem:[%s224 + $0x30] sm:$0xff] %vm267, %v3606
      %3639 = vst.msk [vmem:[%s224 + $0x38] sm:$0xff] %vm267, %v3607
      %3640 = vst.msk [vmem:[%s224 + $0x40] sm:$0xff] %vm267, %v3608
      %3641 = vst.msk [vmem:[%s224 + $0x48] sm:$0xff] %vm267, %v3609
      %3642 = vst.msk [vmem:[%s224 + $0x50] sm:$0xff] %vm267, %v3610
      %3643 = vst.msk [vmem:[%s224 + $0x58] sm:$0xff] %vm267, %v3611
      %3644 = vst.msk [vmem:[%s224 + $0x60] sm:$0xff] %vm267, %v3612
      %3645 = vst.msk [vmem:[%s224 + $0x68] sm:$0xff] %vm267, %v3613
      %3646 = vst.msk [vmem:[%s224 + $0x70] sm:$0xff] %vm267, %v3614
      %3647 = vst.msk [vmem:[%s224 + $0x78] sm:$0xff] %vm267, %v3615
      %3648 = vst.msk [vmem:[%s224 + $0x80] sm:$0xff] %vm267, %v3616
      %3649 = vst.msk [vmem:[%s224 + $0x88] sm:$0xff] %vm267, %v3617
      %3650 = vst.msk [vmem:[%s224 + $0x90] sm:$0xff] %vm267, %v3618
      %3651 = vst.msk [vmem:[%s224 + $0x98] sm:$0xff] %vm267, %v3619
      %3652 = vst.msk [vmem:[%s224 + $0xa0] sm:$0xff] %vm267, %v3620
      %3653 = vst.msk [vmem:[%s224 + $0xa8] sm:$0xff] %vm267, %v3621
      %3654 = vst.msk [vmem:[%s224 + $0xb0] sm:$0xff] %vm267, %v3622
      %3655 = vst.msk [vmem:[%s224 + $0xb8] sm:$0xff] %vm267, %v3623
      %3656 = vst.msk [vmem:[%s224 + $0xc0] sm:$0xff] %vm267, %v3624
      %3657 = vst.msk [vmem:[%s224 + $0xc8] sm:$0xff] %vm267, %v3625
      %3658 = vst.msk [vmem:[%s224 + $0xd0] sm:$0xff] %vm267, %v3626
      %3659 = vst.msk [vmem:[%s224 + $0xd8] sm:$0xff] %vm267, %v3627
      %3660 = vst.msk [vmem:[%s224 + $0xe0] sm:$0xff] %vm267, %v3628
      %3661 = vst.msk [vmem:[%s224 + $0xe8] sm:$0xff] %vm267, %v3629
      %3662 = vst.msk [vmem:[%s224 + $0xf0] sm:$0xff] %vm267, %v3630
      %3663 = vst.msk [vmem:[%s224 + $0xf8] sm:$0xff] %vm267, %v3631
      %p3664 = scmp.lt.s32.totalorder %s16, 1
      %s3665 = scalar_select %p3664, %s16, 1
      %s3666 = smul.addr %s3665, 32
      %s3667 = smul.addr %s3666, 8
      %s3668 = scalar_lea.vmem %s5, %s3667
      // Predicated region
      $region41: #{tpu_custom_call.1} parent=39 // pred_check
        %p3669 = pneg %p144
      $region42: #{tpu_custom_call.1} parent=39 // pred_check_branch
        %3671 = sbr.rel (%p3669) target = $region44
      $region43: #{tpu_custom_call.1} parent=39 // pred_region
        _
      $region44: #{tpu_custom_call.1} parent=39 // pred_fallthru
        _
    $region40: #{tpu_custom_call.1} parent=5 // pred_fallthru
      _
    %p3672 = scmp.le.s32.totalorder 2, %s11
    // Predicated region
    $region45: #{tpu_custom_call.1} parent=5 // pred_check
      %p3673 = pneg %p3672
    $region46: #{tpu_custom_call.1} parent=5 // pred_check_branch
      %3675 = sbr.rel (%p3673) target = $region48
    $region47: #{tpu_custom_call.1} parent=5 // pred_region
      %s3676 = ssub.s32 %s11, 2
      // Predicated region
      $region49: #{tpu_custom_call.1} parent=47 // pred_check
        %p3677 = pneg %p150
      $region50: #{tpu_custom_call.1} parent=47 // pred_check_branch
        %3679 = sbr.rel (%p3677) target = $region52
      $region51: #{tpu_custom_call.1} parent=47 // pred_region
        %p3680 = scmp.lt.s32.totalorder %s17, 1
        %s3681 = scalar_select %p3680, %s17, 1
        %s3682 = smul.addr %s3681, 32
        %s3683 = smul.addr %s3682, 8
        %s3684 = scalar_lea.vmem %s5, %s3683
      $region52: #{tpu_custom_call.1} parent=47 // pred_fallthru
        _
    $region48: #{tpu_custom_call.1} parent=5 // pred_fallthru
      _
  $region6: #{tpu_custom_call.1} parent=0 // loop_footer
    %s15 = sadd.s32 1, %s11
  $region7: #{tpu_custom_call.1} parent=0 // loop_footer_branch
    %10 = sbr.rel target = $region3
  $region8: #{tpu_custom_call.1} parent=0 // loop_exit
    _

</llo_original>
